<compile_context>
chip_gen: v7x
topology: tpu7x:2x2x1
jax: 0.10.0
libtpu: 0.0.40
codegen_flags: <defaults>
</compile_context>

<pallas_src>
import math
import functools

import jax
import jax.numpy as jnp
from jax.experimental import pallas as pl
from jax.experimental.pallas import tpu as pltpu

P = 128          # lane-dense padded feature width
LN_EPS = 1e-5    # torch.nn.LayerNorm default


# ----------------------------------------------------------------------------
# Fused forward kernel
# ----------------------------------------------------------------------------
def _fused_forward_kernel(
    # activations (zero-padded to [N, P], f32)
    x_ref, xu_ref, temb_ref,
    # time-embedding linear: weight (P, 2P) bf16 (both lane-offset copies), bias (2,1,P) f32
    emb_w_ref, emb_b_ref,
    # stacked encoder-layer params, axis 0 = layer (0..1: enc1, 2..3: enc2)
    wqkv_ref, bqkv_ref, wo_ref, bo_ref,
    w1_ref, b1_ref, w2_ref, b2_ref,
    g1_ref, be1_ref, g2_ref, be2_ref,
    # output MLP: layer-0 weight is a (2P, P) slab (h rows / h_U rows), rest stacked
    w_out0_ref, w_out_rest_ref, b_out_ref,
    # output
    o_ref,
    *, nhead, n_enc_layers, d1, d2, n_out):
    f32 = jnp.float32
    bf16 = jnp.bfloat16
    n, p = x_ref.shape

    def layernorm(y, g, b, d, mask):
        # Padded lanes of `y` are exactly zero, so the plain 128-lane sum is
        # the true sum over d lanes; variance needs the explicit mask because
        # (0 - mu)^2 != 0 on padded lanes.  f32 throughout (v5e VPU).
        mu = jnp.sum(y, axis=-1, keepdims=True) * (1.0 / d)
        diff = jnp.where(mask, y - mu, 0.0)
        var = jnp.sum(diff * diff, axis=-1, keepdims=True) * (1.0 / d)
        return diff * jax.lax.rsqrt(var + LN_EPS) * g + b

    def encoder_layer(h, l, d, mask):
        # Post-norm (norm_first=False) TransformerEncoderLayer, relu FF,
        # dropout = identity (eval mode).
        hd = d // nhead
        scale = 1.0 / math.sqrt(hd)
        # One fused QKV matmul; per-head blocks live in separate 128-lane tiles.
        qkv = (jnp.dot(h.astype(bf16), wqkv_ref[l], preferred_element_type=f32)
               + bqkv_ref[l])                                    # (n, 3*nhead*P)
        ao_heads = []
        for hh in range(nhead):
            q = qkv[:, hh * p:(hh + 1) * p]                       # tile-aligned slices
            k = qkv[:, (nhead + hh) * p:(nhead + hh + 1) * p]
            v = qkv[:, (2 * nhead + hh) * p:(2 * nhead + hh + 1) * p]
            s = jax.lax.dot_general(q.astype(bf16), k.astype(bf16),
                                    (((1,), (1,)), ((), ())),
                                    preferred_element_type=f32) * scale
            # softmax over the sequence (= batch rows) axis, in f32
            s = s - jnp.max(s, axis=-1, keepdims=True)
            e = jnp.exp(s)
            # approx reciprocal (EUP slot); ~1e-4 rel err vs exact softmax
            prob = e * pl.reciprocal(jnp.sum(e, axis=-1, keepdims=True),
                                     approx=True)
            ao_heads.append(jnp.dot(prob.astype(bf16), v.astype(bf16),
                                    preferred_element_type=f32))
        # Fused output projection + head reduction: lane-concat heads, contract
        # against the row-stacked (nhead*P, P) Wo slab.
        ao_cat = jnp.concatenate(ao_heads, axis=-1).astype(bf16)
        attn = jnp.dot(ao_cat, wo_ref[l], preferred_element_type=f32) + bo_ref[l]
        h = layernorm(h + attn, g1_ref[l], be1_ref[l], d, mask)
        ff = jnp.dot(h.astype(bf16), w1_ref[l], preferred_element_type=f32) + b1_ref[l]
        ff = jnp.maximum(ff, 0.0)                                 # relu
        ff = jnp.dot(ff.astype(bf16), w2_ref[l], preferred_element_type=f32) + b2_ref[l]
        return layernorm(h + ff, g2_ref[l], be2_ref[l], d, mask)

    lane = jax.lax.broadcasted_iota(jnp.int32, (n, p), 1)

    # One matmul for BOTH time-emb linears (weight copies at the two concat
    # lane offsets live side by side in a (P, 2P) slab).
    emb_out = jnp.dot(temb_ref[...].astype(bf16), emb_w_ref[...],
                      preferred_element_type=f32)                 # (n, 2P)

    # h = cat([x, emb_layer(time_emb)]) folded into lane offsets -> just adds.
    h = x_ref[...] + emb_out[:, :p] + emb_b_ref[0]
    mask1 = lane < d1
    for l in range(n_enc_layers):
        h = encoder_layer(h, l, d1, mask1)

    hu = xu_ref[...] + emb_out[:, p:] + emb_b_ref[1]
    mask2 = lane < d2
    for l in range(n_enc_layers):
        hu = encoder_layer(hu, n_enc_layers + l, d2, mask2)

    # cat([h, h_U], dim=1) @ W0^T + b0 as one (n, 2P) x (2P, P) matmul.
    hcat = jnp.concatenate([h, hu], axis=-1).astype(bf16)
    y = jnp.dot(hcat, w_out0_ref[...], preferred_element_type=f32) + b_out_ref[0]
    for i in range(1, n_out):
        y = jnp.tanh(y)
        y = jnp.dot(y.astype(bf16), w_out_rest_ref[i - 1],
                    preferred_element_type=f32) + b_out_ref[i]
    o_ref[...] = y.astype(o_ref.dtype)


# ----------------------------------------------------------------------------
# Plain-JAX glue: timestep embedding, init, packing, forward wrapper
# ----------------------------------------------------------------------------
def timestep_embedding(timesteps, dim, max_period=10000):
    half = dim // 2
    freqs = jnp.exp(-math.log(max_period) *
                    jnp.arange(half, dtype=jnp.float32) / half)
    args = timesteps[:, None].astype(jnp.float32) * freqs[None]
    emb = jnp.concatenate([jnp.cos(args), jnp.sin(args)], axis=-1)
    if dim % 2:
        emb = jnp.concatenate([emb, jnp.zeros_like(emb[:, :1])], axis=-1)
    return emb


def _lin_init(key, fan_out, fan_in):
    std = math.sqrt(2.0 / (fan_in + fan_out))
    kw, kb = jax.random.split(key)
    w = std * jax.random.normal(kw, (fan_out, fan_in), jnp.float32)
    b = 0.001 * jax.random.normal(kb, (fan_out,), jnp.float32)
    return w, b


def _enc_layer_init(key, d, ff):
    ks = jax.random.split(key, 4)
    lim = math.sqrt(6.0 / (d + 3 * d))                  # xavier_uniform in_proj
    wqkv = jax.random.uniform(ks[0], (3 * d, d), jnp.float32, -lim, lim)
    bqkv = jnp.zeros((3 * d,), jnp.float32)
    wo, bo = _lin_init(ks[1], d, d)
    w1, b1 = _lin_init(ks[2], ff, d)
    w2, b2 = _lin_init(ks[3], d, ff)
    return dict(wqkv=wqkv, bqkv=bqkv, wo=wo, bo=bo, w1=w1, b1=b1, w2=w2, b2=b2,
                g1=jnp.ones((d,), jnp.float32), be1=jnp.zeros((d,), jnp.float32),
                g2=jnp.ones((d,), jnp.float32), be2=jnp.zeros((d,), jnp.float32))


def _pad2d(m, shape):
    """Zero-pad a (rows, cols) matrix into `shape` (top-left corner)."""
    m = jnp.asarray(m, jnp.float32)
    return jnp.zeros(shape, jnp.float32).at[:m.shape[0], :m.shape[1]].set(m)


def _pack_enc_layer(raw, d, nhead):
    """Fused, pre-transposed, lane-dense bf16-ready weight slabs for one layer."""
    hd = d // nhead
    qkv_w_blocks, qkv_b_blocks = [], []
    for which in range(3):                              # q, k, v
        w_full = raw["wqkv"][which * d:(which + 1) * d]  # (d, d) torch (out, in)
        b_full = raw["bqkv"][which * d:(which + 1) * d]
        for h in range(nhead):
            qkv_w_blocks.append(_pad2d(w_full[h * hd:(h + 1) * hd].T, (P, P)))
            qkv_b_blocks.append(_pad2d(b_full[h * hd:(h + 1) * hd][None, :], (1, P)))
    wo_blocks = [_pad2d(raw["wo"][:, h * hd:(h + 1) * hd].T, (P, P))
                 for h in range(nhead)]
    return dict(
        wqkv=jnp.concatenate(qkv_w_blocks, axis=1),      # (P, 3*nhead*P)
        bqkv=jnp.concatenate(qkv_b_blocks, axis=1),      # (1, 3*nhead*P)
        wo=jnp.concatenate(wo_blocks, axis=0),           # (nhead*P, P)
        bo=_pad2d(raw["bo"][None, :], (1, P)),
        w1=_pad2d(raw["w1"].T, (P, P)), b1=_pad2d(raw["b1"][None, :], (1, P)),
        w2=_pad2d(raw["w2"].T, (P, P)), b2=_pad2d(raw["b2"][None, :], (1, P)),
        g1=_pad2d(raw["g1"][None, :], (1, P)), be1=_pad2d(raw["be1"][None, :], (1, P)),
        g2=_pad2d(raw["g2"][None, :], (1, P)), be2=_pad2d(raw["be2"][None, :], (1, P)),
    )


def init_params(key, in_dims, out_dims, emb_size, nhead=2, n_enc_layers=2):
    assert out_dims[0] == in_dims[-1], "In and out dimensions must equal to each other."
    d1 = in_dims[0] + emb_size            # d_model of transformer_encoder
    d2 = 2 * in_dims[0] + emb_size        # d_model of transformer_encoder2
    ff = in_dims[-1]                      # dim_feedforward (both stacks)
    out_dims_temp = [d1 + d2] + list(out_dims[1:])
    n_out = len(out_dims_temp) - 1
    assert max(d1, d2, ff, max(out_dims_temp[1:] or [0])) <= P

    keys = jax.random.split(key, 1 + 2 * n_enc_layers + n_out)
    emb_w_raw, emb_b_raw = _lin_init(keys[0], emb_size, emb_size)
    enc1 = [_enc_layer_init(keys[1 + i], d1, ff) for i in range(n_enc_layers)]
    enc2 = [_enc_layer_init(keys[1 + n_enc_layers + i], d2, ff)
            for i in range(n_enc_layers)]
    out_raw = [_lin_init(keys[1 + 2 * n_enc_layers + i], dout, din)
               for i, (din, dout) in enumerate(zip(out_dims_temp[:-1],
                                                   out_dims_temp[1:]))]

    layers = ([_pack_enc_layer(pr, d1, nhead) for pr in enc1]
              + [_pack_enc_layer(pr, d2, nhead) for pr in enc2])
    packed = {k: jnp.stack([lp[k] for lp in layers]) for k in layers[0]}

    # Time-emb linear: both lane-offset copies in ONE (P, 2P) weight slab.
    wt = emb_w_raw.T                                         # (emb, emb)
    off1, off2 = in_dims[0], 2 * in_dims[0]
    emb_w = jnp.zeros((P, 2 * P), jnp.float32)
    emb_w = emb_w.at[:emb_size, off1:off1 + emb_size].set(wt)
    emb_w = emb_w.at[:emb_size, P + off2:P + off2 + emb_size].set(wt)
    packed["emb_w"] = emb_w
    packed["emb_b"] = jnp.stack([
        jnp.zeros((1, P), jnp.float32).at[0, off1:off1 + emb_size].set(emb_b_raw),
        jnp.zeros((1, P), jnp.float32).at[0, off2:off2 + emb_size].set(emb_b_raw)])

    # Output MLP. Layer-0 weight split into the h rows / h_U rows of a 2P slab.
    w0, _ = out_raw[0]
    w_out0 = jnp.zeros((2 * P, P), jnp.float32)
    w_out0 = w_out0.at[:d1, :w0.shape[0]].set(w0[:, :d1].T)
    w_out0 = w_out0.at[P:P + d2, :w0.shape[0]].set(w0[:, d1:].T)
    packed["w_out0"] = w_out0
    if n_out > 1:
        packed["w_out_rest"] = jnp.stack([_pad2d(w.T, (P, P)) for w, _ in out_raw[1:]])
    else:
        packed["w_out_rest"] = jnp.zeros((1, P, P), jnp.float32)   # unused dummy
    packed["b_out"] = jnp.stack([_pad2d(b[None, :], (1, P)) for _, b in out_raw])

    # bf16 matmul operands (biases / LN params stay f32).
    for k in ("wqkv", "wo", "w1", "w2", "emb_w", "w_out0", "w_out_rest"):
        packed[k] = packed[k].astype(jnp.bfloat16)

    cfg = dict(emb_size=emb_size, d1=d1, d2=d2, nhead=nhead,
               n_enc_layers=n_enc_layers, n_out=n_out,
               d_final=out_dims_temp[-1])
    return packed, cfg


def _full_block_spec(a):
    zeros = (0,) * a.ndim
    return pl.BlockSpec(a.shape, lambda i, _z=zeros: _z)


def dnn_onehot_transformer_forward(packed, x, timesteps, x_U, cfg):
    n = x.shape[0]
    x_U = x_U.reshape(n, -1)
    temb = timestep_embedding(timesteps, cfg["emb_size"])

    def pad_rows(a):
        a = a.astype(jnp.float32)
        return jnp.zeros((n, P), jnp.float32).at[:, :a.shape[1]].set(a)

    args = (
        pad_rows(x), pad_rows(x_U), pad_rows(temb),
        packed["emb_w"], packed["emb_b"],
        packed["wqkv"], packed["bqkv"], packed["wo"], packed["bo"],
        packed["w1"], packed["b1"], packed["w2"], packed["b2"],
        packed["g1"], packed["be1"], packed["g2"], packed["be2"],
        packed["w_out0"], packed["w_out_rest"], packed["b_out"],
    )

    out = pl.pallas_call(
        functools.partial(_fused_forward_kernel,
                          nhead=cfg["nhead"], n_enc_layers=cfg["n_enc_layers"],
                          d1=cfg["d1"], d2=cfg["d2"], n_out=cfg["n_out"]),
        out_shape=jax.ShapeDtypeStruct((n, P), jnp.float32),
        grid=(1,),
        in_specs=[_full_block_spec(a) for a in args],
        out_specs=pl.BlockSpec((n, P), lambda i: (0, 0)),
        compiler_params=pltpu.CompilerParams(
            dimension_semantics=("arbitrary",)),
    )(*args)
    # Lane-dense kernel output; slice back to the true width at the very end.
    return out[:, :cfg["d_final"]]


# ----------------------------------------------------------------------------
if __name__ == "__main__":
    # Small config consistent with the PyTorch constructor:
    #   in_dims=[24, 64], out_dims=[64, 48, 24] (out_dims[0]==in_dims[-1]),
    #   emb_size=8, batch N=8  ->  d1=32, d2=56, ff=64, out MLP 88->48->24.
    in_dims = [24, 64]
    out_dims = [64, 48, 24]
    emb_size = 8
    N = 8

    key = jax.random.PRNGKey(0)
    k_par, k_x, k_xu, k_t = jax.random.split(key, 4)

    packed, cfg = init_params(k_par, in_dims, out_dims, emb_size)

    x = jax.random.normal(k_x, (N, in_dims[0]), jnp.float32)
    x_U = jax.random.normal(k_xu, (N, 2, in_dims[0]), jnp.float32)
    timesteps = jax.random.randint(k_t, (N,), 0, 1000).astype(jnp.float32)

    out = dnn_onehot_transformer_forward(packed, x, timesteps, x_U, cfg)
    out = jax.block_until_ready(out)

    assert out.shape == (N, out_dims[-1]), out.shape
    assert bool(jnp.all(jnp.isfinite(out)))
    print("KERNEL_OK")
</pallas_src>

<mosaic_0001>
module attributes {stable_mosaic.version = 11 : i64} {
  func.func @_fused_forward_kernel(%arg0: i32, %arg1: memref<8x128xf32, #tpu.memory_space<vmem>>, %arg2: memref<8x128xf32, #tpu.memory_space<vmem>>, %arg3: memref<8x128xf32, #tpu.memory_space<vmem>>, %arg4: memref<128x256xbf16, #tpu.memory_space<vmem>>, %arg5: memref<2x1x128xf32, #tpu.memory_space<vmem>>, %arg6: memref<4x128x768xbf16, #tpu.memory_space<vmem>>, %arg7: memref<4x1x768xf32, #tpu.memory_space<vmem>>, %arg8: memref<4x256x128xbf16, #tpu.memory_space<vmem>>, %arg9: memref<4x1x128xf32, #tpu.memory_space<vmem>>, %arg10: memref<4x128x128xbf16, #tpu.memory_space<vmem>>, %arg11: memref<4x1x128xf32, #tpu.memory_space<vmem>>, %arg12: memref<4x128x128xbf16, #tpu.memory_space<vmem>>, %arg13: memref<4x1x128xf32, #tpu.memory_space<vmem>>, %arg14: memref<4x1x128xf32, #tpu.memory_space<vmem>>, %arg15: memref<4x1x128xf32, #tpu.memory_space<vmem>>, %arg16: memref<4x1x128xf32, #tpu.memory_space<vmem>>, %arg17: memref<4x1x128xf32, #tpu.memory_space<vmem>>, %arg18: memref<256x128xbf16, #tpu.memory_space<vmem>>, %arg19: memref<1x128x128xbf16, #tpu.memory_space<vmem>>, %arg20: memref<2x1x128xf32, #tpu.memory_space<vmem>>, %arg21: memref<8x128xf32, #tpu.memory_space<vmem>>) attributes {dimension_semantics = [#tpu.dimension_semantics<arbitrary>], iteration_bounds = array<i64: 1>, scalar_prefetch = 0 : i64, scratch_operands = 0 : i64, tpu.core_type = #tpu.core_type<tc>, window_params = [{pipeline_mode = #tpu.pipeline_mode<synchronous>, transform_indices = @transform_0, window_bounds = array<i64: 8, 128>}, {pipeline_mode = #tpu.pipeline_mode<synchronous>, transform_indices = @transform_1, window_bounds = array<i64: 8, 128>}, {pipeline_mode = #tpu.pipeline_mode<synchronous>, transform_indices = @transform_2, window_bounds = array<i64: 8, 128>}, {pipeline_mode = #tpu.pipeline_mode<synchronous>, transform_indices = @transform_3, window_bounds = array<i64: 128, 256>}, {pipeline_mode = #tpu.pipeline_mode<synchronous>, transform_indices = @transform_4, window_bounds = array<i64: 2, 1, 128>}, {pipeline_mode = #tpu.pipeline_mode<synchronous>, transform_indices = @transform_5, window_bounds = array<i64: 4, 128, 768>}, {pipeline_mode = #tpu.pipeline_mode<synchronous>, transform_indices = @transform_6, window_bounds = array<i64: 4, 1, 768>}, {pipeline_mode = #tpu.pipeline_mode<synchronous>, transform_indices = @transform_7, window_bounds = array<i64: 4, 256, 128>}, {pipeline_mode = #tpu.pipeline_mode<synchronous>, transform_indices = @transform_8, window_bounds = array<i64: 4, 1, 128>}, {pipeline_mode = #tpu.pipeline_mode<synchronous>, transform_indices = @transform_9, window_bounds = array<i64: 4, 128, 128>}, {pipeline_mode = #tpu.pipeline_mode<synchronous>, transform_indices = @transform_10, window_bounds = array<i64: 4, 1, 128>}, {pipeline_mode = #tpu.pipeline_mode<synchronous>, transform_indices = @transform_11, window_bounds = array<i64: 4, 128, 128>}, {pipeline_mode = #tpu.pipeline_mode<synchronous>, transform_indices = @transform_12, window_bounds = array<i64: 4, 1, 128>}, {pipeline_mode = #tpu.pipeline_mode<synchronous>, transform_indices = @transform_13, window_bounds = array<i64: 4, 1, 128>}, {pipeline_mode = #tpu.pipeline_mode<synchronous>, transform_indices = @transform_14, window_bounds = array<i64: 4, 1, 128>}, {pipeline_mode = #tpu.pipeline_mode<synchronous>, transform_indices = @transform_15, window_bounds = array<i64: 4, 1, 128>}, {pipeline_mode = #tpu.pipeline_mode<synchronous>, transform_indices = @transform_16, window_bounds = array<i64: 4, 1, 128>}, {pipeline_mode = #tpu.pipeline_mode<synchronous>, transform_indices = @transform_17, window_bounds = array<i64: 256, 128>}, {pipeline_mode = #tpu.pipeline_mode<synchronous>, transform_indices = @transform_18, window_bounds = array<i64: 1, 128, 128>}, {pipeline_mode = #tpu.pipeline_mode<synchronous>, transform_indices = @transform_19, window_bounds = array<i64: 2, 1, 128>}, {pipeline_mode = #tpu.pipeline_mode<synchronous>, transform_indices = @transform_20, window_bounds = array<i64: 8, 128>}]} {
    %0 = tpu.iota {dimensions = array<i32: 1>} : vector<8x128xi32>
    %c0 = arith.constant 0 : index
    %c0_0 = arith.constant 0 : index
    %1 = vector.load %arg3[%c0, %c0_0] : memref<8x128xf32, #tpu.memory_space<vmem>>, vector<8x128xf32>
    %2 = arith.truncf %1 : vector<8x128xf32> to vector<8x128xbf16>
    %c0_1 = arith.constant 0 : index
    %c0_2 = arith.constant 0 : index
    %3 = vector.load %arg4[%c0_1, %c0_2] : memref<128x256xbf16, #tpu.memory_space<vmem>>, vector<128x256xbf16>
    %cst = arith.constant dense<0.000000e+00> : vector<8x256xf32>
    %4 = tpu.matmul %2, %3, %cst {dimension_numbers = #tpu.dot_dimension_numbers<[1], [0], [0], [1], [0, 0, 1, 1], [], []>} : vector<8x128xbf16>, vector<128x256xbf16>, vector<8x256xf32> -> vector<8x256xf32>
    %c0_3 = arith.constant 0 : index
    %c0_4 = arith.constant 0 : index
    %5 = vector.load %arg1[%c0_3, %c0_4] : memref<8x128xf32, #tpu.memory_space<vmem>>, vector<8x128xf32>
    %6 = vector.extract_strided_slice %4 {offsets = [0, 0], sizes = [8, 128], strides = [1, 1]} : vector<8x256xf32> to vector<8x128xf32>
    %7 = arith.addf %5, %6 : vector<8x128xf32>
    %c0_5 = arith.constant 0 : index
    %c0_6 = arith.constant 0 : index
    %c0_7 = arith.constant 0 : index
    %8 = vector.load %arg5[%c0_5, %c0_6, %c0_7] : memref<2x1x128xf32, #tpu.memory_space<vmem>>, vector<1x1x128xf32>
    %9 = vector.shape_cast %8 : vector<1x1x128xf32> to vector<1x128xf32>
    %10 = vector.broadcast %9 : vector<1x128xf32> to vector<8x128xf32>
    %11 = arith.addf %7, %10 : vector<8x128xf32>
    %c32_i32 = arith.constant 32 : i32
    %12 = vector.broadcast %c32_i32 : i32 to vector<8x128xi32>
    %13 = arith.cmpi slt, %0, %12 : vector<8x128xi32>
    %14 = arith.truncf %11 : vector<8x128xf32> to vector<8x128xbf16>
    %c0_8 = arith.constant 0 : index
    %c0_9 = arith.constant 0 : index
    %c0_10 = arith.constant 0 : index
    %15 = vector.load %arg6[%c0_8, %c0_9, %c0_10] : memref<4x128x768xbf16, #tpu.memory_space<vmem>>, vector<1x128x768xbf16>
    %16 = vector.shape_cast %15 : vector<1x128x768xbf16> to vector<128x768xbf16>
    %cst_11 = arith.constant dense<0.000000e+00> : vector<8x768xf32>
    %17 = tpu.matmul %14, %16, %cst_11 {dimension_numbers = #tpu.dot_dimension_numbers<[1], [0], [0], [1], [0, 0, 1, 1], [], []>} : vector<8x128xbf16>, vector<128x768xbf16>, vector<8x768xf32> -> vector<8x768xf32>
    %c0_12 = arith.constant 0 : index
    %c0_13 = arith.constant 0 : index
    %c0_14 = arith.constant 0 : index
    %18 = vector.load %arg7[%c0_12, %c0_13, %c0_14] : memref<4x1x768xf32, #tpu.memory_space<vmem>>, vector<1x1x768xf32>
    %19 = vector.shape_cast %18 : vector<1x1x768xf32> to vector<1x768xf32>
    %20 = vector.broadcast %19 : vector<1x768xf32> to vector<8x768xf32>
    %21 = arith.addf %17, %20 : vector<8x768xf32>
    %22 = vector.extract_strided_slice %21 {offsets = [0, 0], sizes = [8, 128], strides = [1, 1]} : vector<8x768xf32> to vector<8x128xf32>
    %23 = vector.extract_strided_slice %21 {offsets = [0, 256], sizes = [8, 128], strides = [1, 1]} : vector<8x768xf32> to vector<8x128xf32>
    %24 = vector.extract_strided_slice %21 {offsets = [0, 512], sizes = [8, 128], strides = [1, 1]} : vector<8x768xf32> to vector<8x128xf32>
    %25 = arith.truncf %22 : vector<8x128xf32> to vector<8x128xbf16>
    %26 = arith.truncf %23 : vector<8x128xf32> to vector<8x128xbf16>
    %cst_15 = arith.constant dense<0.000000e+00> : vector<8x8xf32>
    %27 = tpu.matmul %25, %26, %cst_15 {dimension_numbers = #tpu.dot_dimension_numbers<[1], [1], [0], [0], [0, 0, 1, 0], [], []>} : vector<8x128xbf16>, vector<8x128xbf16>, vector<8x8xf32> -> vector<8x8xf32>
    %cst_16 = arith.constant 2.500000e-01 : f32
    %28 = vector.broadcast %cst_16 : f32 to vector<8x8xf32>
    %29 = arith.mulf %27, %28 : vector<8x8xf32>
    %cst_17 = arith.constant dense<0xFF800000> : vector<8xf32>
    %30 = vector.multi_reduction <maximumf>, %29, %cst_17 [1] : vector<8x8xf32> to vector<8xf32>
    %31 = vector.shape_cast %30 : vector<8xf32> to vector<8x1xf32>
    %32 = vector.broadcast %31 : vector<8x1xf32> to vector<8x8xf32>
    %33 = arith.subf %29, %32 : vector<8x8xf32>
    %34 = math.exp %33 : vector<8x8xf32>
    %cst_18 = arith.constant dense<0.000000e+00> : vector<8xf32>
    %35 = vector.multi_reduction <add>, %34, %cst_18 [1] : vector<8x8xf32> to vector<8xf32>
    %36 = vector.shape_cast %35 : vector<8xf32> to vector<8x1xf32>
    %37 = tpu.reciprocal %36 {approx = true} : vector<8x1xf32> -> vector<8x1xf32>
    %38 = vector.broadcast %37 : vector<8x1xf32> to vector<8x8xf32>
    %39 = arith.mulf %34, %38 : vector<8x8xf32>
    %40 = arith.truncf %39 : vector<8x8xf32> to vector<8x8xbf16>
    %41 = arith.truncf %24 : vector<8x128xf32> to vector<8x128xbf16>
    %cst_19 = arith.constant dense<0.000000e+00> : vector<8x128xf32>
    %42 = tpu.matmul %40, %41, %cst_19 {dimension_numbers = #tpu.dot_dimension_numbers<[1], [0], [0], [1], [0, 0, 1, 1], [], []>} : vector<8x8xbf16>, vector<8x128xbf16>, vector<8x128xf32> -> vector<8x128xf32>
    %43 = vector.extract_strided_slice %21 {offsets = [0, 128], sizes = [8, 128], strides = [1, 1]} : vector<8x768xf32> to vector<8x128xf32>
    %44 = vector.extract_strided_slice %21 {offsets = [0, 384], sizes = [8, 128], strides = [1, 1]} : vector<8x768xf32> to vector<8x128xf32>
    %45 = vector.extract_strided_slice %21 {offsets = [0, 640], sizes = [8, 128], strides = [1, 1]} : vector<8x768xf32> to vector<8x128xf32>
    %46 = arith.truncf %43 : vector<8x128xf32> to vector<8x128xbf16>
    %47 = arith.truncf %44 : vector<8x128xf32> to vector<8x128xbf16>
    %cst_20 = arith.constant dense<0.000000e+00> : vector<8x8xf32>
    %48 = tpu.matmul %46, %47, %cst_20 {dimension_numbers = #tpu.dot_dimension_numbers<[1], [1], [0], [0], [0, 0, 1, 0], [], []>} : vector<8x128xbf16>, vector<8x128xbf16>, vector<8x8xf32> -> vector<8x8xf32>
    %cst_21 = arith.constant 2.500000e-01 : f32
    %49 = vector.broadcast %cst_21 : f32 to vector<8x8xf32>
    %50 = arith.mulf %48, %49 : vector<8x8xf32>
    %cst_22 = arith.constant dense<0xFF800000> : vector<8xf32>
    %51 = vector.multi_reduction <maximumf>, %50, %cst_22 [1] : vector<8x8xf32> to vector<8xf32>
    %52 = vector.shape_cast %51 : vector<8xf32> to vector<8x1xf32>
    %53 = vector.broadcast %52 : vector<8x1xf32> to vector<8x8xf32>
    %54 = arith.subf %50, %53 : vector<8x8xf32>
    %55 = math.exp %54 : vector<8x8xf32>
    %cst_23 = arith.constant dense<0.000000e+00> : vector<8xf32>
    %56 = vector.multi_reduction <add>, %55, %cst_23 [1] : vector<8x8xf32> to vector<8xf32>
    %57 = vector.shape_cast %56 : vector<8xf32> to vector<8x1xf32>
    %58 = tpu.reciprocal %57 {approx = true} : vector<8x1xf32> -> vector<8x1xf32>
    %59 = vector.broadcast %58 : vector<8x1xf32> to vector<8x8xf32>
    %60 = arith.mulf %55, %59 : vector<8x8xf32>
    %61 = arith.truncf %60 : vector<8x8xf32> to vector<8x8xbf16>
    %62 = arith.truncf %45 : vector<8x128xf32> to vector<8x128xbf16>
    %cst_24 = arith.constant dense<0.000000e+00> : vector<8x128xf32>
    %63 = tpu.matmul %61, %62, %cst_24 {dimension_numbers = #tpu.dot_dimension_numbers<[1], [0], [0], [1], [0, 0, 1, 1], [], []>} : vector<8x8xbf16>, vector<8x128xbf16>, vector<8x128xf32> -> vector<8x128xf32>
    %64 = tpu.concatenate %42, %63 in 1 : vector<8x128xf32>, vector<8x128xf32> -> vector<8x256xf32>
    %65 = arith.truncf %64 : vector<8x256xf32> to vector<8x256xbf16>
    %c0_25 = arith.constant 0 : index
    %c0_26 = arith.constant 0 : index
    %c0_27 = arith.constant 0 : index
    %66 = vector.load %arg8[%c0_25, %c0_26, %c0_27] : memref<4x256x128xbf16, #tpu.memory_space<vmem>>, vector<1x256x128xbf16>
    %67 = vector.shape_cast %66 : vector<1x256x128xbf16> to vector<256x128xbf16>
    %cst_28 = arith.constant dense<0.000000e+00> : vector<8x128xf32>
    %68 = tpu.matmul %65, %67, %cst_28 {dimension_numbers = #tpu.dot_dimension_numbers<[1], [0], [0], [1], [0, 0, 1, 1], [], []>} : vector<8x256xbf16>, vector<256x128xbf16>, vector<8x128xf32> -> vector<8x128xf32>
    %c0_29 = arith.constant 0 : index
    %c0_30 = arith.constant 0 : index
    %c0_31 = arith.constant 0 : index
    %69 = vector.load %arg9[%c0_29, %c0_30, %c0_31] : memref<4x1x128xf32, #tpu.memory_space<vmem>>, vector<1x1x128xf32>
    %70 = vector.shape_cast %69 : vector<1x1x128xf32> to vector<1x128xf32>
    %71 = vector.broadcast %70 : vector<1x128xf32> to vector<8x128xf32>
    %72 = arith.addf %68, %71 : vector<8x128xf32>
    %73 = arith.addf %11, %72 : vector<8x128xf32>
    %c0_32 = arith.constant 0 : index
    %c0_33 = arith.constant 0 : index
    %c0_34 = arith.constant 0 : index
    %74 = vector.load %arg14[%c0_32, %c0_33, %c0_34] : memref<4x1x128xf32, #tpu.memory_space<vmem>>, vector<1x1x128xf32>
    %75 = vector.shape_cast %74 : vector<1x1x128xf32> to vector<1x128xf32>
    %c0_35 = arith.constant 0 : index
    %c0_36 = arith.constant 0 : index
    %c0_37 = arith.constant 0 : index
    %76 = vector.load %arg15[%c0_35, %c0_36, %c0_37] : memref<4x1x128xf32, #tpu.memory_space<vmem>>, vector<1x1x128xf32>
    %77 = vector.shape_cast %76 : vector<1x1x128xf32> to vector<1x128xf32>
    %cst_38 = arith.constant dense<0.000000e+00> : vector<8xf32>
    %78 = vector.multi_reduction <add>, %73, %cst_38 [1] : vector<8x128xf32> to vector<8xf32>
    %79 = vector.shape_cast %78 : vector<8xf32> to vector<8x1xf32>
    %cst_39 = arith.constant 3.125000e-02 : f32
    %80 = vector.broadcast %cst_39 : f32 to vector<8x1xf32>
    %81 = arith.mulf %79, %80 : vector<8x1xf32>
    %82 = vector.broadcast %81 : vector<8x1xf32> to vector<8x128xf32>
    %83 = arith.subf %73, %82 : vector<8x128xf32>
    %cst_40 = arith.constant 0.000000e+00 : f32
    %84 = vector.broadcast %cst_40 : f32 to vector<8x128xf32>
    %85 = arith.select %13, %83, %84 : vector<8x128xi1>, vector<8x128xf32>
    %86 = arith.mulf %85, %85 : vector<8x128xf32>
    %cst_41 = arith.constant dense<0.000000e+00> : vector<8xf32>
    %87 = vector.multi_reduction <add>, %86, %cst_41 [1] : vector<8x128xf32> to vector<8xf32>
    %88 = vector.shape_cast %87 : vector<8xf32> to vector<8x1xf32>
    %cst_42 = arith.constant 3.125000e-02 : f32
    %89 = vector.broadcast %cst_42 : f32 to vector<8x1xf32>
    %90 = arith.mulf %88, %89 : vector<8x1xf32>
    %cst_43 = arith.constant 9.99999974E-6 : f32
    %91 = vector.broadcast %cst_43 : f32 to vector<8x1xf32>
    %92 = arith.addf %90, %91 : vector<8x1xf32>
    %93 = math.rsqrt %92 : vector<8x1xf32>
    %94 = vector.broadcast %93 : vector<8x1xf32> to vector<8x128xf32>
    %95 = arith.mulf %85, %94 : vector<8x128xf32>
    %96 = vector.broadcast %75 : vector<1x128xf32> to vector<8x128xf32>
    %97 = arith.mulf %95, %96 : vector<8x128xf32>
    %98 = vector.broadcast %77 : vector<1x128xf32> to vector<8x128xf32>
    %99 = arith.addf %97, %98 : vector<8x128xf32>
    %100 = arith.truncf %99 : vector<8x128xf32> to vector<8x128xbf16>
    %c0_44 = arith.constant 0 : index
    %c0_45 = arith.constant 0 : index
    %c0_46 = arith.constant 0 : index
    %101 = vector.load %arg10[%c0_44, %c0_45, %c0_46] : memref<4x128x128xbf16, #tpu.memory_space<vmem>>, vector<1x128x128xbf16>
    %102 = vector.shape_cast %101 : vector<1x128x128xbf16> to vector<128x128xbf16>
    %cst_47 = arith.constant dense<0.000000e+00> : vector<8x128xf32>
    %103 = tpu.matmul %100, %102, %cst_47 {dimension_numbers = #tpu.dot_dimension_numbers<[1], [0], [0], [1], [0, 0, 1, 1], [], []>} : vector<8x128xbf16>, vector<128x128xbf16>, vector<8x128xf32> -> vector<8x128xf32>
    %c0_48 = arith.constant 0 : index
    %c0_49 = arith.constant 0 : index
    %c0_50 = arith.constant 0 : index
    %104 = vector.load %arg11[%c0_48, %c0_49, %c0_50] : memref<4x1x128xf32, #tpu.memory_space<vmem>>, vector<1x1x128xf32>
    %105 = vector.shape_cast %104 : vector<1x1x128xf32> to vector<1x128xf32>
    %106 = vector.broadcast %105 : vector<1x128xf32> to vector<8x128xf32>
    %107 = arith.addf %103, %106 : vector<8x128xf32>
    %cst_51 = arith.constant 0.000000e+00 : f32
    %108 = vector.broadcast %cst_51 : f32 to vector<8x128xf32>
    %109 = arith.maximumf %107, %108 : vector<8x128xf32>
    %110 = arith.truncf %109 : vector<8x128xf32> to vector<8x128xbf16>
    %c0_52 = arith.constant 0 : index
    %c0_53 = arith.constant 0 : index
    %c0_54 = arith.constant 0 : index
    %111 = vector.load %arg12[%c0_52, %c0_53, %c0_54] : memref<4x128x128xbf16, #tpu.memory_space<vmem>>, vector<1x128x128xbf16>
    %112 = vector.shape_cast %111 : vector<1x128x128xbf16> to vector<128x128xbf16>
    %cst_55 = arith.constant dense<0.000000e+00> : vector<8x128xf32>
    %113 = tpu.matmul %110, %112, %cst_55 {dimension_numbers = #tpu.dot_dimension_numbers<[1], [0], [0], [1], [0, 0, 1, 1], [], []>} : vector<8x128xbf16>, vector<128x128xbf16>, vector<8x128xf32> -> vector<8x128xf32>
    %c0_56 = arith.constant 0 : index
    %c0_57 = arith.constant 0 : index
    %c0_58 = arith.constant 0 : index
    %114 = vector.load %arg13[%c0_56, %c0_57, %c0_58] : memref<4x1x128xf32, #tpu.memory_space<vmem>>, vector<1x1x128xf32>
    %115 = vector.shape_cast %114 : vector<1x1x128xf32> to vector<1x128xf32>
    %116 = vector.broadcast %115 : vector<1x128xf32> to vector<8x128xf32>
    %117 = arith.addf %113, %116 : vector<8x128xf32>
    %118 = arith.addf %99, %117 : vector<8x128xf32>
    %c0_59 = arith.constant 0 : index
    %c0_60 = arith.constant 0 : index
    %c0_61 = arith.constant 0 : index
    %119 = vector.load %arg16[%c0_59, %c0_60, %c0_61] : memref<4x1x128xf32, #tpu.memory_space<vmem>>, vector<1x1x128xf32>
    %120 = vector.shape_cast %119 : vector<1x1x128xf32> to vector<1x128xf32>
    %c0_62 = arith.constant 0 : index
    %c0_63 = arith.constant 0 : index
    %c0_64 = arith.constant 0 : index
    %121 = vector.load %arg17[%c0_62, %c0_63, %c0_64] : memref<4x1x128xf32, #tpu.memory_space<vmem>>, vector<1x1x128xf32>
    %122 = vector.shape_cast %121 : vector<1x1x128xf32> to vector<1x128xf32>
    %cst_65 = arith.constant dense<0.000000e+00> : vector<8xf32>
    %123 = vector.multi_reduction <add>, %118, %cst_65 [1] : vector<8x128xf32> to vector<8xf32>
    %124 = vector.shape_cast %123 : vector<8xf32> to vector<8x1xf32>
    %cst_66 = arith.constant 3.125000e-02 : f32
    %125 = vector.broadcast %cst_66 : f32 to vector<8x1xf32>
    %126 = arith.mulf %124, %125 : vector<8x1xf32>
    %127 = vector.broadcast %126 : vector<8x1xf32> to vector<8x128xf32>
    %128 = arith.subf %118, %127 : vector<8x128xf32>
    %cst_67 = arith.constant 0.000000e+00 : f32
    %129 = vector.broadcast %cst_67 : f32 to vector<8x128xf32>
    %130 = arith.select %13, %128, %129 : vector<8x128xi1>, vector<8x128xf32>
    %131 = arith.mulf %130, %130 : vector<8x128xf32>
    %cst_68 = arith.constant dense<0.000000e+00> : vector<8xf32>
    %132 = vector.multi_reduction <add>, %131, %cst_68 [1] : vector<8x128xf32> to vector<8xf32>
    %133 = vector.shape_cast %132 : vector<8xf32> to vector<8x1xf32>
    %cst_69 = arith.constant 3.125000e-02 : f32
    %134 = vector.broadcast %cst_69 : f32 to vector<8x1xf32>
    %135 = arith.mulf %133, %134 : vector<8x1xf32>
    %cst_70 = arith.constant 9.99999974E-6 : f32
    %136 = vector.broadcast %cst_70 : f32 to vector<8x1xf32>
    %137 = arith.addf %135, %136 : vector<8x1xf32>
    %138 = math.rsqrt %137 : vector<8x1xf32>
    %139 = vector.broadcast %138 : vector<8x1xf32> to vector<8x128xf32>
    %140 = arith.mulf %130, %139 : vector<8x128xf32>
    %141 = vector.broadcast %120 : vector<1x128xf32> to vector<8x128xf32>
    %142 = arith.mulf %140, %141 : vector<8x128xf32>
    %143 = vector.broadcast %122 : vector<1x128xf32> to vector<8x128xf32>
    %144 = arith.addf %142, %143 : vector<8x128xf32>
    %145 = arith.truncf %144 : vector<8x128xf32> to vector<8x128xbf16>
    %c1 = arith.constant 1 : index
    %c0_71 = arith.constant 0 : index
    %c0_72 = arith.constant 0 : index
    %146 = vector.load %arg6[%c1, %c0_71, %c0_72] : memref<4x128x768xbf16, #tpu.memory_space<vmem>>, vector<1x128x768xbf16>
    %147 = vector.shape_cast %146 : vector<1x128x768xbf16> to vector<128x768xbf16>
    %cst_73 = arith.constant dense<0.000000e+00> : vector<8x768xf32>
    %148 = tpu.matmul %145, %147, %cst_73 {dimension_numbers = #tpu.dot_dimension_numbers<[1], [0], [0], [1], [0, 0, 1, 1], [], []>} : vector<8x128xbf16>, vector<128x768xbf16>, vector<8x768xf32> -> vector<8x768xf32>
    %c1_74 = arith.constant 1 : index
    %c0_75 = arith.constant 0 : index
    %c0_76 = arith.constant 0 : index
    %149 = vector.load %arg7[%c1_74, %c0_75, %c0_76] : memref<4x1x768xf32, #tpu.memory_space<vmem>>, vector<1x1x768xf32>
    %150 = vector.shape_cast %149 : vector<1x1x768xf32> to vector<1x768xf32>
    %151 = vector.broadcast %150 : vector<1x768xf32> to vector<8x768xf32>
    %152 = arith.addf %148, %151 : vector<8x768xf32>
    %153 = vector.extract_strided_slice %152 {offsets = [0, 0], sizes = [8, 128], strides = [1, 1]} : vector<8x768xf32> to vector<8x128xf32>
    %154 = vector.extract_strided_slice %152 {offsets = [0, 256], sizes = [8, 128], strides = [1, 1]} : vector<8x768xf32> to vector<8x128xf32>
    %155 = vector.extract_strided_slice %152 {offsets = [0, 512], sizes = [8, 128], strides = [1, 1]} : vector<8x768xf32> to vector<8x128xf32>
    %156 = arith.truncf %153 : vector<8x128xf32> to vector<8x128xbf16>
    %157 = arith.truncf %154 : vector<8x128xf32> to vector<8x128xbf16>
    %cst_77 = arith.constant dense<0.000000e+00> : vector<8x8xf32>
    %158 = tpu.matmul %156, %157, %cst_77 {dimension_numbers = #tpu.dot_dimension_numbers<[1], [1], [0], [0], [0, 0, 1, 0], [], []>} : vector<8x128xbf16>, vector<8x128xbf16>, vector<8x8xf32> -> vector<8x8xf32>
    %cst_78 = arith.constant 2.500000e-01 : f32
    %159 = vector.broadcast %cst_78 : f32 to vector<8x8xf32>
    %160 = arith.mulf %158, %159 : vector<8x8xf32>
    %cst_79 = arith.constant dense<0xFF800000> : vector<8xf32>
    %161 = vector.multi_reduction <maximumf>, %160, %cst_79 [1] : vector<8x8xf32> to vector<8xf32>
    %162 = vector.shape_cast %161 : vector<8xf32> to vector<8x1xf32>
    %163 = vector.broadcast %162 : vector<8x1xf32> to vector<8x8xf32>
    %164 = arith.subf %160, %163 : vector<8x8xf32>
    %165 = math.exp %164 : vector<8x8xf32>
    %cst_80 = arith.constant dense<0.000000e+00> : vector<8xf32>
    %166 = vector.multi_reduction <add>, %165, %cst_80 [1] : vector<8x8xf32> to vector<8xf32>
    %167 = vector.shape_cast %166 : vector<8xf32> to vector<8x1xf32>
    %168 = tpu.reciprocal %167 {approx = true} : vector<8x1xf32> -> vector<8x1xf32>
    %169 = vector.broadcast %168 : vector<8x1xf32> to vector<8x8xf32>
    %170 = arith.mulf %165, %169 : vector<8x8xf32>
    %171 = arith.truncf %170 : vector<8x8xf32> to vector<8x8xbf16>
    %172 = arith.truncf %155 : vector<8x128xf32> to vector<8x128xbf16>
    %cst_81 = arith.constant dense<0.000000e+00> : vector<8x128xf32>
    %173 = tpu.matmul %171, %172, %cst_81 {dimension_numbers = #tpu.dot_dimension_numbers<[1], [0], [0], [1], [0, 0, 1, 1], [], []>} : vector<8x8xbf16>, vector<8x128xbf16>, vector<8x128xf32> -> vector<8x128xf32>
    %174 = vector.extract_strided_slice %152 {offsets = [0, 128], sizes = [8, 128], strides = [1, 1]} : vector<8x768xf32> to vector<8x128xf32>
    %175 = vector.extract_strided_slice %152 {offsets = [0, 384], sizes = [8, 128], strides = [1, 1]} : vector<8x768xf32> to vector<8x128xf32>
    %176 = vector.extract_strided_slice %152 {offsets = [0, 640], sizes = [8, 128], strides = [1, 1]} : vector<8x768xf32> to vector<8x128xf32>
    %177 = arith.truncf %174 : vector<8x128xf32> to vector<8x128xbf16>
    %178 = arith.truncf %175 : vector<8x128xf32> to vector<8x128xbf16>
    %cst_82 = arith.constant dense<0.000000e+00> : vector<8x8xf32>
    %179 = tpu.matmul %177, %178, %cst_82 {dimension_numbers = #tpu.dot_dimension_numbers<[1], [1], [0], [0], [0, 0, 1, 0], [], []>} : vector<8x128xbf16>, vector<8x128xbf16>, vector<8x8xf32> -> vector<8x8xf32>
    %cst_83 = arith.constant 2.500000e-01 : f32
    %180 = vector.broadcast %cst_83 : f32 to vector<8x8xf32>
    %181 = arith.mulf %179, %180 : vector<8x8xf32>
    %cst_84 = arith.constant dense<0xFF800000> : vector<8xf32>
    %182 = vector.multi_reduction <maximumf>, %181, %cst_84 [1] : vector<8x8xf32> to vector<8xf32>
    %183 = vector.shape_cast %182 : vector<8xf32> to vector<8x1xf32>
    %184 = vector.broadcast %183 : vector<8x1xf32> to vector<8x8xf32>
    %185 = arith.subf %181, %184 : vector<8x8xf32>
    %186 = math.exp %185 : vector<8x8xf32>
    %cst_85 = arith.constant dense<0.000000e+00> : vector<8xf32>
    %187 = vector.multi_reduction <add>, %186, %cst_85 [1] : vector<8x8xf32> to vector<8xf32>
    %188 = vector.shape_cast %187 : vector<8xf32> to vector<8x1xf32>
    %189 = tpu.reciprocal %188 {approx = true} : vector<8x1xf32> -> vector<8x1xf32>
    %190 = vector.broadcast %189 : vector<8x1xf32> to vector<8x8xf32>
    %191 = arith.mulf %186, %190 : vector<8x8xf32>
    %192 = arith.truncf %191 : vector<8x8xf32> to vector<8x8xbf16>
    %193 = arith.truncf %176 : vector<8x128xf32> to vector<8x128xbf16>
    %cst_86 = arith.constant dense<0.000000e+00> : vector<8x128xf32>
    %194 = tpu.matmul %192, %193, %cst_86 {dimension_numbers = #tpu.dot_dimension_numbers<[1], [0], [0], [1], [0, 0, 1, 1], [], []>} : vector<8x8xbf16>, vector<8x128xbf16>, vector<8x128xf32> -> vector<8x128xf32>
    %195 = tpu.concatenate %173, %194 in 1 : vector<8x128xf32>, vector<8x128xf32> -> vector<8x256xf32>
    %196 = arith.truncf %195 : vector<8x256xf32> to vector<8x256xbf16>
    %c1_87 = arith.constant 1 : index
    %c0_88 = arith.constant 0 : index
    %c0_89 = arith.constant 0 : index
    %197 = vector.load %arg8[%c1_87, %c0_88, %c0_89] : memref<4x256x128xbf16, #tpu.memory_space<vmem>>, vector<1x256x128xbf16>
    %198 = vector.shape_cast %197 : vector<1x256x128xbf16> to vector<256x128xbf16>
    %cst_90 = arith.constant dense<0.000000e+00> : vector<8x128xf32>
    %199 = tpu.matmul %196, %198, %cst_90 {dimension_numbers = #tpu.dot_dimension_numbers<[1], [0], [0], [1], [0, 0, 1, 1], [], []>} : vector<8x256xbf16>, vector<256x128xbf16>, vector<8x128xf32> -> vector<8x128xf32>
    %c1_91 = arith.constant 1 : index
    %c0_92 = arith.constant 0 : index
    %c0_93 = arith.constant 0 : index
    %200 = vector.load %arg9[%c1_91, %c0_92, %c0_93] : memref<4x1x128xf32, #tpu.memory_space<vmem>>, vector<1x1x128xf32>
    %201 = vector.shape_cast %200 : vector<1x1x128xf32> to vector<1x128xf32>
    %202 = vector.broadcast %201 : vector<1x128xf32> to vector<8x128xf32>
    %203 = arith.addf %199, %202 : vector<8x128xf32>
    %204 = arith.addf %144, %203 : vector<8x128xf32>
    %c1_94 = arith.constant 1 : index
    %c0_95 = arith.constant 0 : index
    %c0_96 = arith.constant 0 : index
    %205 = vector.load %arg14[%c1_94, %c0_95, %c0_96] : memref<4x1x128xf32, #tpu.memory_space<vmem>>, vector<1x1x128xf32>
    %206 = vector.shape_cast %205 : vector<1x1x128xf32> to vector<1x128xf32>
    %c1_97 = arith.constant 1 : index
    %c0_98 = arith.constant 0 : index
    %c0_99 = arith.constant 0 : index
    %207 = vector.load %arg15[%c1_97, %c0_98, %c0_99] : memref<4x1x128xf32, #tpu.memory_space<vmem>>, vector<1x1x128xf32>
    %208 = vector.shape_cast %207 : vector<1x1x128xf32> to vector<1x128xf32>
    %cst_100 = arith.constant dense<0.000000e+00> : vector<8xf32>
    %209 = vector.multi_reduction <add>, %204, %cst_100 [1] : vector<8x128xf32> to vector<8xf32>
    %210 = vector.shape_cast %209 : vector<8xf32> to vector<8x1xf32>
    %cst_101 = arith.constant 3.125000e-02 : f32
    %211 = vector.broadcast %cst_101 : f32 to vector<8x1xf32>
    %212 = arith.mulf %210, %211 : vector<8x1xf32>
    %213 = vector.broadcast %212 : vector<8x1xf32> to vector<8x128xf32>
    %214 = arith.subf %204, %213 : vector<8x128xf32>
    %cst_102 = arith.constant 0.000000e+00 : f32
    %215 = vector.broadcast %cst_102 : f32 to vector<8x128xf32>
    %216 = arith.select %13, %214, %215 : vector<8x128xi1>, vector<8x128xf32>
    %217 = arith.mulf %216, %216 : vector<8x128xf32>
    %cst_103 = arith.constant dense<0.000000e+00> : vector<8xf32>
    %218 = vector.multi_reduction <add>, %217, %cst_103 [1] : vector<8x128xf32> to vector<8xf32>
    %219 = vector.shape_cast %218 : vector<8xf32> to vector<8x1xf32>
    %cst_104 = arith.constant 3.125000e-02 : f32
    %220 = vector.broadcast %cst_104 : f32 to vector<8x1xf32>
    %221 = arith.mulf %219, %220 : vector<8x1xf32>
    %cst_105 = arith.constant 9.99999974E-6 : f32
    %222 = vector.broadcast %cst_105 : f32 to vector<8x1xf32>
    %223 = arith.addf %221, %222 : vector<8x1xf32>
    %224 = math.rsqrt %223 : vector<8x1xf32>
    %225 = vector.broadcast %224 : vector<8x1xf32> to vector<8x128xf32>
    %226 = arith.mulf %216, %225 : vector<8x128xf32>
    %227 = vector.broadcast %206 : vector<1x128xf32> to vector<8x128xf32>
    %228 = arith.mulf %226, %227 : vector<8x128xf32>
    %229 = vector.broadcast %208 : vector<1x128xf32> to vector<8x128xf32>
    %230 = arith.addf %228, %229 : vector<8x128xf32>
    %231 = arith.truncf %230 : vector<8x128xf32> to vector<8x128xbf16>
    %c1_106 = arith.constant 1 : index
    %c0_107 = arith.constant 0 : index
    %c0_108 = arith.constant 0 : index
    %232 = vector.load %arg10[%c1_106, %c0_107, %c0_108] : memref<4x128x128xbf16, #tpu.memory_space<vmem>>, vector<1x128x128xbf16>
    %233 = vector.shape_cast %232 : vector<1x128x128xbf16> to vector<128x128xbf16>
    %cst_109 = arith.constant dense<0.000000e+00> : vector<8x128xf32>
    %234 = tpu.matmul %231, %233, %cst_109 {dimension_numbers = #tpu.dot_dimension_numbers<[1], [0], [0], [1], [0, 0, 1, 1], [], []>} : vector<8x128xbf16>, vector<128x128xbf16>, vector<8x128xf32> -> vector<8x128xf32>
    %c1_110 = arith.constant 1 : index
    %c0_111 = arith.constant 0 : index
    %c0_112 = arith.constant 0 : index
    %235 = vector.load %arg11[%c1_110, %c0_111, %c0_112] : memref<4x1x128xf32, #tpu.memory_space<vmem>>, vector<1x1x128xf32>
    %236 = vector.shape_cast %235 : vector<1x1x128xf32> to vector<1x128xf32>
    %237 = vector.broadcast %236 : vector<1x128xf32> to vector<8x128xf32>
    %238 = arith.addf %234, %237 : vector<8x128xf32>
    %cst_113 = arith.constant 0.000000e+00 : f32
    %239 = vector.broadcast %cst_113 : f32 to vector<8x128xf32>
    %240 = arith.maximumf %238, %239 : vector<8x128xf32>
    %241 = arith.truncf %240 : vector<8x128xf32> to vector<8x128xbf16>
    %c1_114 = arith.constant 1 : index
    %c0_115 = arith.constant 0 : index
    %c0_116 = arith.constant 0 : index
    %242 = vector.load %arg12[%c1_114, %c0_115, %c0_116] : memref<4x128x128xbf16, #tpu.memory_space<vmem>>, vector<1x128x128xbf16>
    %243 = vector.shape_cast %242 : vector<1x128x128xbf16> to vector<128x128xbf16>
    %cst_117 = arith.constant dense<0.000000e+00> : vector<8x128xf32>
    %244 = tpu.matmul %241, %243, %cst_117 {dimension_numbers = #tpu.dot_dimension_numbers<[1], [0], [0], [1], [0, 0, 1, 1], [], []>} : vector<8x128xbf16>, vector<128x128xbf16>, vector<8x128xf32> -> vector<8x128xf32>
    %c1_118 = arith.constant 1 : index
    %c0_119 = arith.constant 0 : index
    %c0_120 = arith.constant 0 : index
    %245 = vector.load %arg13[%c1_118, %c0_119, %c0_120] : memref<4x1x128xf32, #tpu.memory_space<vmem>>, vector<1x1x128xf32>
    %246 = vector.shape_cast %245 : vector<1x1x128xf32> to vector<1x128xf32>
    %247 = vector.broadcast %246 : vector<1x128xf32> to vector<8x128xf32>
    %248 = arith.addf %244, %247 : vector<8x128xf32>
    %249 = arith.addf %230, %248 : vector<8x128xf32>
    %c1_121 = arith.constant 1 : index
    %c0_122 = arith.constant 0 : index
    %c0_123 = arith.constant 0 : index
    %250 = vector.load %arg16[%c1_121, %c0_122, %c0_123] : memref<4x1x128xf32, #tpu.memory_space<vmem>>, vector<1x1x128xf32>
    %251 = vector.shape_cast %250 : vector<1x1x128xf32> to vector<1x128xf32>
    %c1_124 = arith.constant 1 : index
    %c0_125 = arith.constant 0 : index
    %c0_126 = arith.constant 0 : index
    %252 = vector.load %arg17[%c1_124, %c0_125, %c0_126] : memref<4x1x128xf32, #tpu.memory_space<vmem>>, vector<1x1x128xf32>
    %253 = vector.shape_cast %252 : vector<1x1x128xf32> to vector<1x128xf32>
    %cst_127 = arith.constant dense<0.000000e+00> : vector<8xf32>
    %254 = vector.multi_reduction <add>, %249, %cst_127 [1] : vector<8x128xf32> to vector<8xf32>
    %255 = vector.shape_cast %254 : vector<8xf32> to vector<8x1xf32>
    %cst_128 = arith.constant 3.125000e-02 : f32
    %256 = vector.broadcast %cst_128 : f32 to vector<8x1xf32>
    %257 = arith.mulf %255, %256 : vector<8x1xf32>
    %258 = vector.broadcast %257 : vector<8x1xf32> to vector<8x128xf32>
    %259 = arith.subf %249, %258 : vector<8x128xf32>
    %cst_129 = arith.constant 0.000000e+00 : f32
    %260 = vector.broadcast %cst_129 : f32 to vector<8x128xf32>
    %261 = arith.select %13, %259, %260 : vector<8x128xi1>, vector<8x128xf32>
    %262 = arith.mulf %261, %261 : vector<8x128xf32>
    %cst_130 = arith.constant dense<0.000000e+00> : vector<8xf32>
    %263 = vector.multi_reduction <add>, %262, %cst_130 [1] : vector<8x128xf32> to vector<8xf32>
    %264 = vector.shape_cast %263 : vector<8xf32> to vector<8x1xf32>
    %cst_131 = arith.constant 3.125000e-02 : f32
    %265 = vector.broadcast %cst_131 : f32 to vector<8x1xf32>
    %266 = arith.mulf %264, %265 : vector<8x1xf32>
    %cst_132 = arith.constant 9.99999974E-6 : f32
    %267 = vector.broadcast %cst_132 : f32 to vector<8x1xf32>
    %268 = arith.addf %266, %267 : vector<8x1xf32>
    %269 = math.rsqrt %268 : vector<8x1xf32>
    %270 = vector.broadcast %269 : vector<8x1xf32> to vector<8x128xf32>
    %271 = arith.mulf %261, %270 : vector<8x128xf32>
    %272 = vector.broadcast %251 : vector<1x128xf32> to vector<8x128xf32>
    %273 = arith.mulf %271, %272 : vector<8x128xf32>
    %274 = vector.broadcast %253 : vector<1x128xf32> to vector<8x128xf32>
    %275 = arith.addf %273, %274 : vector<8x128xf32>
    %c0_133 = arith.constant 0 : index
    %c0_134 = arith.constant 0 : index
    %276 = vector.load %arg2[%c0_133, %c0_134] : memref<8x128xf32, #tpu.memory_space<vmem>>, vector<8x128xf32>
    %277 = vector.extract_strided_slice %4 {offsets = [0, 128], sizes = [8, 128], strides = [1, 1]} : vector<8x256xf32> to vector<8x128xf32>
    %278 = arith.addf %276, %277 : vector<8x128xf32>
    %c1_135 = arith.constant 1 : index
    %c0_136 = arith.constant 0 : index
    %c0_137 = arith.constant 0 : index
    %279 = vector.load %arg5[%c1_135, %c0_136, %c0_137] : memref<2x1x128xf32, #tpu.memory_space<vmem>>, vector<1x1x128xf32>
    %280 = vector.shape_cast %279 : vector<1x1x128xf32> to vector<1x128xf32>
    %281 = vector.broadcast %280 : vector<1x128xf32> to vector<8x128xf32>
    %282 = arith.addf %278, %281 : vector<8x128xf32>
    %c56_i32 = arith.constant 56 : i32
    %283 = vector.broadcast %c56_i32 : i32 to vector<8x128xi32>
    %284 = arith.cmpi slt, %0, %283 : vector<8x128xi32>
    %285 = arith.truncf %282 : vector<8x128xf32> to vector<8x128xbf16>
    %c2 = arith.constant 2 : index
    %c0_138 = arith.constant 0 : index
    %c0_139 = arith.constant 0 : index
    %286 = vector.load %arg6[%c2, %c0_138, %c0_139] : memref<4x128x768xbf16, #tpu.memory_space<vmem>>, vector<1x128x768xbf16>
    %287 = vector.shape_cast %286 : vector<1x128x768xbf16> to vector<128x768xbf16>
    %cst_140 = arith.constant dense<0.000000e+00> : vector<8x768xf32>
    %288 = tpu.matmul %285, %287, %cst_140 {dimension_numbers = #tpu.dot_dimension_numbers<[1], [0], [0], [1], [0, 0, 1, 1], [], []>} : vector<8x128xbf16>, vector<128x768xbf16>, vector<8x768xf32> -> vector<8x768xf32>
    %c2_141 = arith.constant 2 : index
    %c0_142 = arith.constant 0 : index
    %c0_143 = arith.constant 0 : index
    %289 = vector.load %arg7[%c2_141, %c0_142, %c0_143] : memref<4x1x768xf32, #tpu.memory_space<vmem>>, vector<1x1x768xf32>
    %290 = vector.shape_cast %289 : vector<1x1x768xf32> to vector<1x768xf32>
    %291 = vector.broadcast %290 : vector<1x768xf32> to vector<8x768xf32>
    %292 = arith.addf %288, %291 : vector<8x768xf32>
    %293 = vector.extract_strided_slice %292 {offsets = [0, 0], sizes = [8, 128], strides = [1, 1]} : vector<8x768xf32> to vector<8x128xf32>
    %294 = vector.extract_strided_slice %292 {offsets = [0, 256], sizes = [8, 128], strides = [1, 1]} : vector<8x768xf32> to vector<8x128xf32>
    %295 = vector.extract_strided_slice %292 {offsets = [0, 512], sizes = [8, 128], strides = [1, 1]} : vector<8x768xf32> to vector<8x128xf32>
    %296 = arith.truncf %293 : vector<8x128xf32> to vector<8x128xbf16>
    %297 = arith.truncf %294 : vector<8x128xf32> to vector<8x128xbf16>
    %cst_144 = arith.constant dense<0.000000e+00> : vector<8x8xf32>
    %298 = tpu.matmul %296, %297, %cst_144 {dimension_numbers = #tpu.dot_dimension_numbers<[1], [1], [0], [0], [0, 0, 1, 0], [], []>} : vector<8x128xbf16>, vector<8x128xbf16>, vector<8x8xf32> -> vector<8x8xf32>
    %cst_145 = arith.constant 0.188982233 : f32
    %299 = vector.broadcast %cst_145 : f32 to vector<8x8xf32>
    %300 = arith.mulf %298, %299 : vector<8x8xf32>
    %cst_146 = arith.constant dense<0xFF800000> : vector<8xf32>
    %301 = vector.multi_reduction <maximumf>, %300, %cst_146 [1] : vector<8x8xf32> to vector<8xf32>
    %302 = vector.shape_cast %301 : vector<8xf32> to vector<8x1xf32>
    %303 = vector.broadcast %302 : vector<8x1xf32> to vector<8x8xf32>
    %304 = arith.subf %300, %303 : vector<8x8xf32>
    %305 = math.exp %304 : vector<8x8xf32>
    %cst_147 = arith.constant dense<0.000000e+00> : vector<8xf32>
    %306 = vector.multi_reduction <add>, %305, %cst_147 [1] : vector<8x8xf32> to vector<8xf32>
    %307 = vector.shape_cast %306 : vector<8xf32> to vector<8x1xf32>
    %308 = tpu.reciprocal %307 {approx = true} : vector<8x1xf32> -> vector<8x1xf32>
    %309 = vector.broadcast %308 : vector<8x1xf32> to vector<8x8xf32>
    %310 = arith.mulf %305, %309 : vector<8x8xf32>
    %311 = arith.truncf %310 : vector<8x8xf32> to vector<8x8xbf16>
    %312 = arith.truncf %295 : vector<8x128xf32> to vector<8x128xbf16>
    %cst_148 = arith.constant dense<0.000000e+00> : vector<8x128xf32>
    %313 = tpu.matmul %311, %312, %cst_148 {dimension_numbers = #tpu.dot_dimension_numbers<[1], [0], [0], [1], [0, 0, 1, 1], [], []>} : vector<8x8xbf16>, vector<8x128xbf16>, vector<8x128xf32> -> vector<8x128xf32>
    %314 = vector.extract_strided_slice %292 {offsets = [0, 128], sizes = [8, 128], strides = [1, 1]} : vector<8x768xf32> to vector<8x128xf32>
    %315 = vector.extract_strided_slice %292 {offsets = [0, 384], sizes = [8, 128], strides = [1, 1]} : vector<8x768xf32> to vector<8x128xf32>
    %316 = vector.extract_strided_slice %292 {offsets = [0, 640], sizes = [8, 128], strides = [1, 1]} : vector<8x768xf32> to vector<8x128xf32>
    %317 = arith.truncf %314 : vector<8x128xf32> to vector<8x128xbf16>
    %318 = arith.truncf %315 : vector<8x128xf32> to vector<8x128xbf16>
    %cst_149 = arith.constant dense<0.000000e+00> : vector<8x8xf32>
    %319 = tpu.matmul %317, %318, %cst_149 {dimension_numbers = #tpu.dot_dimension_numbers<[1], [1], [0], [0], [0, 0, 1, 0], [], []>} : vector<8x128xbf16>, vector<8x128xbf16>, vector<8x8xf32> -> vector<8x8xf32>
    %cst_150 = arith.constant 0.188982233 : f32
    %320 = vector.broadcast %cst_150 : f32 to vector<8x8xf32>
    %321 = arith.mulf %319, %320 : vector<8x8xf32>
    %cst_151 = arith.constant dense<0xFF800000> : vector<8xf32>
    %322 = vector.multi_reduction <maximumf>, %321, %cst_151 [1] : vector<8x8xf32> to vector<8xf32>
    %323 = vector.shape_cast %322 : vector<8xf32> to vector<8x1xf32>
    %324 = vector.broadcast %323 : vector<8x1xf32> to vector<8x8xf32>
    %325 = arith.subf %321, %324 : vector<8x8xf32>
    %326 = math.exp %325 : vector<8x8xf32>
    %cst_152 = arith.constant dense<0.000000e+00> : vector<8xf32>
    %327 = vector.multi_reduction <add>, %326, %cst_152 [1] : vector<8x8xf32> to vector<8xf32>
    %328 = vector.shape_cast %327 : vector<8xf32> to vector<8x1xf32>
    %329 = tpu.reciprocal %328 {approx = true} : vector<8x1xf32> -> vector<8x1xf32>
    %330 = vector.broadcast %329 : vector<8x1xf32> to vector<8x8xf32>
    %331 = arith.mulf %326, %330 : vector<8x8xf32>
    %332 = arith.truncf %331 : vector<8x8xf32> to vector<8x8xbf16>
    %333 = arith.truncf %316 : vector<8x128xf32> to vector<8x128xbf16>
    %cst_153 = arith.constant dense<0.000000e+00> : vector<8x128xf32>
    %334 = tpu.matmul %332, %333, %cst_153 {dimension_numbers = #tpu.dot_dimension_numbers<[1], [0], [0], [1], [0, 0, 1, 1], [], []>} : vector<8x8xbf16>, vector<8x128xbf16>, vector<8x128xf32> -> vector<8x128xf32>
    %335 = tpu.concatenate %313, %334 in 1 : vector<8x128xf32>, vector<8x128xf32> -> vector<8x256xf32>
    %336 = arith.truncf %335 : vector<8x256xf32> to vector<8x256xbf16>
    %c2_154 = arith.constant 2 : index
    %c0_155 = arith.constant 0 : index
    %c0_156 = arith.constant 0 : index
    %337 = vector.load %arg8[%c2_154, %c0_155, %c0_156] : memref<4x256x128xbf16, #tpu.memory_space<vmem>>, vector<1x256x128xbf16>
    %338 = vector.shape_cast %337 : vector<1x256x128xbf16> to vector<256x128xbf16>
    %cst_157 = arith.constant dense<0.000000e+00> : vector<8x128xf32>
    %339 = tpu.matmul %336, %338, %cst_157 {dimension_numbers = #tpu.dot_dimension_numbers<[1], [0], [0], [1], [0, 0, 1, 1], [], []>} : vector<8x256xbf16>, vector<256x128xbf16>, vector<8x128xf32> -> vector<8x128xf32>
    %c2_158 = arith.constant 2 : index
    %c0_159 = arith.constant 0 : index
    %c0_160 = arith.constant 0 : index
    %340 = vector.load %arg9[%c2_158, %c0_159, %c0_160] : memref<4x1x128xf32, #tpu.memory_space<vmem>>, vector<1x1x128xf32>
    %341 = vector.shape_cast %340 : vector<1x1x128xf32> to vector<1x128xf32>
    %342 = vector.broadcast %341 : vector<1x128xf32> to vector<8x128xf32>
    %343 = arith.addf %339, %342 : vector<8x128xf32>
    %344 = arith.addf %282, %343 : vector<8x128xf32>
    %c2_161 = arith.constant 2 : index
    %c0_162 = arith.constant 0 : index
    %c0_163 = arith.constant 0 : index
    %345 = vector.load %arg14[%c2_161, %c0_162, %c0_163] : memref<4x1x128xf32, #tpu.memory_space<vmem>>, vector<1x1x128xf32>
    %346 = vector.shape_cast %345 : vector<1x1x128xf32> to vector<1x128xf32>
    %c2_164 = arith.constant 2 : index
    %c0_165 = arith.constant 0 : index
    %c0_166 = arith.constant 0 : index
    %347 = vector.load %arg15[%c2_164, %c0_165, %c0_166] : memref<4x1x128xf32, #tpu.memory_space<vmem>>, vector<1x1x128xf32>
    %348 = vector.shape_cast %347 : vector<1x1x128xf32> to vector<1x128xf32>
    %cst_167 = arith.constant dense<0.000000e+00> : vector<8xf32>
    %349 = vector.multi_reduction <add>, %344, %cst_167 [1] : vector<8x128xf32> to vector<8xf32>
    %350 = vector.shape_cast %349 : vector<8xf32> to vector<8x1xf32>
    %cst_168 = arith.constant 0.0178571437 : f32
    %351 = vector.broadcast %cst_168 : f32 to vector<8x1xf32>
    %352 = arith.mulf %350, %351 : vector<8x1xf32>
    %353 = vector.broadcast %352 : vector<8x1xf32> to vector<8x128xf32>
    %354 = arith.subf %344, %353 : vector<8x128xf32>
    %cst_169 = arith.constant 0.000000e+00 : f32
    %355 = vector.broadcast %cst_169 : f32 to vector<8x128xf32>
    %356 = arith.select %284, %354, %355 : vector<8x128xi1>, vector<8x128xf32>
    %357 = arith.mulf %356, %356 : vector<8x128xf32>
    %cst_170 = arith.constant dense<0.000000e+00> : vector<8xf32>
    %358 = vector.multi_reduction <add>, %357, %cst_170 [1] : vector<8x128xf32> to vector<8xf32>
    %359 = vector.shape_cast %358 : vector<8xf32> to vector<8x1xf32>
    %cst_171 = arith.constant 0.0178571437 : f32
    %360 = vector.broadcast %cst_171 : f32 to vector<8x1xf32>
    %361 = arith.mulf %359, %360 : vector<8x1xf32>
    %cst_172 = arith.constant 9.99999974E-6 : f32
    %362 = vector.broadcast %cst_172 : f32 to vector<8x1xf32>
    %363 = arith.addf %361, %362 : vector<8x1xf32>
    %364 = math.rsqrt %363 : vector<8x1xf32>
    %365 = vector.broadcast %364 : vector<8x1xf32> to vector<8x128xf32>
    %366 = arith.mulf %356, %365 : vector<8x128xf32>
    %367 = vector.broadcast %346 : vector<1x128xf32> to vector<8x128xf32>
    %368 = arith.mulf %366, %367 : vector<8x128xf32>
    %369 = vector.broadcast %348 : vector<1x128xf32> to vector<8x128xf32>
    %370 = arith.addf %368, %369 : vector<8x128xf32>
    %371 = arith.truncf %370 : vector<8x128xf32> to vector<8x128xbf16>
    %c2_173 = arith.constant 2 : index
    %c0_174 = arith.constant 0 : index
    %c0_175 = arith.constant 0 : index
    %372 = vector.load %arg10[%c2_173, %c0_174, %c0_175] : memref<4x128x128xbf16, #tpu.memory_space<vmem>>, vector<1x128x128xbf16>
    %373 = vector.shape_cast %372 : vector<1x128x128xbf16> to vector<128x128xbf16>
    %cst_176 = arith.constant dense<0.000000e+00> : vector<8x128xf32>
    %374 = tpu.matmul %371, %373, %cst_176 {dimension_numbers = #tpu.dot_dimension_numbers<[1], [0], [0], [1], [0, 0, 1, 1], [], []>} : vector<8x128xbf16>, vector<128x128xbf16>, vector<8x128xf32> -> vector<8x128xf32>
    %c2_177 = arith.constant 2 : index
    %c0_178 = arith.constant 0 : index
    %c0_179 = arith.constant 0 : index
    %375 = vector.load %arg11[%c2_177, %c0_178, %c0_179] : memref<4x1x128xf32, #tpu.memory_space<vmem>>, vector<1x1x128xf32>
    %376 = vector.shape_cast %375 : vector<1x1x128xf32> to vector<1x128xf32>
    %377 = vector.broadcast %376 : vector<1x128xf32> to vector<8x128xf32>
    %378 = arith.addf %374, %377 : vector<8x128xf32>
    %cst_180 = arith.constant 0.000000e+00 : f32
    %379 = vector.broadcast %cst_180 : f32 to vector<8x128xf32>
    %380 = arith.maximumf %378, %379 : vector<8x128xf32>
    %381 = arith.truncf %380 : vector<8x128xf32> to vector<8x128xbf16>
    %c2_181 = arith.constant 2 : index
    %c0_182 = arith.constant 0 : index
    %c0_183 = arith.constant 0 : index
    %382 = vector.load %arg12[%c2_181, %c0_182, %c0_183] : memref<4x128x128xbf16, #tpu.memory_space<vmem>>, vector<1x128x128xbf16>
    %383 = vector.shape_cast %382 : vector<1x128x128xbf16> to vector<128x128xbf16>
    %cst_184 = arith.constant dense<0.000000e+00> : vector<8x128xf32>
    %384 = tpu.matmul %381, %383, %cst_184 {dimension_numbers = #tpu.dot_dimension_numbers<[1], [0], [0], [1], [0, 0, 1, 1], [], []>} : vector<8x128xbf16>, vector<128x128xbf16>, vector<8x128xf32> -> vector<8x128xf32>
    %c2_185 = arith.constant 2 : index
    %c0_186 = arith.constant 0 : index
    %c0_187 = arith.constant 0 : index
    %385 = vector.load %arg13[%c2_185, %c0_186, %c0_187] : memref<4x1x128xf32, #tpu.memory_space<vmem>>, vector<1x1x128xf32>
    %386 = vector.shape_cast %385 : vector<1x1x128xf32> to vector<1x128xf32>
    %387 = vector.broadcast %386 : vector<1x128xf32> to vector<8x128xf32>
    %388 = arith.addf %384, %387 : vector<8x128xf32>
    %389 = arith.addf %370, %388 : vector<8x128xf32>
    %c2_188 = arith.constant 2 : index
    %c0_189 = arith.constant 0 : index
    %c0_190 = arith.constant 0 : index
    %390 = vector.load %arg16[%c2_188, %c0_189, %c0_190] : memref<4x1x128xf32, #tpu.memory_space<vmem>>, vector<1x1x128xf32>
    %391 = vector.shape_cast %390 : vector<1x1x128xf32> to vector<1x128xf32>
    %c2_191 = arith.constant 2 : index
    %c0_192 = arith.constant 0 : index
    %c0_193 = arith.constant 0 : index
    %392 = vector.load %arg17[%c2_191, %c0_192, %c0_193] : memref<4x1x128xf32, #tpu.memory_space<vmem>>, vector<1x1x128xf32>
    %393 = vector.shape_cast %392 : vector<1x1x128xf32> to vector<1x128xf32>
    %cst_194 = arith.constant dense<0.000000e+00> : vector<8xf32>
    %394 = vector.multi_reduction <add>, %389, %cst_194 [1] : vector<8x128xf32> to vector<8xf32>
    %395 = vector.shape_cast %394 : vector<8xf32> to vector<8x1xf32>
    %cst_195 = arith.constant 0.0178571437 : f32
    %396 = vector.broadcast %cst_195 : f32 to vector<8x1xf32>
    %397 = arith.mulf %395, %396 : vector<8x1xf32>
    %398 = vector.broadcast %397 : vector<8x1xf32> to vector<8x128xf32>
    %399 = arith.subf %389, %398 : vector<8x128xf32>
    %cst_196 = arith.constant 0.000000e+00 : f32
    %400 = vector.broadcast %cst_196 : f32 to vector<8x128xf32>
    %401 = arith.select %284, %399, %400 : vector<8x128xi1>, vector<8x128xf32>
    %402 = arith.mulf %401, %401 : vector<8x128xf32>
    %cst_197 = arith.constant dense<0.000000e+00> : vector<8xf32>
    %403 = vector.multi_reduction <add>, %402, %cst_197 [1] : vector<8x128xf32> to vector<8xf32>
    %404 = vector.shape_cast %403 : vector<8xf32> to vector<8x1xf32>
    %cst_198 = arith.constant 0.0178571437 : f32
    %405 = vector.broadcast %cst_198 : f32 to vector<8x1xf32>
    %406 = arith.mulf %404, %405 : vector<8x1xf32>
    %cst_199 = arith.constant 9.99999974E-6 : f32
    %407 = vector.broadcast %cst_199 : f32 to vector<8x1xf32>
    %408 = arith.addf %406, %407 : vector<8x1xf32>
    %409 = math.rsqrt %408 : vector<8x1xf32>
    %410 = vector.broadcast %409 : vector<8x1xf32> to vector<8x128xf32>
    %411 = arith.mulf %401, %410 : vector<8x128xf32>
    %412 = vector.broadcast %391 : vector<1x128xf32> to vector<8x128xf32>
    %413 = arith.mulf %411, %412 : vector<8x128xf32>
    %414 = vector.broadcast %393 : vector<1x128xf32> to vector<8x128xf32>
    %415 = arith.addf %413, %414 : vector<8x128xf32>
    %416 = arith.truncf %415 : vector<8x128xf32> to vector<8x128xbf16>
    %c3 = arith.constant 3 : index
    %c0_200 = arith.constant 0 : index
    %c0_201 = arith.constant 0 : index
    %417 = vector.load %arg6[%c3, %c0_200, %c0_201] : memref<4x128x768xbf16, #tpu.memory_space<vmem>>, vector<1x128x768xbf16>
    %418 = vector.shape_cast %417 : vector<1x128x768xbf16> to vector<128x768xbf16>
    %cst_202 = arith.constant dense<0.000000e+00> : vector<8x768xf32>
    %419 = tpu.matmul %416, %418, %cst_202 {dimension_numbers = #tpu.dot_dimension_numbers<[1], [0], [0], [1], [0, 0, 1, 1], [], []>} : vector<8x128xbf16>, vector<128x768xbf16>, vector<8x768xf32> -> vector<8x768xf32>
    %c3_203 = arith.constant 3 : index
    %c0_204 = arith.constant 0 : index
    %c0_205 = arith.constant 0 : index
    %420 = vector.load %arg7[%c3_203, %c0_204, %c0_205] : memref<4x1x768xf32, #tpu.memory_space<vmem>>, vector<1x1x768xf32>
    %421 = vector.shape_cast %420 : vector<1x1x768xf32> to vector<1x768xf32>
    %422 = vector.broadcast %421 : vector<1x768xf32> to vector<8x768xf32>
    %423 = arith.addf %419, %422 : vector<8x768xf32>
    %424 = vector.extract_strided_slice %423 {offsets = [0, 0], sizes = [8, 128], strides = [1, 1]} : vector<8x768xf32> to vector<8x128xf32>
    %425 = vector.extract_strided_slice %423 {offsets = [0, 256], sizes = [8, 128], strides = [1, 1]} : vector<8x768xf32> to vector<8x128xf32>
    %426 = vector.extract_strided_slice %423 {offsets = [0, 512], sizes = [8, 128], strides = [1, 1]} : vector<8x768xf32> to vector<8x128xf32>
    %427 = arith.truncf %424 : vector<8x128xf32> to vector<8x128xbf16>
    %428 = arith.truncf %425 : vector<8x128xf32> to vector<8x128xbf16>
    %cst_206 = arith.constant dense<0.000000e+00> : vector<8x8xf32>
    %429 = tpu.matmul %427, %428, %cst_206 {dimension_numbers = #tpu.dot_dimension_numbers<[1], [1], [0], [0], [0, 0, 1, 0], [], []>} : vector<8x128xbf16>, vector<8x128xbf16>, vector<8x8xf32> -> vector<8x8xf32>
    %cst_207 = arith.constant 0.188982233 : f32
    %430 = vector.broadcast %cst_207 : f32 to vector<8x8xf32>
    %431 = arith.mulf %429, %430 : vector<8x8xf32>
    %cst_208 = arith.constant dense<0xFF800000> : vector<8xf32>
    %432 = vector.multi_reduction <maximumf>, %431, %cst_208 [1] : vector<8x8xf32> to vector<8xf32>
    %433 = vector.shape_cast %432 : vector<8xf32> to vector<8x1xf32>
    %434 = vector.broadcast %433 : vector<8x1xf32> to vector<8x8xf32>
    %435 = arith.subf %431, %434 : vector<8x8xf32>
    %436 = math.exp %435 : vector<8x8xf32>
    %cst_209 = arith.constant dense<0.000000e+00> : vector<8xf32>
    %437 = vector.multi_reduction <add>, %436, %cst_209 [1] : vector<8x8xf32> to vector<8xf32>
    %438 = vector.shape_cast %437 : vector<8xf32> to vector<8x1xf32>
    %439 = tpu.reciprocal %438 {approx = true} : vector<8x1xf32> -> vector<8x1xf32>
    %440 = vector.broadcast %439 : vector<8x1xf32> to vector<8x8xf32>
    %441 = arith.mulf %436, %440 : vector<8x8xf32>
    %442 = arith.truncf %441 : vector<8x8xf32> to vector<8x8xbf16>
    %443 = arith.truncf %426 : vector<8x128xf32> to vector<8x128xbf16>
    %cst_210 = arith.constant dense<0.000000e+00> : vector<8x128xf32>
    %444 = tpu.matmul %442, %443, %cst_210 {dimension_numbers = #tpu.dot_dimension_numbers<[1], [0], [0], [1], [0, 0, 1, 1], [], []>} : vector<8x8xbf16>, vector<8x128xbf16>, vector<8x128xf32> -> vector<8x128xf32>
    %445 = vector.extract_strided_slice %423 {offsets = [0, 128], sizes = [8, 128], strides = [1, 1]} : vector<8x768xf32> to vector<8x128xf32>
    %446 = vector.extract_strided_slice %423 {offsets = [0, 384], sizes = [8, 128], strides = [1, 1]} : vector<8x768xf32> to vector<8x128xf32>
    %447 = vector.extract_strided_slice %423 {offsets = [0, 640], sizes = [8, 128], strides = [1, 1]} : vector<8x768xf32> to vector<8x128xf32>
    %448 = arith.truncf %445 : vector<8x128xf32> to vector<8x128xbf16>
    %449 = arith.truncf %446 : vector<8x128xf32> to vector<8x128xbf16>
    %cst_211 = arith.constant dense<0.000000e+00> : vector<8x8xf32>
    %450 = tpu.matmul %448, %449, %cst_211 {dimension_numbers = #tpu.dot_dimension_numbers<[1], [1], [0], [0], [0, 0, 1, 0], [], []>} : vector<8x128xbf16>, vector<8x128xbf16>, vector<8x8xf32> -> vector<8x8xf32>
    %cst_212 = arith.constant 0.188982233 : f32
    %451 = vector.broadcast %cst_212 : f32 to vector<8x8xf32>
    %452 = arith.mulf %450, %451 : vector<8x8xf32>
    %cst_213 = arith.constant dense<0xFF800000> : vector<8xf32>
    %453 = vector.multi_reduction <maximumf>, %452, %cst_213 [1] : vector<8x8xf32> to vector<8xf32>
    %454 = vector.shape_cast %453 : vector<8xf32> to vector<8x1xf32>
    %455 = vector.broadcast %454 : vector<8x1xf32> to vector<8x8xf32>
    %456 = arith.subf %452, %455 : vector<8x8xf32>
    %457 = math.exp %456 : vector<8x8xf32>
    %cst_214 = arith.constant dense<0.000000e+00> : vector<8xf32>
    %458 = vector.multi_reduction <add>, %457, %cst_214 [1] : vector<8x8xf32> to vector<8xf32>
    %459 = vector.shape_cast %458 : vector<8xf32> to vector<8x1xf32>
    %460 = tpu.reciprocal %459 {approx = true} : vector<8x1xf32> -> vector<8x1xf32>
    %461 = vector.broadcast %460 : vector<8x1xf32> to vector<8x8xf32>
    %462 = arith.mulf %457, %461 : vector<8x8xf32>
    %463 = arith.truncf %462 : vector<8x8xf32> to vector<8x8xbf16>
    %464 = arith.truncf %447 : vector<8x128xf32> to vector<8x128xbf16>
    %cst_215 = arith.constant dense<0.000000e+00> : vector<8x128xf32>
    %465 = tpu.matmul %463, %464, %cst_215 {dimension_numbers = #tpu.dot_dimension_numbers<[1], [0], [0], [1], [0, 0, 1, 1], [], []>} : vector<8x8xbf16>, vector<8x128xbf16>, vector<8x128xf32> -> vector<8x128xf32>
    %466 = tpu.concatenate %444, %465 in 1 : vector<8x128xf32>, vector<8x128xf32> -> vector<8x256xf32>
    %467 = arith.truncf %466 : vector<8x256xf32> to vector<8x256xbf16>
    %c3_216 = arith.constant 3 : index
    %c0_217 = arith.constant 0 : index
    %c0_218 = arith.constant 0 : index
    %468 = vector.load %arg8[%c3_216, %c0_217, %c0_218] : memref<4x256x128xbf16, #tpu.memory_space<vmem>>, vector<1x256x128xbf16>
    %469 = vector.shape_cast %468 : vector<1x256x128xbf16> to vector<256x128xbf16>
    %cst_219 = arith.constant dense<0.000000e+00> : vector<8x128xf32>
    %470 = tpu.matmul %467, %469, %cst_219 {dimension_numbers = #tpu.dot_dimension_numbers<[1], [0], [0], [1], [0, 0, 1, 1], [], []>} : vector<8x256xbf16>, vector<256x128xbf16>, vector<8x128xf32> -> vector<8x128xf32>
    %c3_220 = arith.constant 3 : index
    %c0_221 = arith.constant 0 : index
    %c0_222 = arith.constant 0 : index
    %471 = vector.load %arg9[%c3_220, %c0_221, %c0_222] : memref<4x1x128xf32, #tpu.memory_space<vmem>>, vector<1x1x128xf32>
    %472 = vector.shape_cast %471 : vector<1x1x128xf32> to vector<1x128xf32>
    %473 = vector.broadcast %472 : vector<1x128xf32> to vector<8x128xf32>
    %474 = arith.addf %470, %473 : vector<8x128xf32>
    %475 = arith.addf %415, %474 : vector<8x128xf32>
    %c3_223 = arith.constant 3 : index
    %c0_224 = arith.constant 0 : index
    %c0_225 = arith.constant 0 : index
    %476 = vector.load %arg14[%c3_223, %c0_224, %c0_225] : memref<4x1x128xf32, #tpu.memory_space<vmem>>, vector<1x1x128xf32>
    %477 = vector.shape_cast %476 : vector<1x1x128xf32> to vector<1x128xf32>
    %c3_226 = arith.constant 3 : index
    %c0_227 = arith.constant 0 : index
    %c0_228 = arith.constant 0 : index
    %478 = vector.load %arg15[%c3_226, %c0_227, %c0_228] : memref<4x1x128xf32, #tpu.memory_space<vmem>>, vector<1x1x128xf32>
    %479 = vector.shape_cast %478 : vector<1x1x128xf32> to vector<1x128xf32>
    %cst_229 = arith.constant dense<0.000000e+00> : vector<8xf32>
    %480 = vector.multi_reduction <add>, %475, %cst_229 [1] : vector<8x128xf32> to vector<8xf32>
    %481 = vector.shape_cast %480 : vector<8xf32> to vector<8x1xf32>
    %cst_230 = arith.constant 0.0178571437 : f32
    %482 = vector.broadcast %cst_230 : f32 to vector<8x1xf32>
    %483 = arith.mulf %481, %482 : vector<8x1xf32>
    %484 = vector.broadcast %483 : vector<8x1xf32> to vector<8x128xf32>
    %485 = arith.subf %475, %484 : vector<8x128xf32>
    %cst_231 = arith.constant 0.000000e+00 : f32
    %486 = vector.broadcast %cst_231 : f32 to vector<8x128xf32>
    %487 = arith.select %284, %485, %486 : vector<8x128xi1>, vector<8x128xf32>
    %488 = arith.mulf %487, %487 : vector<8x128xf32>
    %cst_232 = arith.constant dense<0.000000e+00> : vector<8xf32>
    %489 = vector.multi_reduction <add>, %488, %cst_232 [1] : vector<8x128xf32> to vector<8xf32>
    %490 = vector.shape_cast %489 : vector<8xf32> to vector<8x1xf32>
    %cst_233 = arith.constant 0.0178571437 : f32
    %491 = vector.broadcast %cst_233 : f32 to vector<8x1xf32>
    %492 = arith.mulf %490, %491 : vector<8x1xf32>
    %cst_234 = arith.constant 9.99999974E-6 : f32
    %493 = vector.broadcast %cst_234 : f32 to vector<8x1xf32>
    %494 = arith.addf %492, %493 : vector<8x1xf32>
    %495 = math.rsqrt %494 : vector<8x1xf32>
    %496 = vector.broadcast %495 : vector<8x1xf32> to vector<8x128xf32>
    %497 = arith.mulf %487, %496 : vector<8x128xf32>
    %498 = vector.broadcast %477 : vector<1x128xf32> to vector<8x128xf32>
    %499 = arith.mulf %497, %498 : vector<8x128xf32>
    %500 = vector.broadcast %479 : vector<1x128xf32> to vector<8x128xf32>
    %501 = arith.addf %499, %500 : vector<8x128xf32>
    %502 = arith.truncf %501 : vector<8x128xf32> to vector<8x128xbf16>
    %c3_235 = arith.constant 3 : index
    %c0_236 = arith.constant 0 : index
    %c0_237 = arith.constant 0 : index
    %503 = vector.load %arg10[%c3_235, %c0_236, %c0_237] : memref<4x128x128xbf16, #tpu.memory_space<vmem>>, vector<1x128x128xbf16>
    %504 = vector.shape_cast %503 : vector<1x128x128xbf16> to vector<128x128xbf16>
    %cst_238 = arith.constant dense<0.000000e+00> : vector<8x128xf32>
    %505 = tpu.matmul %502, %504, %cst_238 {dimension_numbers = #tpu.dot_dimension_numbers<[1], [0], [0], [1], [0, 0, 1, 1], [], []>} : vector<8x128xbf16>, vector<128x128xbf16>, vector<8x128xf32> -> vector<8x128xf32>
    %c3_239 = arith.constant 3 : index
    %c0_240 = arith.constant 0 : index
    %c0_241 = arith.constant 0 : index
    %506 = vector.load %arg11[%c3_239, %c0_240, %c0_241] : memref<4x1x128xf32, #tpu.memory_space<vmem>>, vector<1x1x128xf32>
    %507 = vector.shape_cast %506 : vector<1x1x128xf32> to vector<1x128xf32>
    %508 = vector.broadcast %507 : vector<1x128xf32> to vector<8x128xf32>
    %509 = arith.addf %505, %508 : vector<8x128xf32>
    %cst_242 = arith.constant 0.000000e+00 : f32
    %510 = vector.broadcast %cst_242 : f32 to vector<8x128xf32>
    %511 = arith.maximumf %509, %510 : vector<8x128xf32>
    %512 = arith.truncf %511 : vector<8x128xf32> to vector<8x128xbf16>
    %c3_243 = arith.constant 3 : index
    %c0_244 = arith.constant 0 : index
    %c0_245 = arith.constant 0 : index
    %513 = vector.load %arg12[%c3_243, %c0_244, %c0_245] : memref<4x128x128xbf16, #tpu.memory_space<vmem>>, vector<1x128x128xbf16>
    %514 = vector.shape_cast %513 : vector<1x128x128xbf16> to vector<128x128xbf16>
    %cst_246 = arith.constant dense<0.000000e+00> : vector<8x128xf32>
    %515 = tpu.matmul %512, %514, %cst_246 {dimension_numbers = #tpu.dot_dimension_numbers<[1], [0], [0], [1], [0, 0, 1, 1], [], []>} : vector<8x128xbf16>, vector<128x128xbf16>, vector<8x128xf32> -> vector<8x128xf32>
    %c3_247 = arith.constant 3 : index
    %c0_248 = arith.constant 0 : index
    %c0_249 = arith.constant 0 : index
    %516 = vector.load %arg13[%c3_247, %c0_248, %c0_249] : memref<4x1x128xf32, #tpu.memory_space<vmem>>, vector<1x1x128xf32>
    %517 = vector.shape_cast %516 : vector<1x1x128xf32> to vector<1x128xf32>
    %518 = vector.broadcast %517 : vector<1x128xf32> to vector<8x128xf32>
    %519 = arith.addf %515, %518 : vector<8x128xf32>
    %520 = arith.addf %501, %519 : vector<8x128xf32>
    %c3_250 = arith.constant 3 : index
    %c0_251 = arith.constant 0 : index
    %c0_252 = arith.constant 0 : index
    %521 = vector.load %arg16[%c3_250, %c0_251, %c0_252] : memref<4x1x128xf32, #tpu.memory_space<vmem>>, vector<1x1x128xf32>
    %522 = vector.shape_cast %521 : vector<1x1x128xf32> to vector<1x128xf32>
    %c3_253 = arith.constant 3 : index
    %c0_254 = arith.constant 0 : index
    %c0_255 = arith.constant 0 : index
    %523 = vector.load %arg17[%c3_253, %c0_254, %c0_255] : memref<4x1x128xf32, #tpu.memory_space<vmem>>, vector<1x1x128xf32>
    %524 = vector.shape_cast %523 : vector<1x1x128xf32> to vector<1x128xf32>
    %cst_256 = arith.constant dense<0.000000e+00> : vector<8xf32>
    %525 = vector.multi_reduction <add>, %520, %cst_256 [1] : vector<8x128xf32> to vector<8xf32>
    %526 = vector.shape_cast %525 : vector<8xf32> to vector<8x1xf32>
    %cst_257 = arith.constant 0.0178571437 : f32
    %527 = vector.broadcast %cst_257 : f32 to vector<8x1xf32>
    %528 = arith.mulf %526, %527 : vector<8x1xf32>
    %529 = vector.broadcast %528 : vector<8x1xf32> to vector<8x128xf32>
    %530 = arith.subf %520, %529 : vector<8x128xf32>
    %cst_258 = arith.constant 0.000000e+00 : f32
    %531 = vector.broadcast %cst_258 : f32 to vector<8x128xf32>
    %532 = arith.select %284, %530, %531 : vector<8x128xi1>, vector<8x128xf32>
    %533 = arith.mulf %532, %532 : vector<8x128xf32>
    %cst_259 = arith.constant dense<0.000000e+00> : vector<8xf32>
    %534 = vector.multi_reduction <add>, %533, %cst_259 [1] : vector<8x128xf32> to vector<8xf32>
    %535 = vector.shape_cast %534 : vector<8xf32> to vector<8x1xf32>
    %cst_260 = arith.constant 0.0178571437 : f32
    %536 = vector.broadcast %cst_260 : f32 to vector<8x1xf32>
    %537 = arith.mulf %535, %536 : vector<8x1xf32>
    %cst_261 = arith.constant 9.99999974E-6 : f32
    %538 = vector.broadcast %cst_261 : f32 to vector<8x1xf32>
    %539 = arith.addf %537, %538 : vector<8x1xf32>
    %540 = math.rsqrt %539 : vector<8x1xf32>
    %541 = vector.broadcast %540 : vector<8x1xf32> to vector<8x128xf32>
    %542 = arith.mulf %532, %541 : vector<8x128xf32>
    %543 = vector.broadcast %522 : vector<1x128xf32> to vector<8x128xf32>
    %544 = arith.mulf %542, %543 : vector<8x128xf32>
    %545 = vector.broadcast %524 : vector<1x128xf32> to vector<8x128xf32>
    %546 = arith.addf %544, %545 : vector<8x128xf32>
    %547 = tpu.concatenate %275, %546 in 1 : vector<8x128xf32>, vector<8x128xf32> -> vector<8x256xf32>
    %548 = arith.truncf %547 : vector<8x256xf32> to vector<8x256xbf16>
    %c0_262 = arith.constant 0 : index
    %c0_263 = arith.constant 0 : index
    %549 = vector.load %arg18[%c0_262, %c0_263] : memref<256x128xbf16, #tpu.memory_space<vmem>>, vector<256x128xbf16>
    %cst_264 = arith.constant dense<0.000000e+00> : vector<8x128xf32>
    %550 = tpu.matmul %548, %549, %cst_264 {dimension_numbers = #tpu.dot_dimension_numbers<[1], [0], [0], [1], [0, 0, 1, 1], [], []>} : vector<8x256xbf16>, vector<256x128xbf16>, vector<8x128xf32> -> vector<8x128xf32>
    %c0_265 = arith.constant 0 : index
    %c0_266 = arith.constant 0 : index
    %c0_267 = arith.constant 0 : index
    %551 = vector.load %arg20[%c0_265, %c0_266, %c0_267] : memref<2x1x128xf32, #tpu.memory_space<vmem>>, vector<1x1x128xf32>
    %552 = vector.shape_cast %551 : vector<1x1x128xf32> to vector<1x128xf32>
    %553 = vector.broadcast %552 : vector<1x128xf32> to vector<8x128xf32>
    %554 = arith.addf %550, %553 : vector<8x128xf32>
    %555 = math.tanh %554 : vector<8x128xf32>
    %556 = arith.truncf %555 : vector<8x128xf32> to vector<8x128xbf16>
    %c0_268 = arith.constant 0 : index
    %c0_269 = arith.constant 0 : index
    %c0_270 = arith.constant 0 : index
    %557 = vector.load %arg19[%c0_268, %c0_269, %c0_270] : memref<1x128x128xbf16, #tpu.memory_space<vmem>>, vector<1x128x128xbf16>
    %558 = vector.shape_cast %557 : vector<1x128x128xbf16> to vector<128x128xbf16>
    %cst_271 = arith.constant dense<0.000000e+00> : vector<8x128xf32>
    %559 = tpu.matmul %556, %558, %cst_271 {dimension_numbers = #tpu.dot_dimension_numbers<[1], [0], [0], [1], [0, 0, 1, 1], [], []>} : vector<8x128xbf16>, vector<128x128xbf16>, vector<8x128xf32> -> vector<8x128xf32>
    %c1_272 = arith.constant 1 : index
    %c0_273 = arith.constant 0 : index
    %c0_274 = arith.constant 0 : index
    %560 = vector.load %arg20[%c1_272, %c0_273, %c0_274] : memref<2x1x128xf32, #tpu.memory_space<vmem>>, vector<1x1x128xf32>
    %561 = vector.shape_cast %560 : vector<1x1x128xf32> to vector<1x128xf32>
    %562 = vector.broadcast %561 : vector<1x128xf32> to vector<8x128xf32>
    %563 = arith.addf %559, %562 : vector<8x128xf32>
    %c0_275 = arith.constant 0 : index
    %c0_276 = arith.constant 0 : index
    %564 = vector.load %arg21[%c0_275, %c0_276] : memref<8x128xf32, #tpu.memory_space<vmem>>, vector<8x128xf32>
    tpu.vector_store %arg21[%c0_275, %c0_276], %563 {strides = array<i32>} : memref<8x128xf32, #tpu.memory_space<vmem>>, vector<8x128xf32>,
    return
  }
  func.func @transform_0(%arg0: i32) -> (i32, i32) {
    %c0_i32 = arith.constant 0 : i32
    %c0_i32_0 = arith.constant 0 : i32
    %c0_i32_1 = arith.constant 0 : i32
    return %c0_i32, %c0_i32_0 : i32, i32
  }
  func.func @transform_1(%arg0: i32) -> (i32, i32) {
    %c0_i32 = arith.constant 0 : i32
    %c0_i32_0 = arith.constant 0 : i32
    %c0_i32_1 = arith.constant 0 : i32
    return %c0_i32, %c0_i32_0 : i32, i32
  }
  func.func @transform_2(%arg0: i32) -> (i32, i32) {
    %c0_i32 = arith.constant 0 : i32
    %c0_i32_0 = arith.constant 0 : i32
    %c0_i32_1 = arith.constant 0 : i32
    return %c0_i32, %c0_i32_0 : i32, i32
  }
  func.func @transform_3(%arg0: i32) -> (i32, i32) {
    %c0_i32 = arith.constant 0 : i32
    %c0_i32_0 = arith.constant 0 : i32
    %c0_i32_1 = arith.constant 0 : i32
    return %c0_i32, %c0_i32_0 : i32, i32
  }
  func.func @transform_4(%arg0: i32) -> (i32, i32, i32) {
    %c0_i32 = arith.constant 0 : i32
    %c0_i32_0 = arith.constant 0 : i32
    %c0_i32_1 = arith.constant 0 : i32
    %c0_i32_2 = arith.constant 0 : i32
    return %c0_i32, %c0_i32_0, %c0_i32_1 : i32, i32, i32
  }
  func.func @transform_5(%arg0: i32) -> (i32, i32, i32) {
    %c0_i32 = arith.constant 0 : i32
    %c0_i32_0 = arith.constant 0 : i32
    %c0_i32_1 = arith.constant 0 : i32
    %c0_i32_2 = arith.constant 0 : i32
    return %c0_i32, %c0_i32_0, %c0_i32_1 : i32, i32, i32
  }
  func.func @transform_6(%arg0: i32) -> (i32, i32, i32) {
    %c0_i32 = arith.constant 0 : i32
    %c0_i32_0 = arith.constant 0 : i32
    %c0_i32_1 = arith.constant 0 : i32
    %c0_i32_2 = arith.constant 0 : i32
    return %c0_i32, %c0_i32_0, %c0_i32_1 : i32, i32, i32
  }
  func.func @transform_7(%arg0: i32) -> (i32, i32, i32) {
    %c0_i32 = arith.constant 0 : i32
    %c0_i32_0 = arith.constant 0 : i32
    %c0_i32_1 = arith.constant 0 : i32
    %c0_i32_2 = arith.constant 0 : i32
    return %c0_i32, %c0_i32_0, %c0_i32_1 : i32, i32, i32
  }
  func.func @transform_8(%arg0: i32) -> (i32, i32, i32) {
    %c0_i32 = arith.constant 0 : i32
    %c0_i32_0 = arith.constant 0 : i32
    %c0_i32_1 = arith.constant 0 : i32
    %c0_i32_2 = arith.constant 0 : i32
    return %c0_i32, %c0_i32_0, %c0_i32_1 : i32, i32, i32
  }
  func.func @transform_9(%arg0: i32) -> (i32, i32, i32) {
    %c0_i32 = arith.constant 0 : i32
    %c0_i32_0 = arith.constant 0 : i32
    %c0_i32_1 = arith.constant 0 : i32
    %c0_i32_2 = arith.constant 0 : i32
    return %c0_i32, %c0_i32_0, %c0_i32_1 : i32, i32, i32
  }
  func.func @transform_10(%arg0: i32) -> (i32, i32, i32) {
    %c0_i32 = arith.constant 0 : i32
    %c0_i32_0 = arith.constant 0 : i32
    %c0_i32_1 = arith.constant 0 : i32
    %c0_i32_2 = arith.constant 0 : i32
    return %c0_i32, %c0_i32_0, %c0_i32_1 : i32, i32, i32
  }
  func.func @transform_11(%arg0: i32) -> (i32, i32, i32) {
    %c0_i32 = arith.constant 0 : i32
    %c0_i32_0 = arith.constant 0 : i32
    %c0_i32_1 = arith.constant 0 : i32
    %c0_i32_2 = arith.constant 0 : i32
    return %c0_i32, %c0_i32_0, %c0_i32_1 : i32, i32, i32
  }
  func.func @transform_12(%arg0: i32) -> (i32, i32, i32) {
    %c0_i32 = arith.constant 0 : i32
    %c0_i32_0 = arith.constant 0 : i32
    %c0_i32_1 = arith.constant 0 : i32
    %c0_i32_2 = arith.constant 0 : i32
    return %c0_i32, %c0_i32_0, %c0_i32_1 : i32, i32, i32
  }
  func.func @transform_13(%arg0: i32) -> (i32, i32, i32) {
    %c0_i32 = arith.constant 0 : i32
    %c0_i32_0 = arith.constant 0 : i32
    %c0_i32_1 = arith.constant 0 : i32
    %c0_i32_2 = arith.constant 0 : i32
    return %c0_i32, %c0_i32_0, %c0_i32_1 : i32, i32, i32
  }
  func.func @transform_14(%arg0: i32) -> (i32, i32, i32) {
    %c0_i32 = arith.constant 0 : i32
    %c0_i32_0 = arith.constant 0 : i32
    %c0_i32_1 = arith.constant 0 : i32
    %c0_i32_2 = arith.constant 0 : i32
    return %c0_i32, %c0_i32_0, %c0_i32_1 : i32, i32, i32
  }
  func.func @transform_15(%arg0: i32) -> (i32, i32, i32) {
    %c0_i32 = arith.constant 0 : i32
    %c0_i32_0 = arith.constant 0 : i32
    %c0_i32_1 = arith.constant 0 : i32
    %c0_i32_2 = arith.constant 0 : i32
    return %c0_i32, %c0_i32_0, %c0_i32_1 : i32, i32, i32
  }
  func.func @transform_16(%arg0: i32) -> (i32, i32, i32) {
    %c0_i32 = arith.constant 0 : i32
    %c0_i32_0 = arith.constant 0 : i32
    %c0_i32_1 = arith.constant 0 : i32
    %c0_i32_2 = arith.constant 0 : i32
    return %c0_i32, %c0_i32_0, %c0_i32_1 : i32, i32, i32
  }
  func.func @transform_17(%arg0: i32) -> (i32, i32) {
    %c0_i32 = arith.constant 0 : i32
    %c0_i32_0 = arith.constant 0 : i32
    %c0_i32_1 = arith.constant 0 : i32
    return %c0_i32, %c0_i32_0 : i32, i32
  }
  func.func @transform_18(%arg0: i32) -> (i32, i32, i32) {
    %c0_i32 = arith.constant 0 : i32
    %c0_i32_0 = arith.constant 0 : i32
    %c0_i32_1 = arith.constant 0 : i32
    %c0_i32_2 = arith.constant 0 : i32
    return %c0_i32, %c0_i32_0, %c0_i32_1 : i32, i32, i32
  }
  func.func @transform_19(%arg0: i32) -> (i32, i32, i32) {
    %c0_i32 = arith.constant 0 : i32
    %c0_i32_0 = arith.constant 0 : i32
    %c0_i32_1 = arith.constant 0 : i32
    %c0_i32_2 = arith.constant 0 : i32
    return %c0_i32, %c0_i32_0, %c0_i32_1 : i32, i32, i32
  }
  func.func @transform_20(%arg0: i32) -> (i32, i32) {
    %c0_i32 = arith.constant 0 : i32
    %c0_i32_0 = arith.constant 0 : i32
    %c0_i32_1 = arith.constant 0 : i32
    return %c0_i32, %c0_i32_0 : i32, i32
  }
}

</mosaic_0001>

<llo_original>
// kernel: tpu_custom_call.1
$region0: #{tpu_custom_call.1}
  #allocation0 [shape = 'u32[]', space=smem, size = 0x4, offset = 0x4, fixed_abs, tag = 'smem constant byte address 0x4 - core index']
  #allocation1 [shape = 'u32[144,128]{1,0:T(1,128)}', space=vmem, size = 0x12000, scoped, tag = 'internal scratch']
  %s0 = inlined_call_operand.hbm [shape: f32[8,128], index: 0, kind: input, shape index: {}]
  %s1 = inlined_call_operand.hbm [shape: f32[8,128], index: 1, kind: input, shape index: {}]
  %s2 = inlined_call_operand.hbm [shape: f32[8,128], index: 2, kind: input, shape index: {}]
  %s3 = inlined_call_operand.hbm [shape: bf16[128,256], index: 3, kind: input, shape index: {}]
  %s4 = inlined_call_operand.hbm [shape: f32[2,1,128], index: 4, kind: input, shape index: {}]
  %s5 = inlined_call_operand.hbm [shape: bf16[4,128,768], index: 5, kind: input, shape index: {}]
  %s6 = inlined_call_operand.hbm [shape: f32[4,1,768], index: 6, kind: input, shape index: {}]
  %s7 = inlined_call_operand.hbm [shape: bf16[4,256,128], index: 7, kind: input, shape index: {}]
  %s8 = inlined_call_operand.vmem [shape: f32[4,1,128], index: 8, kind: input, shape index: {}]
  %s9 = inlined_call_operand.hbm [shape: bf16[4,128,128], index: 9, kind: input, shape index: {}]
  %s10 = inlined_call_operand.hbm [shape: f32[4,1,128], index: 10, kind: input, shape index: {}]
  %s11 = inlined_call_operand.hbm [shape: bf16[4,128,128], index: 11, kind: input, shape index: {}]
  %s12 = inlined_call_operand.hbm [shape: f32[4,1,128], index: 12, kind: input, shape index: {}]
  %s13 = inlined_call_operand.hbm [shape: f32[4,1,128], index: 13, kind: input, shape index: {}]
  %s14 = inlined_call_operand.hbm [shape: f32[4,1,128], index: 14, kind: input, shape index: {}]
  %s15 = inlined_call_operand.hbm [shape: f32[4,1,128], index: 15, kind: input, shape index: {}]
  %s16 = inlined_call_operand.hbm [shape: f32[4,1,128], index: 16, kind: input, shape index: {}]
  %s17 = inlined_call_operand.hbm [shape: bf16[256,128], index: 17, kind: input, shape index: {}]
  %s18 = inlined_call_operand.vmem [shape: bf16[1,128,128], index: 18, kind: input, shape index: {}]
  %s19 = inlined_call_operand.vmem [shape: f32[2,1,128], index: 19, kind: input, shape index: {}]
  %s20 = inlined_call_operand.hbm [shape: f32[8,128], index: 20, kind: output, shape index: {}]
  %s21 = sld [smem:[#allocation0]]
  $region158: #{tpu_custom_call.1} parent=0
    _
  %s23 = ssub.s32 1, %s21
  %s24 = scalar_select 0, %s23, %s21
  $region1: #{tpu_custom_call.1} parent=0
    #allocation2 [shape = 'u8[4096]{0}', space=vmem, size = 0x1000, scoped, tag = 'input window, operand 0, single buffered']
    #allocation3 [shape = 's32[1]{0}', space=sflag, size = 0x4, scoped, tag = 'scoped memory for tpu_custom_call.1']
    #allocation4 [shape = 's32[1]{0}', space=sflag, size = 0x4, scoped, tag = 'scoped memory for tpu_custom_call.1']
    #allocation5 [shape = 'u8[4096]{0}', space=vmem, size = 0x1000, scoped, tag = 'input window, operand 1, single buffered']
    #allocation6 [shape = 's32[1]{0}', space=sflag, size = 0x4, scoped, tag = 'scoped memory for tpu_custom_call.1']
    #allocation7 [shape = 'u8[4096]{0}', space=vmem, size = 0x1000, scoped, tag = 'input window, operand 2, single buffered']
    #allocation8 [shape = 'u8[65536]{0}', space=vmem, size = 0x10000, scoped, tag = 'input window, operand 3, single buffered']
    #allocation9 [shape = 's32[1]{0}', space=sflag, size = 0x4, scoped, tag = 'scoped memory for tpu_custom_call.1']
    #allocation10 [shape = 'u8[1024]{0}', space=vmem, size = 0x400, scoped, tag = 'input window, operand 4, single buffered']
    #allocation11 [shape = 'u8[786432]{0}', space=vmem, size = 0xc0000, scoped, tag = 'input window, operand 5, single buffered']
    #allocation12 [shape = 's32[1]{0}', space=sflag, size = 0x4, scoped, tag = 'scoped memory for tpu_custom_call.1']
    #allocation13 [shape = 'u8[12288]{0}', space=vmem, size = 0x3000, scoped, tag = 'input window, operand 6, single buffered']
    #allocation14 [shape = 'u8[262144]{0}', space=vmem, size = 0x40000, scoped, tag = 'input window, operand 7, single buffered']
    #allocation15 [shape = 's32[1]{0}', space=sflag, size = 0x4, scoped, tag = 'scoped memory for tpu_custom_call.1']
    #allocation16 [shape = 'u8[131072]{0}', space=vmem, size = 0x20000, scoped, tag = 'input window, operand 9, single buffered']
    #allocation17 [shape = 'u8[2048]{0}', space=vmem, size = 0x800, scoped, tag = 'input window, operand 10, single buffered']
    #allocation18 [shape = 's32[1]{0}', space=sflag, size = 0x4, scoped, tag = 'scoped memory for tpu_custom_call.1']
    #allocation19 [shape = 'u8[131072]{0}', space=vmem, size = 0x20000, scoped, tag = 'input window, operand 11, single buffered']
    #allocation20 [shape = 'u8[2048]{0}', space=vmem, size = 0x800, scoped, tag = 'input window, operand 12, single buffered']
    #allocation21 [shape = 's32[1]{0}', space=sflag, size = 0x4, scoped, tag = 'scoped memory for tpu_custom_call.1']
    #allocation22 [shape = 'u8[2048]{0}', space=vmem, size = 0x800, scoped, tag = 'input window, operand 13, single buffered']
    #allocation23 [shape = 'u8[2048]{0}', space=vmem, size = 0x800, scoped, tag = 'input window, operand 14, single buffered']
    #allocation24 [shape = 's32[1]{0}', space=sflag, size = 0x4, scoped, tag = 'scoped memory for tpu_custom_call.1']
    #allocation25 [shape = 'u8[2048]{0}', space=vmem, size = 0x800, scoped, tag = 'input window, operand 15, single buffered']
    #allocation26 [shape = 'u8[2048]{0}', space=vmem, size = 0x800, scoped, tag = 'input window, operand 16, single buffered']
    #allocation27 [shape = 's32[1]{0}', space=sflag, size = 0x4, scoped, tag = 'scoped memory for tpu_custom_call.1']
    #allocation28 [shape = 'u8[65536]{0}', space=vmem, size = 0x10000, scoped, tag = 'input window, operand 17, single buffered']
    #allocation29 [shape = 'u8[4096]{0}', space=vmem, size = 0x1000, scoped, tag = 'output window, operand 0, single buffered']
    %25 = vsyncpa [#allocation3], 0
    %26 = vsyncpa [#allocation6], 0
    %27 = vsyncpa [#allocation9], 0
    %28 = vsyncpa [#allocation12], 0
    %29 = vsyncpa [#allocation15], 0
    %30 = vsyncpa [#allocation18], 0
    %31 = vsyncpa [#allocation21], 0
    %32 = vsyncpa [#allocation24], 0
    %33 = vsyncpa [#allocation27], 0
    %34 = vsyncpa [#allocation4], 0
    // Predicated region
    $region2: #{tpu_custom_call.1} parent=1 // pred_check
      _
    $region3: #{tpu_custom_call.1} parent=1 // pred_check_branch
      %36 = sbr.rel (0) target = $region5
    $region4: #{tpu_custom_call.1} parent=1 // pred_region
      %s38 = ssub.s32 128, 128
      %39 = vsyncadd [#allocation3], %s38
      %s41 = sshll.u32 [#allocation2], 4
      %s42 = int_to_ptr.vmem [resolvable:$true] %s41
      %44 = dma.hbm_to_vmem [thread:$0]  %s0, 128, %s42, [#allocation3]
    $region5: #{tpu_custom_call.1} parent=1 // pred_fallthru
      _
    // Predicated region
    $region6: #{tpu_custom_call.1} parent=1 // pred_check
      _
    $region7: #{tpu_custom_call.1} parent=1 // pred_check_branch
      %46 = sbr.rel (0) target = $region9
    $region8: #{tpu_custom_call.1} parent=1 // pred_region
      %s48 = ssub.s32 128, 128
      %49 = vsyncadd [#allocation6], %s48
      %s51 = sshll.u32 [#allocation5], 4
      %s52 = int_to_ptr.vmem [resolvable:$true] %s51
      %54 = dma.hbm_to_vmem [thread:$0]  %s1, 128, %s52, [#allocation6]
    $region9: #{tpu_custom_call.1} parent=1 // pred_fallthru
      _
    // Predicated region
    $region10: #{tpu_custom_call.1} parent=1 // pred_check
      _
    $region11: #{tpu_custom_call.1} parent=1 // pred_check_branch
      %56 = sbr.rel (0) target = $region13
    $region12: #{tpu_custom_call.1} parent=1 // pred_region
      %s58 = ssub.s32 128, 128
      %59 = vsyncadd [#allocation6], %s58
      %s61 = sshll.u32 [#allocation7], 4
      %s62 = int_to_ptr.vmem [resolvable:$true] %s61
      %64 = dma.hbm_to_vmem [thread:$0]  %s2, 128, %s62, [#allocation6]
    $region13: #{tpu_custom_call.1} parent=1 // pred_fallthru
      _
    // Predicated region
    $region14: #{tpu_custom_call.1} parent=1 // pred_check
      _
    $region15: #{tpu_custom_call.1} parent=1 // pred_check_branch
      %66 = sbr.rel (0) target = $region17
    $region16: #{tpu_custom_call.1} parent=1 // pred_region
      %s68 = ssub.s32 2048, 2048
      %69 = vsyncadd [#allocation9], %s68
      %s70 = sshll.u32 [#allocation8], 4
      %s71 = int_to_ptr.vmem [resolvable:$true] %s70
      %76 = dma.hbm_to_vmem [thread:$0]  %s3, 2048, %s71, [#allocation9], 128, 128, 8
    $region17: #{tpu_custom_call.1} parent=1 // pred_fallthru
      _
    // Predicated region
    $region18: #{tpu_custom_call.1} parent=1 // pred_check
      _
    $region19: #{tpu_custom_call.1} parent=1 // pred_check_branch
      %78 = sbr.rel (0) target = $region21
    $region20: #{tpu_custom_call.1} parent=1 // pred_region
      %s80 = ssub.s32 32, 32
      %81 = vsyncadd [#allocation9], %s80
      %s82 = sshll.u32 [#allocation10], 4
      %s83 = int_to_ptr.vmem [resolvable:$true] %s82
      %88 = dma.hbm_to_vmem [thread:$0]  %s4, 32, %s83, [#allocation9], 16, 16, 1
    $region21: #{tpu_custom_call.1} parent=1 // pred_fallthru
      _
    // Predicated region
    $region22: #{tpu_custom_call.1} parent=1 // pred_check
      _
    $region23: #{tpu_custom_call.1} parent=1 // pred_check_branch
      %90 = sbr.rel (0) target = $region25
    $region24: #{tpu_custom_call.1} parent=1 // pred_region
      %s92 = ssub.s32 24576, 24576
      %93 = vsyncadd [#allocation12], %s92
      %s94 = sshll.u32 [#allocation11], 4
      %s95 = int_to_ptr.vmem [resolvable:$true] %s94
      %100 = dma.hbm_to_vmem [thread:$0]  %s5, 24576, %s95, [#allocation12], 384, 384, 24
    $region25: #{tpu_custom_call.1} parent=1 // pred_fallthru
      _
    // Predicated region
    $region26: #{tpu_custom_call.1} parent=1 // pred_check
      _
    $region27: #{tpu_custom_call.1} parent=1 // pred_check_branch
      %102 = sbr.rel (0) target = $region29
    $region28: #{tpu_custom_call.1} parent=1 // pred_region
      %s104 = ssub.s32 384, 384
      %105 = vsyncadd [#allocation12], %s104
      %s106 = sshll.u32 [#allocation13], 4
      %s107 = int_to_ptr.vmem [resolvable:$true] %s106
      %112 = dma.hbm_to_vmem [thread:$0]  %s6, 384, %s107, [#allocation12], 96, 96, 6
    $region29: #{tpu_custom_call.1} parent=1 // pred_fallthru
      _
    // Predicated region
    $region30: #{tpu_custom_call.1} parent=1 // pred_check
      _
    $region31: #{tpu_custom_call.1} parent=1 // pred_check_branch
      %114 = sbr.rel (0) target = $region33
    $region32: #{tpu_custom_call.1} parent=1 // pred_region
      %s116 = ssub.s32 8192, 8192
      %117 = vsyncadd [#allocation15], %s116
      %s118 = sshll.u32 [#allocation14], 4
      %s119 = int_to_ptr.vmem [resolvable:$true] %s118
      %124 = dma.hbm_to_vmem [thread:$0]  %s7, 8192, %s119, [#allocation15], 64, 64, 4
    $region33: #{tpu_custom_call.1} parent=1 // pred_fallthru
      _
    // Predicated region
    $region34: #{tpu_custom_call.1} parent=1 // pred_check
      _
    $region35: #{tpu_custom_call.1} parent=1 // pred_check_branch
      %126 = sbr.rel (0) target = $region37
    $region36: #{tpu_custom_call.1} parent=1 // pred_region
      _
    $region37: #{tpu_custom_call.1} parent=1 // pred_fallthru
      _
    // Predicated region
    $region38: #{tpu_custom_call.1} parent=1 // pred_check
      _
    $region39: #{tpu_custom_call.1} parent=1 // pred_check_branch
      %128 = sbr.rel (0) target = $region41
    $region40: #{tpu_custom_call.1} parent=1 // pred_region
      %s130 = ssub.s32 4096, 4096
      %131 = vsyncadd [#allocation15], %s130
      %s132 = sshll.u32 [#allocation16], 4
      %s133 = int_to_ptr.vmem [resolvable:$true] %s132
      %138 = dma.hbm_to_vmem [thread:$0]  %s9, 4096, %s133, [#allocation15], 64, 64, 4
    $region41: #{tpu_custom_call.1} parent=1 // pred_fallthru
      _
    // Predicated region
    $region42: #{tpu_custom_call.1} parent=1 // pred_check
      _
    $region43: #{tpu_custom_call.1} parent=1 // pred_check_branch
      %140 = sbr.rel (0) target = $region45
    $region44: #{tpu_custom_call.1} parent=1 // pred_region
      %s142 = ssub.s32 64, 64
      %143 = vsyncadd [#allocation18], %s142
      %s144 = sshll.u32 [#allocation17], 4
      %s145 = int_to_ptr.vmem [resolvable:$true] %s144
      %150 = dma.hbm_to_vmem [thread:$0]  %s10, 64, %s145, [#allocation18], 16, 16, 1
    $region45: #{tpu_custom_call.1} parent=1 // pred_fallthru
      _
    // Predicated region
    $region46: #{tpu_custom_call.1} parent=1 // pred_check
      _
    $region47: #{tpu_custom_call.1} parent=1 // pred_check_branch
      %152 = sbr.rel (0) target = $region49
    $region48: #{tpu_custom_call.1} parent=1 // pred_region
      %s154 = ssub.s32 4096, 4096
      %155 = vsyncadd [#allocation18], %s154
      %s156 = sshll.u32 [#allocation19], 4
      %s157 = int_to_ptr.vmem [resolvable:$true] %s156
      %162 = dma.hbm_to_vmem [thread:$0]  %s11, 4096, %s157, [#allocation18], 64, 64, 4
    $region49: #{tpu_custom_call.1} parent=1 // pred_fallthru
      _
    // Predicated region
    $region50: #{tpu_custom_call.1} parent=1 // pred_check
      _
    $region51: #{tpu_custom_call.1} parent=1 // pred_check_branch
      %164 = sbr.rel (0) target = $region53
    $region52: #{tpu_custom_call.1} parent=1 // pred_region
      %s166 = ssub.s32 64, 64
      %167 = vsyncadd [#allocation21], %s166
      %s168 = sshll.u32 [#allocation20], 4
      %s169 = int_to_ptr.vmem [resolvable:$true] %s168
      %174 = dma.hbm_to_vmem [thread:$0]  %s12, 64, %s169, [#allocation21], 16, 16, 1
    $region53: #{tpu_custom_call.1} parent=1 // pred_fallthru
      _
    // Predicated region
    $region54: #{tpu_custom_call.1} parent=1 // pred_check
      _
    $region55: #{tpu_custom_call.1} parent=1 // pred_check_branch
      %176 = sbr.rel (0) target = $region57
    $region56: #{tpu_custom_call.1} parent=1 // pred_region
      %s178 = ssub.s32 64, 64
      %179 = vsyncadd [#allocation21], %s178
      %s180 = sshll.u32 [#allocation22], 4
      %s181 = int_to_ptr.vmem [resolvable:$true] %s180
      %186 = dma.hbm_to_vmem [thread:$0]  %s13, 64, %s181, [#allocation21], 16, 16, 1
    $region57: #{tpu_custom_call.1} parent=1 // pred_fallthru
      _
    // Predicated region
    $region58: #{tpu_custom_call.1} parent=1 // pred_check
      _
    $region59: #{tpu_custom_call.1} parent=1 // pred_check_branch
      %188 = sbr.rel (0) target = $region61
    $region60: #{tpu_custom_call.1} parent=1 // pred_region
      %s190 = ssub.s32 64, 64
      %191 = vsyncadd [#allocation24], %s190
      %s192 = sshll.u32 [#allocation23], 4
      %s193 = int_to_ptr.vmem [resolvable:$true] %s192
      %198 = dma.hbm_to_vmem [thread:$0]  %s14, 64, %s193, [#allocation24], 16, 16, 1
    $region61: #{tpu_custom_call.1} parent=1 // pred_fallthru
      _
    // Predicated region
    $region62: #{tpu_custom_call.1} parent=1 // pred_check
      _
    $region63: #{tpu_custom_call.1} parent=1 // pred_check_branch
      %200 = sbr.rel (0) target = $region65
    $region64: #{tpu_custom_call.1} parent=1 // pred_region
      %s202 = ssub.s32 64, 64
      %203 = vsyncadd [#allocation24], %s202
      %s204 = sshll.u32 [#allocation25], 4
      %s205 = int_to_ptr.vmem [resolvable:$true] %s204
      %210 = dma.hbm_to_vmem [thread:$0]  %s15, 64, %s205, [#allocation24], 16, 16, 1
    $region65: #{tpu_custom_call.1} parent=1 // pred_fallthru
      _
    // Predicated region
    $region66: #{tpu_custom_call.1} parent=1 // pred_check
      _
    $region67: #{tpu_custom_call.1} parent=1 // pred_check_branch
      %212 = sbr.rel (0) target = $region69
    $region68: #{tpu_custom_call.1} parent=1 // pred_region
      %s214 = ssub.s32 64, 64
      %215 = vsyncadd [#allocation27], %s214
      %s216 = sshll.u32 [#allocation26], 4
      %s217 = int_to_ptr.vmem [resolvable:$true] %s216
      %222 = dma.hbm_to_vmem [thread:$0]  %s16, 64, %s217, [#allocation27], 16, 16, 1
    $region69: #{tpu_custom_call.1} parent=1 // pred_fallthru
      _
    // Predicated region
    $region70: #{tpu_custom_call.1} parent=1 // pred_check
      _
    $region71: #{tpu_custom_call.1} parent=1 // pred_check_branch
      %224 = sbr.rel (0) target = $region73
    $region72: #{tpu_custom_call.1} parent=1 // pred_region
      %s226 = ssub.s32 2048, 2048
      %227 = vsyncadd [#allocation27], %s226
      %s228 = sshll.u32 [#allocation28], 4
      %s229 = int_to_ptr.vmem [resolvable:$true] %s228
      %234 = dma.hbm_to_vmem [thread:$0]  %s17, 2048, %s229, [#allocation27], 64, 64, 4
    $region73: #{tpu_custom_call.1} parent=1 // pred_fallthru
      _
    // Predicated region
    $region74: #{tpu_custom_call.1} parent=1 // pred_check
      _
    $region75: #{tpu_custom_call.1} parent=1 // pred_check_branch
      %236 = sbr.rel (0) target = $region77
    $region76: #{tpu_custom_call.1} parent=1 // pred_region
      _
    $region77: #{tpu_custom_call.1} parent=1 // pred_fallthru
      _
    // Predicated region
    $region78: #{tpu_custom_call.1} parent=1 // pred_check
      _
    $region79: #{tpu_custom_call.1} parent=1 // pred_check_branch
      %238 = sbr.rel (0) target = $region81
    $region80: #{tpu_custom_call.1} parent=1 // pred_region
      _
    $region81: #{tpu_custom_call.1} parent=1 // pred_fallthru
      _
    // Predicated region
    $region82: #{tpu_custom_call.1} parent=1 // pred_check
      _
    $region83: #{tpu_custom_call.1} parent=1 // pred_check_branch
      %240 = sbr.rel (0) target = $region85
    $region84: #{tpu_custom_call.1} parent=1 // pred_region
      %241 = dma.done [#allocation3], 128
    $region85: #{tpu_custom_call.1} parent=1 // pred_fallthru
      _
    // Predicated region
    $region86: #{tpu_custom_call.1} parent=1 // pred_check
      _
    $region87: #{tpu_custom_call.1} parent=1 // pred_check_branch
      %243 = sbr.rel (0) target = $region89
    $region88: #{tpu_custom_call.1} parent=1 // pred_region
      %244 = dma.done [#allocation6], 128
    $region89: #{tpu_custom_call.1} parent=1 // pred_fallthru
      _
    // Predicated region
    $region90: #{tpu_custom_call.1} parent=1 // pred_check
      _
    $region91: #{tpu_custom_call.1} parent=1 // pred_check_branch
      %246 = sbr.rel (0) target = $region93
    $region92: #{tpu_custom_call.1} parent=1 // pred_region
      %247 = dma.done [#allocation6], 128
    $region93: #{tpu_custom_call.1} parent=1 // pred_fallthru
      _
    // Predicated region
    $region94: #{tpu_custom_call.1} parent=1 // pred_check
      _
    $region95: #{tpu_custom_call.1} parent=1 // pred_check_branch
      %249 = sbr.rel (0) target = $region97
    $region96: #{tpu_custom_call.1} parent=1 // pred_region
      %250 = dma.done [#allocation9], 2048
    $region97: #{tpu_custom_call.1} parent=1 // pred_fallthru
      _
    // Predicated region
    $region98: #{tpu_custom_call.1} parent=1 // pred_check
      _
    $region99: #{tpu_custom_call.1} parent=1 // pred_check_branch
      %252 = sbr.rel (0) target = $region101
    $region100: #{tpu_custom_call.1} parent=1 // pred_region
      %253 = dma.done [#allocation9], 32
    $region101: #{tpu_custom_call.1} parent=1 // pred_fallthru
      _
    // Predicated region
    $region102: #{tpu_custom_call.1} parent=1 // pred_check
      _
    $region103: #{tpu_custom_call.1} parent=1 // pred_check_branch
      %255 = sbr.rel (0) target = $region105
    $region104: #{tpu_custom_call.1} parent=1 // pred_region
      %256 = dma.done [#allocation12], 24576
    $region105: #{tpu_custom_call.1} parent=1 // pred_fallthru
      _
    // Predicated region
    $region106: #{tpu_custom_call.1} parent=1 // pred_check
      _
    $region107: #{tpu_custom_call.1} parent=1 // pred_check_branch
      %258 = sbr.rel (0) target = $region109
    $region108: #{tpu_custom_call.1} parent=1 // pred_region
      %259 = dma.done [#allocation12], 384
    $region109: #{tpu_custom_call.1} parent=1 // pred_fallthru
      _
    // Predicated region
    $region110: #{tpu_custom_call.1} parent=1 // pred_check
      _
    $region111: #{tpu_custom_call.1} parent=1 // pred_check_branch
      %261 = sbr.rel (0) target = $region113
    $region112: #{tpu_custom_call.1} parent=1 // pred_region
      %262 = dma.done [#allocation15], 8192
    $region113: #{tpu_custom_call.1} parent=1 // pred_fallthru
      _
    // Predicated region
    $region114: #{tpu_custom_call.1} parent=1 // pred_check
      _
    $region115: #{tpu_custom_call.1} parent=1 // pred_check_branch
      %264 = sbr.rel (0) target = $region117
    $region116: #{tpu_custom_call.1} parent=1 // pred_region
      %265 = dma.done [#allocation15], 4096
    $region117: #{tpu_custom_call.1} parent=1 // pred_fallthru
      _
    // Predicated region
    $region118: #{tpu_custom_call.1} parent=1 // pred_check
      _
    $region119: #{tpu_custom_call.1} parent=1 // pred_check_branch
      %267 = sbr.rel (0) target = $region121
    $region120: #{tpu_custom_call.1} parent=1 // pred_region
      %268 = dma.done [#allocation18], 64
    $region121: #{tpu_custom_call.1} parent=1 // pred_fallthru
      _
    // Predicated region
    $region122: #{tpu_custom_call.1} parent=1 // pred_check
      _
    $region123: #{tpu_custom_call.1} parent=1 // pred_check_branch
      %270 = sbr.rel (0) target = $region125
    $region124: #{tpu_custom_call.1} parent=1 // pred_region
      %271 = dma.done [#allocation18], 4096
    $region125: #{tpu_custom_call.1} parent=1 // pred_fallthru
      _
    // Predicated region
    $region126: #{tpu_custom_call.1} parent=1 // pred_check
      _
    $region127: #{tpu_custom_call.1} parent=1 // pred_check_branch
      %273 = sbr.rel (0) target = $region129
    $region128: #{tpu_custom_call.1} parent=1 // pred_region
      %274 = dma.done [#allocation21], 64
    $region129: #{tpu_custom_call.1} parent=1 // pred_fallthru
      _
    // Predicated region
    $region130: #{tpu_custom_call.1} parent=1 // pred_check
      _
    $region131: #{tpu_custom_call.1} parent=1 // pred_check_branch
      %276 = sbr.rel (0) target = $region133
    $region132: #{tpu_custom_call.1} parent=1 // pred_region
      %277 = dma.done [#allocation21], 64
    $region133: #{tpu_custom_call.1} parent=1 // pred_fallthru
      _
    // Predicated region
    $region134: #{tpu_custom_call.1} parent=1 // pred_check
      _
    $region135: #{tpu_custom_call.1} parent=1 // pred_check_branch
      %279 = sbr.rel (0) target = $region137
    $region136: #{tpu_custom_call.1} parent=1 // pred_region
      %280 = dma.done [#allocation24], 64
    $region137: #{tpu_custom_call.1} parent=1 // pred_fallthru
      _
    // Predicated region
    $region138: #{tpu_custom_call.1} parent=1 // pred_check
      _
    $region139: #{tpu_custom_call.1} parent=1 // pred_check_branch
      %282 = sbr.rel (0) target = $region141
    $region140: #{tpu_custom_call.1} parent=1 // pred_region
      %283 = dma.done [#allocation24], 64
    $region141: #{tpu_custom_call.1} parent=1 // pred_fallthru
      _
    // Predicated region
    $region142: #{tpu_custom_call.1} parent=1 // pred_check
      _
    $region143: #{tpu_custom_call.1} parent=1 // pred_check_branch
      %285 = sbr.rel (0) target = $region145
    $region144: #{tpu_custom_call.1} parent=1 // pred_region
      %286 = dma.done [#allocation27], 64
    $region145: #{tpu_custom_call.1} parent=1 // pred_fallthru
      _
    // Predicated region
    $region146: #{tpu_custom_call.1} parent=1 // pred_check
      _
    $region147: #{tpu_custom_call.1} parent=1 // pred_check_branch
      %288 = sbr.rel (0) target = $region149
    $region148: #{tpu_custom_call.1} parent=1 // pred_region
      %289 = dma.done [#allocation27], 2048
    $region149: #{tpu_custom_call.1} parent=1 // pred_fallthru
      _
    %v291 = vlaneseq
    %v292 = vand.u32 %v291, 127
    %v293 = vld [vmem:[#allocation7] sm:$0xff]
    %v294 = vpack.c.bf16 %v293, %v293
    %v295 = vld [vmem:[#allocation8] sm:$0xff]
    %v296 = vld [vmem:[#allocation8 + $0x8] sm:$0xff]
    %v297 = vld [vmem:[#allocation8 + $0x10] sm:$0xff]
    %v298 = vld [vmem:[#allocation8 + $0x18] sm:$0xff]
    %v299 = vld [vmem:[#allocation8 + $0x20] sm:$0xff]
    %v300 = vld [vmem:[#allocation8 + $0x28] sm:$0xff]
    %v301 = vld [vmem:[#allocation8 + $0x30] sm:$0xff]
    %v302 = vld [vmem:[#allocation8 + $0x38] sm:$0xff]
    %v303 = vld [vmem:[#allocation8 + $0x40] sm:$0xff]
    %v304 = vld [vmem:[#allocation8 + $0x48] sm:$0xff]
    %v305 = vld [vmem:[#allocation8 + $0x50] sm:$0xff]
    %v306 = vld [vmem:[#allocation8 + $0x58] sm:$0xff]
    %v307 = vld [vmem:[#allocation8 + $0x60] sm:$0xff]
    %v308 = vld [vmem:[#allocation8 + $0x68] sm:$0xff]
    %v309 = vld [vmem:[#allocation8 + $0x70] sm:$0xff]
    %v310 = vld [vmem:[#allocation8 + $0x78] sm:$0xff]
    %v327 = vunpack.c.l.b16 %v295
    %v328 = vunpack.c.h.b16 %v295
    %v329 = vunpack.c.l.b16 %v296
    %v330 = vunpack.c.h.b16 %v296
    %v331 = vunpack.c.l.b16 %v297
    %v332 = vunpack.c.h.b16 %v297
    %v333 = vunpack.c.l.b16 %v298
    %v334 = vunpack.c.h.b16 %v298
    %v335 = vunpack.c.l.b16 %v299
    %v336 = vunpack.c.h.b16 %v299
    %v337 = vunpack.c.l.b16 %v300
    %v338 = vunpack.c.h.b16 %v300
    %v339 = vunpack.c.l.b16 %v301
    %v340 = vunpack.c.h.b16 %v301
    %v341 = vunpack.c.l.b16 %v302
    %v342 = vunpack.c.h.b16 %v302
    %v343 = vunpack.c.l.b16 %v303
    %v344 = vunpack.c.h.b16 %v303
    %v345 = vunpack.c.l.b16 %v304
    %v346 = vunpack.c.h.b16 %v304
    %v347 = vunpack.c.l.b16 %v305
    %v348 = vunpack.c.h.b16 %v305
    %v349 = vunpack.c.l.b16 %v306
    %v350 = vunpack.c.h.b16 %v306
    %v351 = vunpack.c.l.b16 %v307
    %v352 = vunpack.c.h.b16 %v307
    %v353 = vunpack.c.l.b16 %v308
    %v354 = vunpack.c.h.b16 %v308
    %v355 = vunpack.c.l.b16 %v309
    %v356 = vunpack.c.h.b16 %v309
    %v357 = vunpack.c.l.b16 %v310
    %v358 = vunpack.c.h.b16 %v310
    %v359 = vpack.c.b16 %v329, %v327
    %v360 = vpack.c.b16 %v330, %v328
    %v361 = vpack.c.b16 %v333, %v331
    %v362 = vpack.c.b16 %v334, %v332
    %v363 = vpack.c.b16 %v337, %v335
    %v364 = vpack.c.b16 %v338, %v336
    %v365 = vpack.c.b16 %v341, %v339
    %v366 = vpack.c.b16 %v342, %v340
    %v367 = vpack.c.b16 %v345, %v343
    %v368 = vpack.c.b16 %v346, %v344
    %v369 = vpack.c.b16 %v349, %v347
    %v370 = vpack.c.b16 %v350, %v348
    %v371 = vpack.c.b16 %v353, %v351
    %v372 = vpack.c.b16 %v354, %v352
    %v373 = vpack.c.b16 %v357, %v355
    %v374 = vpack.c.b16 %v358, %v356
    %391 = vmatprep.subr.bf16.mxu0 %v360
    %392 = vmatpush1.bf16.msra.mxu0 %v359
    %393 = vmatprep.subr.bf16.mxu0 %v362
    %394 = vmatpush1.bf16.msra.mxu0 %v361
    %395 = vmatprep.subr.bf16.mxu0 %v364
    %396 = vmatpush1.bf16.msra.mxu0 %v363
    %397 = vmatprep.subr.bf16.mxu0 %v366
    %398 = vmatpush1.bf16.msra.mxu0 %v365
    %399 = vmatprep.subr.bf16.mxu0 %v368
    %400 = vmatpush1.bf16.msra.mxu0 %v367
    %401 = vmatprep.subr.bf16.mxu0 %v370
    %402 = vmatpush1.bf16.msra.mxu0 %v369
    %403 = vmatprep.subr.bf16.mxu0 %v372
    %404 = vmatpush1.bf16.msra.mxu0 %v371
    %405 = vmatprep.subr.bf16.mxu0 %v374
    %406 = vmatpush1.bf16.msra.mxu0 %v373
    %407 = vmatprep.subr.bf16.mxu0 0
    %408 = vmatpush1.bf16.msra.mxu0 0
    %409 = vmatprep.subr.bf16.mxu0 0
    %410 = vmatpush1.bf16.msra.mxu0 0
    %411 = vmatprep.subr.bf16.mxu0 0
    %412 = vmatpush1.bf16.msra.mxu0 0
    %413 = vmatprep.subr.bf16.mxu0 0
    %414 = vmatpush1.bf16.msra.mxu0 0
    %415 = vmatprep.subr.bf16.mxu0 0
    %416 = vmatpush1.bf16.msra.mxu0 0
    %417 = vmatprep.subr.bf16.mxu0 0
    %418 = vmatpush1.bf16.msra.mxu0 0
    %419 = vmatprep.subr.bf16.mxu0 0
    %420 = vmatpush1.bf16.msra.mxu0 0
    %421 = vmatprep.subr.bf16.mxu0 0
    %422 = vmatpush1.bf16.msra.mxu0 0
    %423 = vmatprep.mubr.bf16.mxu0 0
    %424 = vmatmul.mubr.bf16.gmra.mrb[0].mxu0 %v294
    %v425 = vpop.f32.mrb[0].mxu0
    %v426 = vadd.f32 0.0, %v425
    %v427 = vpop.f32.mrb[0].mxu0
    %v428 = vadd.f32 0.0, %v427
    %v429 = vpop.f32.mrb[0].mxu0
    %v430 = vpop.f32.mrb[0].mxu0
    %431 = vdwg.mxu0
    %v432 = vld [vmem:[#allocation2] sm:$0xff]
    %v433 = vadd.f32 %v432, %v426
    %v434 = vld [vmem:[#allocation10] sm:$0x1]
    %v436 = vlaneseq
    %v437 = vshrl.u32 %v436, 7
    %v438 = vsub.s32 0, %v437
    %v439 = vrot.slane %v434, %v438
    %v441 = vadd.f32 %v433, %v439
    %vm442 = vcmp.lt.s32.totalorder %v292, 32
    %v443 = vpack.c.bf16 %v441, %v441
    %v444 = vld [vmem:[#allocation11] sm:$0xff]
    %v445 = vld [vmem:[#allocation11 + $0x8] sm:$0xff]
    %v446 = vld [vmem:[#allocation11 + $0x10] sm:$0xff]
    %v447 = vld [vmem:[#allocation11 + $0x18] sm:$0xff]
    %v448 = vld [vmem:[#allocation11 + $0x20] sm:$0xff]
    %v449 = vld [vmem:[#allocation11 + $0x28] sm:$0xff]
    %v450 = vld [vmem:[#allocation11 + $0x30] sm:$0xff]
    %v451 = vld [vmem:[#allocation11 + $0x38] sm:$0xff]
    %v452 = vld [vmem:[#allocation11 + $0x40] sm:$0xff]
    %v453 = vld [vmem:[#allocation11 + $0x48] sm:$0xff]
    %v454 = vld [vmem:[#allocation11 + $0x50] sm:$0xff]
    %v455 = vld [vmem:[#allocation11 + $0x58] sm:$0xff]
    %v456 = vld [vmem:[#allocation11 + $0x60] sm:$0xff]
    %v457 = vld [vmem:[#allocation11 + $0x68] sm:$0xff]
    %v458 = vld [vmem:[#allocation11 + $0x70] sm:$0xff]
    %v459 = vld [vmem:[#allocation11 + $0x78] sm:$0xff]
    %v460 = vld [vmem:[#allocation11 + $0x80] sm:$0xff]
    %v461 = vld [vmem:[#allocation11 + $0x88] sm:$0xff]
    %v462 = vld [vmem:[#allocation11 + $0x90] sm:$0xff]
    %v463 = vld [vmem:[#allocation11 + $0x98] sm:$0xff]
    %v464 = vld [vmem:[#allocation11 + $0xa0] sm:$0xff]
    %v465 = vld [vmem:[#allocation11 + $0xa8] sm:$0xff]
    %v466 = vld [vmem:[#allocation11 + $0xb0] sm:$0xff]
    %v467 = vld [vmem:[#allocation11 + $0xb8] sm:$0xff]
    %v468 = vld [vmem:[#allocation11 + $0xc0] sm:$0xff]
    %v469 = vld [vmem:[#allocation11 + $0xc8] sm:$0xff]
    %v470 = vld [vmem:[#allocation11 + $0xd0] sm:$0xff]
    %v471 = vld [vmem:[#allocation11 + $0xd8] sm:$0xff]
    %v472 = vld [vmem:[#allocation11 + $0xe0] sm:$0xff]
    %v473 = vld [vmem:[#allocation11 + $0xe8] sm:$0xff]
    %v474 = vld [vmem:[#allocation11 + $0xf0] sm:$0xff]
    %v475 = vld [vmem:[#allocation11 + $0xf8] sm:$0xff]
    %v476 = vld [vmem:[#allocation11 + $0x100] sm:$0xff]
    %v477 = vld [vmem:[#allocation11 + $0x108] sm:$0xff]
    %v478 = vld [vmem:[#allocation11 + $0x110] sm:$0xff]
    %v479 = vld [vmem:[#allocation11 + $0x118] sm:$0xff]
    %v480 = vld [vmem:[#allocation11 + $0x120] sm:$0xff]
    %v481 = vld [vmem:[#allocation11 + $0x128] sm:$0xff]
    %v482 = vld [vmem:[#allocation11 + $0x130] sm:$0xff]
    %v483 = vld [vmem:[#allocation11 + $0x138] sm:$0xff]
    %v484 = vld [vmem:[#allocation11 + $0x140] sm:$0xff]
    %v485 = vld [vmem:[#allocation11 + $0x148] sm:$0xff]
    %v486 = vld [vmem:[#allocation11 + $0x150] sm:$0xff]
    %v487 = vld [vmem:[#allocation11 + $0x158] sm:$0xff]
    %v488 = vld [vmem:[#allocation11 + $0x160] sm:$0xff]
    %v489 = vld [vmem:[#allocation11 + $0x168] sm:$0xff]
    %v490 = vld [vmem:[#allocation11 + $0x170] sm:$0xff]
    %v491 = vld [vmem:[#allocation11 + $0x178] sm:$0xff]
    %v492 = vld [vmem:[#allocation13] sm:$0x3f]
    %v494 = vlaneseq
    %v495 = vshrl.u32 %v494, 7
    %v496 = vsub.s32 0, %v495
    %v497 = vrot.slane %v492, %v496
    %v498 = vlaneseq
    %v499 = vshrl.u32 %v498, 7
    %v500 = vsub.s32 1, %v499
    %v501 = vrot.slane %v492, %v500
    %v502 = vlaneseq
    %v503 = vshrl.u32 %v502, 7
    %v504 = vsub.s32 2, %v503
    %v505 = vrot.slane %v492, %v504
    %v506 = vlaneseq
    %v507 = vshrl.u32 %v506, 7
    %v508 = vsub.s32 3, %v507
    %v509 = vrot.slane %v492, %v508
    %v510 = vlaneseq
    %v511 = vshrl.u32 %v510, 7
    %v512 = vsub.s32 4, %v511
    %v513 = vrot.slane %v492, %v512
    %v514 = vlaneseq
    %v515 = vshrl.u32 %v514, 7
    %v516 = vsub.s32 5, %v515
    %v517 = vrot.slane %v492, %v516
    %v572 = vunpack.c.l.b16 %v444
    %v573 = vunpack.c.h.b16 %v444
    %v574 = vunpack.c.l.b16 %v445
    %v575 = vunpack.c.h.b16 %v445
    %v576 = vunpack.c.l.b16 %v446
    %v577 = vunpack.c.h.b16 %v446
    %v578 = vunpack.c.l.b16 %v447
    %v579 = vunpack.c.h.b16 %v447
    %v580 = vunpack.c.l.b16 %v448
    %v581 = vunpack.c.h.b16 %v448
    %v582 = vunpack.c.l.b16 %v449
    %v583 = vunpack.c.h.b16 %v449
    %v584 = vunpack.c.l.b16 %v450
    %v585 = vunpack.c.h.b16 %v450
    %v586 = vunpack.c.l.b16 %v451
    %v587 = vunpack.c.h.b16 %v451
    %v588 = vunpack.c.l.b16 %v452
    %v589 = vunpack.c.h.b16 %v452
    %v590 = vunpack.c.l.b16 %v453
    %v591 = vunpack.c.h.b16 %v453
    %v592 = vunpack.c.l.b16 %v454
    %v593 = vunpack.c.h.b16 %v454
    %v594 = vunpack.c.l.b16 %v455
    %v595 = vunpack.c.h.b16 %v455
    %v596 = vunpack.c.l.b16 %v456
    %v597 = vunpack.c.h.b16 %v456
    %v598 = vunpack.c.l.b16 %v457
    %v599 = vunpack.c.h.b16 %v457
    %v600 = vunpack.c.l.b16 %v458
    %v601 = vunpack.c.h.b16 %v458
    %v602 = vunpack.c.l.b16 %v459
    %v603 = vunpack.c.h.b16 %v459
    %v604 = vunpack.c.l.b16 %v460
    %v605 = vunpack.c.h.b16 %v460
    %v606 = vunpack.c.l.b16 %v461
    %v607 = vunpack.c.h.b16 %v461
    %v608 = vunpack.c.l.b16 %v462
    %v609 = vunpack.c.h.b16 %v462
    %v610 = vunpack.c.l.b16 %v463
    %v611 = vunpack.c.h.b16 %v463
    %v612 = vunpack.c.l.b16 %v464
    %v613 = vunpack.c.h.b16 %v464
    %v614 = vunpack.c.l.b16 %v465
    %v615 = vunpack.c.h.b16 %v465
    %v616 = vunpack.c.l.b16 %v466
    %v617 = vunpack.c.h.b16 %v466
    %v618 = vunpack.c.l.b16 %v467
    %v619 = vunpack.c.h.b16 %v467
    %v620 = vunpack.c.l.b16 %v468
    %v621 = vunpack.c.h.b16 %v468
    %v622 = vunpack.c.l.b16 %v469
    %v623 = vunpack.c.h.b16 %v469
    %v624 = vunpack.c.l.b16 %v470
    %v625 = vunpack.c.h.b16 %v470
    %v626 = vunpack.c.l.b16 %v471
    %v627 = vunpack.c.h.b16 %v471
    %v628 = vunpack.c.l.b16 %v472
    %v629 = vunpack.c.h.b16 %v472
    %v630 = vunpack.c.l.b16 %v473
    %v631 = vunpack.c.h.b16 %v473
    %v632 = vunpack.c.l.b16 %v474
    %v633 = vunpack.c.h.b16 %v474
    %v634 = vunpack.c.l.b16 %v475
    %v635 = vunpack.c.h.b16 %v475
    %v636 = vunpack.c.l.b16 %v476
    %v637 = vunpack.c.h.b16 %v476
    %v638 = vunpack.c.l.b16 %v477
    %v639 = vunpack.c.h.b16 %v477
    %v640 = vunpack.c.l.b16 %v478
    %v641 = vunpack.c.h.b16 %v478
    %v642 = vunpack.c.l.b16 %v479
    %v643 = vunpack.c.h.b16 %v479
    %v644 = vunpack.c.l.b16 %v480
    %v645 = vunpack.c.h.b16 %v480
    %v646 = vunpack.c.l.b16 %v481
    %v647 = vunpack.c.h.b16 %v481
    %v648 = vunpack.c.l.b16 %v482
    %v649 = vunpack.c.h.b16 %v482
    %v650 = vunpack.c.l.b16 %v483
    %v651 = vunpack.c.h.b16 %v483
    %v652 = vunpack.c.l.b16 %v484
    %v653 = vunpack.c.h.b16 %v484
    %v654 = vunpack.c.l.b16 %v485
    %v655 = vunpack.c.h.b16 %v485
    %v656 = vunpack.c.l.b16 %v486
    %v657 = vunpack.c.h.b16 %v486
    %v658 = vunpack.c.l.b16 %v487
    %v659 = vunpack.c.h.b16 %v487
    %v660 = vunpack.c.l.b16 %v488
    %v661 = vunpack.c.h.b16 %v488
    %v662 = vunpack.c.l.b16 %v489
    %v663 = vunpack.c.h.b16 %v489
    %v664 = vunpack.c.l.b16 %v490
    %v665 = vunpack.c.h.b16 %v490
    %v666 = vunpack.c.l.b16 %v491
    %v667 = vunpack.c.h.b16 %v491
    %v668 = vpack.c.b16 %v578, %v572
    %v669 = vpack.c.b16 %v579, %v573
    %v670 = vpack.c.b16 %v580, %v574
    %v671 = vpack.c.b16 %v581, %v575
    %v672 = vpack.c.b16 %v582, %v576
    %v673 = vpack.c.b16 %v583, %v577
    %v674 = vpack.c.b16 %v590, %v584
    %v675 = vpack.c.b16 %v591, %v585
    %v676 = vpack.c.b16 %v592, %v586
    %v677 = vpack.c.b16 %v593, %v587
    %v678 = vpack.c.b16 %v594, %v588
    %v679 = vpack.c.b16 %v595, %v589
    %v680 = vpack.c.b16 %v602, %v596
    %v681 = vpack.c.b16 %v603, %v597
    %v682 = vpack.c.b16 %v604, %v598
    %v683 = vpack.c.b16 %v605, %v599
    %v684 = vpack.c.b16 %v606, %v600
    %v685 = vpack.c.b16 %v607, %v601
    %v686 = vpack.c.b16 %v614, %v608
    %v687 = vpack.c.b16 %v615, %v609
    %v688 = vpack.c.b16 %v616, %v610
    %v689 = vpack.c.b16 %v617, %v611
    %v690 = vpack.c.b16 %v618, %v612
    %v691 = vpack.c.b16 %v619, %v613
    %v692 = vpack.c.b16 %v626, %v620
    %v693 = vpack.c.b16 %v627, %v621
    %v694 = vpack.c.b16 %v628, %v622
    %v695 = vpack.c.b16 %v629, %v623
    %v696 = vpack.c.b16 %v630, %v624
    %v697 = vpack.c.b16 %v631, %v625
    %v698 = vpack.c.b16 %v638, %v632
    %v699 = vpack.c.b16 %v639, %v633
    %v700 = vpack.c.b16 %v640, %v634
    %v701 = vpack.c.b16 %v641, %v635
    %v702 = vpack.c.b16 %v642, %v636
    %v703 = vpack.c.b16 %v643, %v637
    %v704 = vpack.c.b16 %v650, %v644
    %v705 = vpack.c.b16 %v651, %v645
    %v706 = vpack.c.b16 %v652, %v646
    %v707 = vpack.c.b16 %v653, %v647
    %v708 = vpack.c.b16 %v654, %v648
    %v709 = vpack.c.b16 %v655, %v649
    %v710 = vpack.c.b16 %v662, %v656
    %v711 = vpack.c.b16 %v663, %v657
    %v712 = vpack.c.b16 %v664, %v658
    %v713 = vpack.c.b16 %v665, %v659
    %v714 = vpack.c.b16 %v666, %v660
    %v715 = vpack.c.b16 %v667, %v661
    %764 = vmatprep.subr.bf16.mxu0 %v669
    %765 = vmatpush1.bf16.msra.mxu0 %v668
    %766 = vmatprep.subr.bf16.mxu0 %v675
    %767 = vmatpush1.bf16.msra.mxu0 %v674
    %768 = vmatprep.subr.bf16.mxu0 %v681
    %769 = vmatpush1.bf16.msra.mxu0 %v680
    %770 = vmatprep.subr.bf16.mxu0 %v687
    %771 = vmatpush1.bf16.msra.mxu0 %v686
    %772 = vmatprep.subr.bf16.mxu0 %v693
    %773 = vmatpush1.bf16.msra.mxu0 %v692
    %774 = vmatprep.subr.bf16.mxu0 %v699
    %775 = vmatpush1.bf16.msra.mxu0 %v698
    %776 = vmatprep.subr.bf16.mxu0 %v705
    %777 = vmatpush1.bf16.msra.mxu0 %v704
    %778 = vmatprep.subr.bf16.mxu0 %v711
    %779 = vmatpush1.bf16.msra.mxu0 %v710
    %780 = vmatprep.subr.bf16.mxu0 0
    %781 = vmatpush1.bf16.msra.mxu0 0
    %782 = vmatprep.subr.bf16.mxu0 0
    %783 = vmatpush1.bf16.msra.mxu0 0
    %784 = vmatprep.subr.bf16.mxu0 0
    %785 = vmatpush1.bf16.msra.mxu0 0
    %786 = vmatprep.subr.bf16.mxu0 0
    %787 = vmatpush1.bf16.msra.mxu0 0
    %788 = vmatprep.subr.bf16.mxu0 0
    %789 = vmatpush1.bf16.msra.mxu0 0
    %790 = vmatprep.subr.bf16.mxu0 0
    %791 = vmatpush1.bf16.msra.mxu0 0
    %792 = vmatprep.subr.bf16.mxu0 0
    %793 = vmatpush1.bf16.msra.mxu0 0
    %794 = vmatprep.subr.bf16.mxu0 0
    %795 = vmatpush1.bf16.msra.mxu0 0
    %796 = vmatprep.mubr.bf16.mxu0 0
    %797 = vmatmul.mubr.bf16.gmra.mrb[0].mxu0 %v443
    %v798 = vpop.f32.mrb[0].mxu0
    %v799 = vadd.f32 %v497, %v798
    %v800 = vpop.f32.mrb[0].mxu0
    %v801 = vadd.f32 %v501, %v800
    %v802 = vpop.f32.mrb[0].mxu0
    %v803 = vpop.f32.mrb[0].mxu0
    %804 = vdwg.mxu0
    %805 = vmatprep.subr.bf16.mxu0 %v671
    %806 = vmatpush1.bf16.msra.mxu0 %v670
    %807 = vmatprep.subr.bf16.mxu0 %v677
    %808 = vmatpush1.bf16.msra.mxu0 %v676
    %809 = vmatprep.subr.bf16.mxu0 %v683
    %810 = vmatpush1.bf16.msra.mxu0 %v682
    %811 = vmatprep.subr.bf16.mxu0 %v689
    %812 = vmatpush1.bf16.msra.mxu0 %v688
    %813 = vmatprep.subr.bf16.mxu0 %v695
    %814 = vmatpush1.bf16.msra.mxu0 %v694
    %815 = vmatprep.subr.bf16.mxu0 %v701
    %816 = vmatpush1.bf16.msra.mxu0 %v700
    %817 = vmatprep.subr.bf16.mxu0 %v707
    %818 = vmatpush1.bf16.msra.mxu0 %v706
    %819 = vmatprep.subr.bf16.mxu0 %v713
    %820 = vmatpush1.bf16.msra.mxu0 %v712
    %821 = vmatprep.subr.bf16.mxu0 0
    %822 = vmatpush1.bf16.msra.mxu0 0
    %823 = vmatprep.subr.bf16.mxu0 0
    %824 = vmatpush1.bf16.msra.mxu0 0
    %825 = vmatprep.subr.bf16.mxu0 0
    %826 = vmatpush1.bf16.msra.mxu0 0
    %827 = vmatprep.subr.bf16.mxu0 0
    %828 = vmatpush1.bf16.msra.mxu0 0
    %829 = vmatprep.subr.bf16.mxu0 0
    %830 = vmatpush1.bf16.msra.mxu0 0
    %831 = vmatprep.subr.bf16.mxu0 0
    %832 = vmatpush1.bf16.msra.mxu0 0
    %833 = vmatprep.subr.bf16.mxu0 0
    %834 = vmatpush1.bf16.msra.mxu0 0
    %835 = vmatprep.subr.bf16.mxu0 0
    %836 = vmatpush1.bf16.msra.mxu0 0
    %837 = vmatprep.mubr.bf16.mxu0 0
    %838 = vmatmul.mubr.bf16.gmra.mrb[0].mxu0 %v443
    %v839 = vpop.f32.mrb[0].mxu0
    %v840 = vadd.f32 %v505, %v839
    %v841 = vpop.f32.mrb[0].mxu0
    %v842 = vadd.f32 %v509, %v841
    %v843 = vpop.f32.mrb[0].mxu0
    %v844 = vpop.f32.mrb[0].mxu0
    %845 = vdwg.mxu0
    %846 = vmatprep.subr.bf16.mxu0 %v673
    %847 = vmatpush1.bf16.msra.mxu0 %v672
    %848 = vmatprep.subr.bf16.mxu0 %v679
    %849 = vmatpush1.bf16.msra.mxu0 %v678
    %850 = vmatprep.subr.bf16.mxu0 %v685
    %851 = vmatpush1.bf16.msra.mxu0 %v684
    %852 = vmatprep.subr.bf16.mxu0 %v691
    %853 = vmatpush1.bf16.msra.mxu0 %v690
    %854 = vmatprep.subr.bf16.mxu0 %v697
    %855 = vmatpush1.bf16.msra.mxu0 %v696
    %856 = vmatprep.subr.bf16.mxu0 %v703
    %857 = vmatpush1.bf16.msra.mxu0 %v702
    %858 = vmatprep.subr.bf16.mxu0 %v709
    %859 = vmatpush1.bf16.msra.mxu0 %v708
    %860 = vmatprep.subr.bf16.mxu0 %v715
    %861 = vmatpush1.bf16.msra.mxu0 %v714
    %862 = vmatprep.subr.bf16.mxu0 0
    %863 = vmatpush1.bf16.msra.mxu0 0
    %864 = vmatprep.subr.bf16.mxu0 0
    %865 = vmatpush1.bf16.msra.mxu0 0
    %866 = vmatprep.subr.bf16.mxu0 0
    %867 = vmatpush1.bf16.msra.mxu0 0
    %868 = vmatprep.subr.bf16.mxu0 0
    %869 = vmatpush1.bf16.msra.mxu0 0
    %870 = vmatprep.subr.bf16.mxu0 0
    %871 = vmatpush1.bf16.msra.mxu0 0
    %872 = vmatprep.subr.bf16.mxu0 0
    %873 = vmatpush1.bf16.msra.mxu0 0
    %874 = vmatprep.subr.bf16.mxu0 0
    %875 = vmatpush1.bf16.msra.mxu0 0
    %876 = vmatprep.subr.bf16.mxu0 0
    %877 = vmatpush1.bf16.msra.mxu0 0
    %878 = vmatprep.mubr.bf16.mxu0 0
    %879 = vmatmul.mubr.bf16.gmra.mrb[0].mxu0 %v443
    %v880 = vpop.f32.mrb[0].mxu0
    %v881 = vadd.f32 %v513, %v880
    %v882 = vpop.f32.mrb[0].mxu0
    %v883 = vadd.f32 %v517, %v882
    %v884 = vpop.f32.mrb[0].mxu0
    %v885 = vpop.f32.mrb[0].mxu0
    %886 = vdwg.mxu0
    %v887 = vpack.c.bf16 %v799, %v799
    %v888 = vpack.c.bf16 %v840, %v840
    %889 = vmatprep.subr.bf16.mxu0 0
    %890 = vmatpush1.bf16.xpose.msra.mxu0 %v888
    %891 = vmatprep.subr.bf16.mxu0 0
    %892 = vmatpush1.bf16.xpose.msra.mxu0 0
    %893 = vmatprep.subr.bf16.mxu0 0
    %894 = vmatpush1.bf16.xpose.msra.mxu0 0
    %895 = vmatprep.subr.bf16.mxu0 0
    %896 = vmatpush1.bf16.xpose.msra.mxu0 0
    %897 = vmatprep.subr.bf16.mxu0 0
    %898 = vmatpush1.bf16.xpose.msra.mxu0 0
    %899 = vmatprep.subr.bf16.mxu0 0
    %900 = vmatpush1.bf16.xpose.msra.mxu0 0
    %901 = vmatprep.subr.bf16.mxu0 0
    %902 = vmatpush1.bf16.xpose.msra.mxu0 0
    %903 = vmatprep.subr.bf16.mxu0 0
    %904 = vmatpush1.bf16.xpose.msra.mxu0 0
    %905 = vmatprep.subr.bf16.mxu0 0
    %906 = vmatpush1.bf16.xpose.msra.mxu0 0
    %907 = vmatprep.subr.bf16.mxu0 0
    %908 = vmatpush1.bf16.xpose.msra.mxu0 0
    %909 = vmatprep.subr.bf16.mxu0 0
    %910 = vmatpush1.bf16.xpose.msra.mxu0 0
    %911 = vmatprep.subr.bf16.mxu0 0
    %912 = vmatpush1.bf16.xpose.msra.mxu0 0
    %913 = vmatprep.subr.bf16.mxu0 0
    %914 = vmatpush1.bf16.xpose.msra.mxu0 0
    %915 = vmatprep.subr.bf16.mxu0 0
    %916 = vmatpush1.bf16.xpose.msra.mxu0 0
    %917 = vmatprep.subr.bf16.mxu0 0
    %918 = vmatpush1.bf16.xpose.msra.mxu0 0
    %919 = vmatprep.subr.bf16.mxu0 0
    %920 = vmatpush1.bf16.xpose.msra.mxu0 0
    %921 = vmatprep.mubr.bf16.mxu0 0
    %922 = vmatmul.mubr.bf16.gmra.mrb[0].mxu0 %v887
    %v923 = vpop.f32.mrb[0].mxu0
    %v924 = vadd.f32 0.0, %v923
    %v925 = vpop.f32.mrb[0].mxu0
    %v926 = vpop.f32.mrb[0].mxu0
    %v927 = vpop.f32.mrb[0].mxu0
    %928 = vdwg.mxu0
    %v929 = vmul.f32 %v924, 0.25
    %vm930 = vcmask 64512
    %v931 = vsel %vm930, %v929, -inf
    %932 = vmax.xlane.f32.xlu0 %v931
    %v933 = vpop.xlane.xlu0 %932
    %v934 = vsub.f32 %v929, %v933
    %v935 = vmul.f32 %v934, 1.442695
    %v936 = vpow.pop %v935
    %v937 = vsel %vm930, %v936, 0.0
    %938 = vadd.xlane.f32.xlu0 %v937
    %v939 = vpop.xlane.xlu0 %938
    %v940 = vrcp.pop %v939
    %v941 = vmul.f32 %v936, %v940
    %v942 = vpack.c.bf16 %v941, %v941
    %v943 = vpack.c.bf16 %v881, %v881
    %v945 = vsel %vm930, %v942, 0
    %vm947 = vcmask 1043456
    %v949 = vsel %vm947, %v943, 0
    %951 = vmatprep.subr.bf16.mxu0 0
    %952 = vmatpush1.bf16.msra.mxu0 %v949
    %953 = vmatprep.subr.bf16.mxu0 0
    %954 = vmatpush1.bf16.msra.mxu0 0
    %955 = vmatprep.subr.bf16.mxu0 0
    %956 = vmatpush1.bf16.msra.mxu0 0
    %957 = vmatprep.subr.bf16.mxu0 0
    %958 = vmatpush1.bf16.msra.mxu0 0
    %959 = vmatprep.subr.bf16.mxu0 0
    %960 = vmatpush1.bf16.msra.mxu0 0
    %961 = vmatprep.subr.bf16.mxu0 0
    %962 = vmatpush1.bf16.msra.mxu0 0
    %963 = vmatprep.subr.bf16.mxu0 0
    %964 = vmatpush1.bf16.msra.mxu0 0
    %965 = vmatprep.subr.bf16.mxu0 0
    %966 = vmatpush1.bf16.msra.mxu0 0
    %967 = vmatprep.subr.bf16.mxu0 0
    %968 = vmatpush1.bf16.msra.mxu0 0
    %969 = vmatprep.subr.bf16.mxu0 0
    %970 = vmatpush1.bf16.msra.mxu0 0
    %971 = vmatprep.subr.bf16.mxu0 0
    %972 = vmatpush1.bf16.msra.mxu0 0
    %973 = vmatprep.subr.bf16.mxu0 0
    %974 = vmatpush1.bf16.msra.mxu0 0
    %975 = vmatprep.subr.bf16.mxu0 0
    %976 = vmatpush1.bf16.msra.mxu0 0
    %977 = vmatprep.subr.bf16.mxu0 0
    %978 = vmatpush1.bf16.msra.mxu0 0
    %979 = vmatprep.subr.bf16.mxu0 0
    %980 = vmatpush1.bf16.msra.mxu0 0
    %981 = vmatprep.subr.bf16.mxu0 0
    %982 = vmatpush1.bf16.msra.mxu0 0
    %983 = vmatprep.mubr.bf16.mxu0 0
    %984 = vmatmul.mubr.bf16.gmra.mrb[0].mxu0 %v945
    %v985 = vpop.f32.mrb[0].mxu0
    %v986 = vadd.f32 0.0, %v985
    %v987 = vpop.f32.mrb[0].mxu0
    %v988 = vpop.f32.mrb[0].mxu0
    %v989 = vpop.f32.mrb[0].mxu0
    %990 = vdwg.mxu0
    %v991 = vpack.c.bf16 %v801, %v801
    %v992 = vpack.c.bf16 %v842, %v842
    %993 = vmatprep.subr.bf16.mxu0 0
    %994 = vmatpush1.bf16.xpose.msra.mxu0 %v992
    %995 = vmatprep.subr.bf16.mxu0 0
    %996 = vmatpush1.bf16.xpose.msra.mxu0 0
    %997 = vmatprep.subr.bf16.mxu0 0
    %998 = vmatpush1.bf16.xpose.msra.mxu0 0
    %999 = vmatprep.subr.bf16.mxu0 0
    %1000 = vmatpush1.bf16.xpose.msra.mxu0 0
    %1001 = vmatprep.subr.bf16.mxu0 0
    %1002 = vmatpush1.bf16.xpose.msra.mxu0 0
    %1003 = vmatprep.subr.bf16.mxu0 0
    %1004 = vmatpush1.bf16.xpose.msra.mxu0 0
    %1005 = vmatprep.subr.bf16.mxu0 0
    %1006 = vmatpush1.bf16.xpose.msra.mxu0 0
    %1007 = vmatprep.subr.bf16.mxu0 0
    %1008 = vmatpush1.bf16.xpose.msra.mxu0 0
    %1009 = vmatprep.subr.bf16.mxu0 0
    %1010 = vmatpush1.bf16.xpose.msra.mxu0 0
    %1011 = vmatprep.subr.bf16.mxu0 0
    %1012 = vmatpush1.bf16.xpose.msra.mxu0 0
    %1013 = vmatprep.subr.bf16.mxu0 0
    %1014 = vmatpush1.bf16.xpose.msra.mxu0 0
    %1015 = vmatprep.subr.bf16.mxu0 0
    %1016 = vmatpush1.bf16.xpose.msra.mxu0 0
    %1017 = vmatprep.subr.bf16.mxu0 0
    %1018 = vmatpush1.bf16.xpose.msra.mxu0 0
    %1019 = vmatprep.subr.bf16.mxu0 0
    %1020 = vmatpush1.bf16.xpose.msra.mxu0 0
    %1021 = vmatprep.subr.bf16.mxu0 0
    %1022 = vmatpush1.bf16.xpose.msra.mxu0 0
    %1023 = vmatprep.subr.bf16.mxu0 0
    %1024 = vmatpush1.bf16.xpose.msra.mxu0 0
    %1025 = vmatprep.mubr.bf16.mxu0 0
    %1026 = vmatmul.mubr.bf16.gmra.mrb[0].mxu0 %v991
    %v1027 = vpop.f32.mrb[0].mxu0
    %v1028 = vadd.f32 0.0, %v1027
    %v1029 = vpop.f32.mrb[0].mxu0
    %v1030 = vpop.f32.mrb[0].mxu0
    %v1031 = vpop.f32.mrb[0].mxu0
    %1032 = vdwg.mxu0
    %v1033 = vmul.f32 %v1028, 0.25
    %v1034 = vsel %vm930, %v1033, -inf
    %1035 = vmax.xlane.f32.xlu0 %v1034
    %v1036 = vpop.xlane.xlu0 %1035
    %v1037 = vsub.f32 %v1033, %v1036
    %v1038 = vmul.f32 %v1037, 1.442695
    %v1039 = vpow.pop %v1038
    %v1040 = vsel %vm930, %v1039, 0.0
    %1041 = vadd.xlane.f32.xlu0 %v1040
    %v1042 = vpop.xlane.xlu0 %1041
    %v1043 = vrcp.pop %v1042
    %v1044 = vmul.f32 %v1039, %v1043
    %v1045 = vpack.c.bf16 %v1044, %v1044
    %v1046 = vpack.c.bf16 %v883, %v883
    %v1048 = vsel %vm930, %v1045, 0
    %v1051 = vsel %vm947, %v1046, 0
    %1053 = vmatprep.subr.bf16.mxu0 0
    %1054 = vmatpush1.bf16.msra.mxu0 %v1051
    %1055 = vmatprep.subr.bf16.mxu0 0
    %1056 = vmatpush1.bf16.msra.mxu0 0
    %1057 = vmatprep.subr.bf16.mxu0 0
    %1058 = vmatpush1.bf16.msra.mxu0 0
    %1059 = vmatprep.subr.bf16.mxu0 0
    %1060 = vmatpush1.bf16.msra.mxu0 0
    %1061 = vmatprep.subr.bf16.mxu0 0
    %1062 = vmatpush1.bf16.msra.mxu0 0
    %1063 = vmatprep.subr.bf16.mxu0 0
    %1064 = vmatpush1.bf16.msra.mxu0 0
    %1065 = vmatprep.subr.bf16.mxu0 0
    %1066 = vmatpush1.bf16.msra.mxu0 0
    %1067 = vmatprep.subr.bf16.mxu0 0
    %1068 = vmatpush1.bf16.msra.mxu0 0
    %1069 = vmatprep.subr.bf16.mxu0 0
    %1070 = vmatpush1.bf16.msra.mxu0 0
    %1071 = vmatprep.subr.bf16.mxu0 0
    %1072 = vmatpush1.bf16.msra.mxu0 0
    %1073 = vmatprep.subr.bf16.mxu0 0
    %1074 = vmatpush1.bf16.msra.mxu0 0
    %1075 = vmatprep.subr.bf16.mxu0 0
    %1076 = vmatpush1.bf16.msra.mxu0 0
    %1077 = vmatprep.subr.bf16.mxu0 0
    %1078 = vmatpush1.bf16.msra.mxu0 0
    %1079 = vmatprep.subr.bf16.mxu0 0
    %1080 = vmatpush1.bf16.msra.mxu0 0
    %1081 = vmatprep.subr.bf16.mxu0 0
    %1082 = vmatpush1.bf16.msra.mxu0 0
    %1083 = vmatprep.subr.bf16.mxu0 0
    %1084 = vmatpush1.bf16.msra.mxu0 0
    %1085 = vmatprep.mubr.bf16.mxu0 0
    %1086 = vmatmul.mubr.bf16.gmra.mrb[0].mxu0 %v1048
    %v1087 = vpop.f32.mrb[0].mxu0
    %v1088 = vadd.f32 0.0, %v1087
    %v1089 = vpop.f32.mrb[0].mxu0
    %v1090 = vpop.f32.mrb[0].mxu0
    %v1091 = vpop.f32.mrb[0].mxu0
    %1092 = vdwg.mxu0
    %v1093 = vpack.c.bf16 %v986, %v986
    %v1094 = vpack.c.bf16 %v1088, %v1088
    %v1095 = vld [vmem:[#allocation14] sm:$0xf]
    %v1096 = vld [vmem:[#allocation14 + $0x4] sm:$0xf]
    %v1097 = vld [vmem:[#allocation14 + $0x8] sm:$0xf]
    %v1098 = vld [vmem:[#allocation14 + $0xc] sm:$0xf]
    %v1099 = vld [vmem:[#allocation14 + $0x10] sm:$0xf]
    %v1100 = vld [vmem:[#allocation14 + $0x14] sm:$0xf]
    %v1101 = vld [vmem:[#allocation14 + $0x18] sm:$0xf]
    %v1102 = vld [vmem:[#allocation14 + $0x1c] sm:$0xf]
    %v1103 = vld [vmem:[#allocation14 + $0x20] sm:$0xf]
    %v1104 = vld [vmem:[#allocation14 + $0x24] sm:$0xf]
    %v1105 = vld [vmem:[#allocation14 + $0x28] sm:$0xf]
    %v1106 = vld [vmem:[#allocation14 + $0x2c] sm:$0xf]
    %v1107 = vld [vmem:[#allocation14 + $0x30] sm:$0xf]
    %v1108 = vld [vmem:[#allocation14 + $0x34] sm:$0xf]
    %v1109 = vld [vmem:[#allocation14 + $0x38] sm:$0xf]
    %v1110 = vld [vmem:[#allocation14 + $0x3c] sm:$0xf]
    %v1111 = vld [vmem:[#allocation14 + $0x40] sm:$0xf]
    %v1112 = vld [vmem:[#allocation14 + $0x44] sm:$0xf]
    %v1113 = vld [vmem:[#allocation14 + $0x48] sm:$0xf]
    %v1114 = vld [vmem:[#allocation14 + $0x4c] sm:$0xf]
    %v1115 = vld [vmem:[#allocation14 + $0x50] sm:$0xf]
    %v1116 = vld [vmem:[#allocation14 + $0x54] sm:$0xf]
    %v1117 = vld [vmem:[#allocation14 + $0x58] sm:$0xf]
    %v1118 = vld [vmem:[#allocation14 + $0x5c] sm:$0xf]
    %v1119 = vld [vmem:[#allocation14 + $0x60] sm:$0xf]
    %v1120 = vld [vmem:[#allocation14 + $0x64] sm:$0xf]
    %v1121 = vld [vmem:[#allocation14 + $0x68] sm:$0xf]
    %v1122 = vld [vmem:[#allocation14 + $0x6c] sm:$0xf]
    %v1123 = vld [vmem:[#allocation14 + $0x70] sm:$0xf]
    %v1124 = vld [vmem:[#allocation14 + $0x74] sm:$0xf]
    %v1125 = vld [vmem:[#allocation14 + $0x78] sm:$0xf]
    %v1126 = vld [vmem:[#allocation14 + $0x7c] sm:$0xf]
    %v1127 = vld [vmem:[%s8] sm:$0x1]
    %v1129 = vlaneseq
    %v1130 = vshrl.u32 %v1129, 7
    %v1131 = vsub.s32 0, %v1130
    %v1132 = vrot.slane %v1127, %v1131
    %v1166 = vunpack.c.l.b16 %v1095
    %v1167 = vunpack.c.l.b16 %v1096
    %v1168 = vunpack.c.l.b16 %v1097
    %v1169 = vunpack.c.l.b16 %v1098
    %v1170 = vunpack.c.l.b16 %v1099
    %v1171 = vunpack.c.l.b16 %v1100
    %v1172 = vunpack.c.l.b16 %v1101
    %v1173 = vunpack.c.l.b16 %v1102
    %v1174 = vunpack.c.l.b16 %v1103
    %v1175 = vunpack.c.l.b16 %v1104
    %v1176 = vunpack.c.l.b16 %v1105
    %v1177 = vunpack.c.l.b16 %v1106
    %v1178 = vunpack.c.l.b16 %v1107
    %v1179 = vunpack.c.l.b16 %v1108
    %v1180 = vunpack.c.l.b16 %v1109
    %v1181 = vunpack.c.l.b16 %v1110
    %v1182 = vunpack.c.l.b16 %v1111
    %v1183 = vunpack.c.l.b16 %v1112
    %v1184 = vunpack.c.l.b16 %v1113
    %v1185 = vunpack.c.l.b16 %v1114
    %v1186 = vunpack.c.l.b16 %v1115
    %v1187 = vunpack.c.l.b16 %v1116
    %v1188 = vunpack.c.l.b16 %v1117
    %v1189 = vunpack.c.l.b16 %v1118
    %v1190 = vunpack.c.l.b16 %v1119
    %v1191 = vunpack.c.l.b16 %v1120
    %v1192 = vunpack.c.l.b16 %v1121
    %v1193 = vunpack.c.l.b16 %v1122
    %v1194 = vunpack.c.l.b16 %v1123
    %v1195 = vunpack.c.l.b16 %v1124
    %v1196 = vunpack.c.l.b16 %v1125
    %v1197 = vunpack.c.l.b16 %v1126
    %v1198 = vpack.c.b16 %v1167, %v1166
    %v1199 = vpack.c.b16 %v1169, %v1168
    %v1200 = vpack.c.b16 %v1171, %v1170
    %v1201 = vpack.c.b16 %v1173, %v1172
    %v1202 = vpack.c.b16 %v1175, %v1174
    %v1203 = vpack.c.b16 %v1177, %v1176
    %v1204 = vpack.c.b16 %v1179, %v1178
    %v1205 = vpack.c.b16 %v1181, %v1180
    %v1206 = vpack.c.b16 %v1183, %v1182
    %v1207 = vpack.c.b16 %v1185, %v1184
    %v1208 = vpack.c.b16 %v1187, %v1186
    %v1209 = vpack.c.b16 %v1189, %v1188
    %v1210 = vpack.c.b16 %v1191, %v1190
    %v1211 = vpack.c.b16 %v1193, %v1192
    %v1212 = vpack.c.b16 %v1195, %v1194
    %v1213 = vpack.c.b16 %v1197, %v1196
    %1230 = vmatprep.subr.bf16.mxu0 0
    %1231 = vmatpush1.bf16.msra.mxu0 %v1198
    %1232 = vmatprep.subr.bf16.mxu0 0
    %1233 = vmatpush1.bf16.msra.mxu0 %v1199
    %1234 = vmatprep.subr.bf16.mxu0 0
    %1235 = vmatpush1.bf16.msra.mxu0 %v1200
    %1236 = vmatprep.subr.bf16.mxu0 0
    %1237 = vmatpush1.bf16.msra.mxu0 %v1201
    %1238 = vmatprep.subr.bf16.mxu0 0
    %1239 = vmatpush1.bf16.msra.mxu0 %v1202
    %1240 = vmatprep.subr.bf16.mxu0 0
    %1241 = vmatpush1.bf16.msra.mxu0 %v1203
    %1242 = vmatprep.subr.bf16.mxu0 0
    %1243 = vmatpush1.bf16.msra.mxu0 %v1204
    %1244 = vmatprep.subr.bf16.mxu0 0
    %1245 = vmatpush1.bf16.msra.mxu0 %v1205
    %1246 = vmatprep.subr.bf16.mxu0 0
    %1247 = vmatpush1.bf16.msra.mxu0 %v1206
    %1248 = vmatprep.subr.bf16.mxu0 0
    %1249 = vmatpush1.bf16.msra.mxu0 %v1207
    %1250 = vmatprep.subr.bf16.mxu0 0
    %1251 = vmatpush1.bf16.msra.mxu0 %v1208
    %1252 = vmatprep.subr.bf16.mxu0 0
    %1253 = vmatpush1.bf16.msra.mxu0 %v1209
    %1254 = vmatprep.subr.bf16.mxu0 0
    %1255 = vmatpush1.bf16.msra.mxu0 %v1210
    %1256 = vmatprep.subr.bf16.mxu0 0
    %1257 = vmatpush1.bf16.msra.mxu0 %v1211
    %1258 = vmatprep.subr.bf16.mxu0 0
    %1259 = vmatpush1.bf16.msra.mxu0 %v1212
    %1260 = vmatprep.subr.bf16.mxu0 0
    %1261 = vmatpush1.bf16.msra.mxu0 %v1213
    %1262 = vmatprep.mubr.bf16.mxu0 %v1094
    %1263 = vmatmul.mubr.bf16.gmra.mrb[0].mxu0 %v1093
    %v1264 = vpop.f32.mrb[0].mxu0
    %v1265 = vadd.f32 %v1132, %v1264
    %v1266 = vpop.f32.mrb[0].mxu0
    %v1267 = vpop.f32.mrb[0].mxu0
    %v1268 = vpop.f32.mrb[0].mxu0
    %1269 = vdwg.mxu0
    %v1270 = vadd.f32 %v441, %v1265
    %v1271 = vld [vmem:[#allocation22] sm:$0x1]
    %v1272 = vld [vmem:[#allocation23] sm:$0x1]
    %1273 = vadd.xlane.f32.xlu0 %v1270
    %v1274 = vpop.xlane.xlu0 %1273
    %v1275 = vmul.f32 %v1274, 0.03125
    %v1276 = vsub.f32 %v1270, %v1275
    %v1277 = vsel %vm442, %v1276, 0.0
    %v1278 = vmul.f32 %v1277, %v1277
    %1279 = vadd.xlane.f32.xlu0 %v1278
    %v1280 = vpop.xlane.xlu0 %1279
    %v1281 = vmul.f32 %v1280, 0.03125
    %v1282 = vadd.f32 %v1281, 1e-05
    %v1283 = vrsqrt.pop %v1282
    %v1284 = vmul.f32 %v1277, %v1283
    %v1286 = vlaneseq
    %v1287 = vshrl.u32 %v1286, 7
    %v1288 = vsub.s32 0, %v1287
    %v1289 = vrot.slane %v1271, %v1288
    %v1291 = vmul.f32 %v1284, %v1289
    %v1293 = vlaneseq
    %v1294 = vshrl.u32 %v1293, 7
    %v1295 = vsub.s32 0, %v1294
    %v1296 = vrot.slane %v1272, %v1295
    %v1298 = vadd.f32 %v1291, %v1296
    %v1299 = vpack.c.bf16 %v1298, %v1298
    %v1300 = vld [vmem:[#allocation16] sm:$0xf]
    %v1301 = vld [vmem:[#allocation16 + $0x4] sm:$0xf]
    %v1302 = vld [vmem:[#allocation16 + $0x8] sm:$0xf]
    %v1303 = vld [vmem:[#allocation16 + $0xc] sm:$0xf]
    %v1304 = vld [vmem:[#allocation16 + $0x10] sm:$0xf]
    %v1305 = vld [vmem:[#allocation16 + $0x14] sm:$0xf]
    %v1306 = vld [vmem:[#allocation16 + $0x18] sm:$0xf]
    %v1307 = vld [vmem:[#allocation16 + $0x1c] sm:$0xf]
    %v1308 = vld [vmem:[#allocation16 + $0x20] sm:$0xf]
    %v1309 = vld [vmem:[#allocation16 + $0x24] sm:$0xf]
    %v1310 = vld [vmem:[#allocation16 + $0x28] sm:$0xf]
    %v1311 = vld [vmem:[#allocation16 + $0x2c] sm:$0xf]
    %v1312 = vld [vmem:[#allocation16 + $0x30] sm:$0xf]
    %v1313 = vld [vmem:[#allocation16 + $0x34] sm:$0xf]
    %v1314 = vld [vmem:[#allocation16 + $0x38] sm:$0xf]
    %v1315 = vld [vmem:[#allocation16 + $0x3c] sm:$0xf]
    %v1316 = vld [vmem:[#allocation17] sm:$0x1]
    %v1318 = vlaneseq
    %v1319 = vshrl.u32 %v1318, 7
    %v1320 = vsub.s32 0, %v1319
    %v1321 = vrot.slane %v1316, %v1320
    %v1339 = vunpack.c.l.b16 %v1300
    %v1340 = vunpack.c.l.b16 %v1301
    %v1341 = vunpack.c.l.b16 %v1302
    %v1342 = vunpack.c.l.b16 %v1303
    %v1343 = vunpack.c.l.b16 %v1304
    %v1344 = vunpack.c.l.b16 %v1305
    %v1345 = vunpack.c.l.b16 %v1306
    %v1346 = vunpack.c.l.b16 %v1307
    %v1347 = vunpack.c.l.b16 %v1308
    %v1348 = vunpack.c.l.b16 %v1309
    %v1349 = vunpack.c.l.b16 %v1310
    %v1350 = vunpack.c.l.b16 %v1311
    %v1351 = vunpack.c.l.b16 %v1312
    %v1352 = vunpack.c.l.b16 %v1313
    %v1353 = vunpack.c.l.b16 %v1314
    %v1354 = vunpack.c.l.b16 %v1315
    %v1355 = vpack.c.b16 %v1340, %v1339
    %v1356 = vpack.c.b16 %v1342, %v1341
    %v1357 = vpack.c.b16 %v1344, %v1343
    %v1358 = vpack.c.b16 %v1346, %v1345
    %v1359 = vpack.c.b16 %v1348, %v1347
    %v1360 = vpack.c.b16 %v1350, %v1349
    %v1361 = vpack.c.b16 %v1352, %v1351
    %v1362 = vpack.c.b16 %v1354, %v1353
    %1371 = vmatprep.subr.bf16.mxu0 0
    %1372 = vmatpush1.bf16.msra.mxu0 %v1355
    %1373 = vmatprep.subr.bf16.mxu0 0
    %1374 = vmatpush1.bf16.msra.mxu0 %v1356
    %1375 = vmatprep.subr.bf16.mxu0 0
    %1376 = vmatpush1.bf16.msra.mxu0 %v1357
    %1377 = vmatprep.subr.bf16.mxu0 0
    %1378 = vmatpush1.bf16.msra.mxu0 %v1358
    %1379 = vmatprep.subr.bf16.mxu0 0
    %1380 = vmatpush1.bf16.msra.mxu0 %v1359
    %1381 = vmatprep.subr.bf16.mxu0 0
    %1382 = vmatpush1.bf16.msra.mxu0 %v1360
    %1383 = vmatprep.subr.bf16.mxu0 0
    %1384 = vmatpush1.bf16.msra.mxu0 %v1361
    %1385 = vmatprep.subr.bf16.mxu0 0
    %1386 = vmatpush1.bf16.msra.mxu0 %v1362
    %1387 = vmatprep.subr.bf16.mxu0 0
    %1388 = vmatpush1.bf16.msra.mxu0 0
    %1389 = vmatprep.subr.bf16.mxu0 0
    %1390 = vmatpush1.bf16.msra.mxu0 0
    %1391 = vmatprep.subr.bf16.mxu0 0
    %1392 = vmatpush1.bf16.msra.mxu0 0
    %1393 = vmatprep.subr.bf16.mxu0 0
    %1394 = vmatpush1.bf16.msra.mxu0 0
    %1395 = vmatprep.subr.bf16.mxu0 0
    %1396 = vmatpush1.bf16.msra.mxu0 0
    %1397 = vmatprep.subr.bf16.mxu0 0
    %1398 = vmatpush1.bf16.msra.mxu0 0
    %1399 = vmatprep.subr.bf16.mxu0 0
    %1400 = vmatpush1.bf16.msra.mxu0 0
    %1401 = vmatprep.subr.bf16.mxu0 0
    %1402 = vmatpush1.bf16.msra.mxu0 0
    %1403 = vmatprep.mubr.bf16.mxu0 0
    %1404 = vmatmul.mubr.bf16.gmra.mrb[0].mxu0 %v1299
    %v1405 = vpop.f32.mrb[0].mxu0
    %v1406 = vadd.f32 %v1321, %v1405
    %v1407 = vpop.f32.mrb[0].mxu0
    %v1408 = vpop.f32.mrb[0].mxu0
    %v1409 = vpop.f32.mrb[0].mxu0
    %1410 = vdwg.mxu0
    %v1411 = vmax.f32 %v1406, 0.0
    %v1412 = vpack.c.bf16 %v1411, %v1411
    %v1413 = vld [vmem:[#allocation19] sm:$0xf]
    %v1414 = vld [vmem:[#allocation19 + $0x4] sm:$0xf]
    %v1415 = vld [vmem:[#allocation19 + $0x8] sm:$0xf]
    %v1416 = vld [vmem:[#allocation19 + $0xc] sm:$0xf]
    %v1417 = vld [vmem:[#allocation19 + $0x10] sm:$0xf]
    %v1418 = vld [vmem:[#allocation19 + $0x14] sm:$0xf]
    %v1419 = vld [vmem:[#allocation19 + $0x18] sm:$0xf]
    %v1420 = vld [vmem:[#allocation19 + $0x1c] sm:$0xf]
    %v1421 = vld [vmem:[#allocation19 + $0x20] sm:$0xf]
    %v1422 = vld [vmem:[#allocation19 + $0x24] sm:$0xf]
    %v1423 = vld [vmem:[#allocation19 + $0x28] sm:$0xf]
    %v1424 = vld [vmem:[#allocation19 + $0x2c] sm:$0xf]
    %v1425 = vld [vmem:[#allocation19 + $0x30] sm:$0xf]
    %v1426 = vld [vmem:[#allocation19 + $0x34] sm:$0xf]
    %v1427 = vld [vmem:[#allocation19 + $0x38] sm:$0xf]
    %v1428 = vld [vmem:[#allocation19 + $0x3c] sm:$0xf]
    %v1429 = vld [vmem:[#allocation20] sm:$0x1]
    %v1431 = vlaneseq
    %v1432 = vshrl.u32 %v1431, 7
    %v1433 = vsub.s32 0, %v1432
    %v1434 = vrot.slane %v1429, %v1433
    %v1452 = vunpack.c.l.b16 %v1413
    %v1453 = vunpack.c.l.b16 %v1414
    %v1454 = vunpack.c.l.b16 %v1415
    %v1455 = vunpack.c.l.b16 %v1416
    %v1456 = vunpack.c.l.b16 %v1417
    %v1457 = vunpack.c.l.b16 %v1418
    %v1458 = vunpack.c.l.b16 %v1419
    %v1459 = vunpack.c.l.b16 %v1420
    %v1460 = vunpack.c.l.b16 %v1421
    %v1461 = vunpack.c.l.b16 %v1422
    %v1462 = vunpack.c.l.b16 %v1423
    %v1463 = vunpack.c.l.b16 %v1424
    %v1464 = vunpack.c.l.b16 %v1425
    %v1465 = vunpack.c.l.b16 %v1426
    %v1466 = vunpack.c.l.b16 %v1427
    %v1467 = vunpack.c.l.b16 %v1428
    %v1468 = vpack.c.b16 %v1453, %v1452
    %v1469 = vpack.c.b16 %v1455, %v1454
    %v1470 = vpack.c.b16 %v1457, %v1456
    %v1471 = vpack.c.b16 %v1459, %v1458
    %v1472 = vpack.c.b16 %v1461, %v1460
    %v1473 = vpack.c.b16 %v1463, %v1462
    %v1474 = vpack.c.b16 %v1465, %v1464
    %v1475 = vpack.c.b16 %v1467, %v1466
    %1484 = vmatprep.subr.bf16.mxu0 0
    %1485 = vmatpush1.bf16.msra.mxu0 %v1468
    %1486 = vmatprep.subr.bf16.mxu0 0
    %1487 = vmatpush1.bf16.msra.mxu0 %v1469
    %1488 = vmatprep.subr.bf16.mxu0 0
    %1489 = vmatpush1.bf16.msra.mxu0 %v1470
    %1490 = vmatprep.subr.bf16.mxu0 0
    %1491 = vmatpush1.bf16.msra.mxu0 %v1471
    %1492 = vmatprep.subr.bf16.mxu0 0
    %1493 = vmatpush1.bf16.msra.mxu0 %v1472
    %1494 = vmatprep.subr.bf16.mxu0 0
    %1495 = vmatpush1.bf16.msra.mxu0 %v1473
    %1496 = vmatprep.subr.bf16.mxu0 0
    %1497 = vmatpush1.bf16.msra.mxu0 %v1474
    %1498 = vmatprep.subr.bf16.mxu0 0
    %1499 = vmatpush1.bf16.msra.mxu0 %v1475
    %1500 = vmatprep.subr.bf16.mxu0 0
    %1501 = vmatpush1.bf16.msra.mxu0 0
    %1502 = vmatprep.subr.bf16.mxu0 0
    %1503 = vmatpush1.bf16.msra.mxu0 0
    %1504 = vmatprep.subr.bf16.mxu0 0
    %1505 = vmatpush1.bf16.msra.mxu0 0
    %1506 = vmatprep.subr.bf16.mxu0 0
    %1507 = vmatpush1.bf16.msra.mxu0 0
    %1508 = vmatprep.subr.bf16.mxu0 0
    %1509 = vmatpush1.bf16.msra.mxu0 0
    %1510 = vmatprep.subr.bf16.mxu0 0
    %1511 = vmatpush1.bf16.msra.mxu0 0
    %1512 = vmatprep.subr.bf16.mxu0 0
    %1513 = vmatpush1.bf16.msra.mxu0 0
    %1514 = vmatprep.subr.bf16.mxu0 0
    %1515 = vmatpush1.bf16.msra.mxu0 0
    %1516 = vmatprep.mubr.bf16.mxu0 0
    %1517 = vmatmul.mubr.bf16.gmra.mrb[0].mxu0 %v1412
    %v1518 = vpop.f32.mrb[0].mxu0
    %v1519 = vadd.f32 %v1434, %v1518
    %v1520 = vpop.f32.mrb[0].mxu0
    %v1521 = vpop.f32.mrb[0].mxu0
    %v1522 = vpop.f32.mrb[0].mxu0
    %1523 = vdwg.mxu0
    %v1524 = vadd.f32 %v1298, %v1519
    %v1525 = vld [vmem:[#allocation25] sm:$0x1]
    %v1526 = vld [vmem:[#allocation26] sm:$0x1]
    %1527 = vadd.xlane.f32.xlu0 %v1524
    %v1528 = vpop.xlane.xlu0 %1527
    %v1529 = vmul.f32 %v1528, 0.03125
    %v1530 = vsub.f32 %v1524, %v1529
    %v1531 = vsel %vm442, %v1530, 0.0
    %v1532 = vmul.f32 %v1531, %v1531
    %1533 = vadd.xlane.f32.xlu0 %v1532
    %v1534 = vpop.xlane.xlu0 %1533
    %v1535 = vmul.f32 %v1534, 0.03125
    %v1536 = vadd.f32 %v1535, 1e-05
    %v1537 = vrsqrt.pop %v1536
    %v1538 = vmul.f32 %v1531, %v1537
    %v1540 = vlaneseq
    %v1541 = vshrl.u32 %v1540, 7
    %v1542 = vsub.s32 0, %v1541
    %v1543 = vrot.slane %v1525, %v1542
    %v1545 = vmul.f32 %v1538, %v1543
    %v1547 = vlaneseq
    %v1548 = vshrl.u32 %v1547, 7
    %v1549 = vsub.s32 0, %v1548
    %v1550 = vrot.slane %v1526, %v1549
    %v1552 = vadd.f32 %v1545, %v1550
    %v1553 = vpack.c.bf16 %v1552, %v1552
    %s1554 = scalar_lea.vmem [#allocation11], 384
    %v1555 = vld [vmem:[%s1554] sm:$0xff]
    %v1556 = vld [vmem:[%s1554 + $0x8] sm:$0xff]
    %v1557 = vld [vmem:[%s1554 + $0x10] sm:$0xff]
    %v1558 = vld [vmem:[%s1554 + $0x18] sm:$0xff]
    %v1559 = vld [vmem:[%s1554 + $0x20] sm:$0xff]
    %v1560 = vld [vmem:[%s1554 + $0x28] sm:$0xff]
    %v1561 = vld [vmem:[%s1554 + $0x30] sm:$0xff]
    %v1562 = vld [vmem:[%s1554 + $0x38] sm:$0xff]
    %v1563 = vld [vmem:[%s1554 + $0x40] sm:$0xff]
    %v1564 = vld [vmem:[%s1554 + $0x48] sm:$0xff]
    %v1565 = vld [vmem:[%s1554 + $0x50] sm:$0xff]
    %v1566 = vld [vmem:[%s1554 + $0x58] sm:$0xff]
    %v1567 = vld [vmem:[%s1554 + $0x60] sm:$0xff]
    %v1568 = vld [vmem:[%s1554 + $0x68] sm:$0xff]
    %v1569 = vld [vmem:[%s1554 + $0x70] sm:$0xff]
    %v1570 = vld [vmem:[%s1554 + $0x78] sm:$0xff]
    %v1571 = vld [vmem:[%s1554 + $0x80] sm:$0xff]
    %v1572 = vld [vmem:[%s1554 + $0x88] sm:$0xff]
    %v1573 = vld [vmem:[%s1554 + $0x90] sm:$0xff]
    %v1574 = vld [vmem:[%s1554 + $0x98] sm:$0xff]
    %v1575 = vld [vmem:[%s1554 + $0xa0] sm:$0xff]
    %v1576 = vld [vmem:[%s1554 + $0xa8] sm:$0xff]
    %v1577 = vld [vmem:[%s1554 + $0xb0] sm:$0xff]
    %v1578 = vld [vmem:[%s1554 + $0xb8] sm:$0xff]
    %v1579 = vld [vmem:[%s1554 + $0xc0] sm:$0xff]
    %v1580 = vld [vmem:[%s1554 + $0xc8] sm:$0xff]
    %v1581 = vld [vmem:[%s1554 + $0xd0] sm:$0xff]
    %v1582 = vld [vmem:[%s1554 + $0xd8] sm:$0xff]
    %v1583 = vld [vmem:[%s1554 + $0xe0] sm:$0xff]
    %v1584 = vld [vmem:[%s1554 + $0xe8] sm:$0xff]
    %v1585 = vld [vmem:[%s1554 + $0xf0] sm:$0xff]
    %v1586 = vld [vmem:[%s1554 + $0xf8] sm:$0xff]
    %v1587 = vld [vmem:[%s1554 + $0x100] sm:$0xff]
    %v1588 = vld [vmem:[%s1554 + $0x108] sm:$0xff]
    %v1589 = vld [vmem:[%s1554 + $0x110] sm:$0xff]
    %v1590 = vld [vmem:[%s1554 + $0x118] sm:$0xff]
    %v1591 = vld [vmem:[%s1554 + $0x120] sm:$0xff]
    %v1592 = vld [vmem:[%s1554 + $0x128] sm:$0xff]
    %v1593 = vld [vmem:[%s1554 + $0x130] sm:$0xff]
    %v1594 = vld [vmem:[%s1554 + $0x138] sm:$0xff]
    %v1595 = vld [vmem:[%s1554 + $0x140] sm:$0xff]
    %v1596 = vld [vmem:[%s1554 + $0x148] sm:$0xff]
    %v1597 = vld [vmem:[%s1554 + $0x150] sm:$0xff]
    %v1598 = vld [vmem:[%s1554 + $0x158] sm:$0xff]
    %v1599 = vld [vmem:[%s1554 + $0x160] sm:$0xff]
    %v1600 = vld [vmem:[%s1554 + $0x168] sm:$0xff]
    %v1601 = vld [vmem:[%s1554 + $0x170] sm:$0xff]
    %v1602 = vld [vmem:[%s1554 + $0x178] sm:$0xff]
    %s1603 = scalar_lea.vmem [#allocation13], 6
    %v1604 = vld [vmem:[%s1603] sm:$0x3f]
    %v1606 = vlaneseq
    %v1607 = vshrl.u32 %v1606, 7
    %v1608 = vsub.s32 0, %v1607
    %v1609 = vrot.slane %v1604, %v1608
    %v1610 = vlaneseq
    %v1611 = vshrl.u32 %v1610, 7
    %v1612 = vsub.s32 1, %v1611
    %v1613 = vrot.slane %v1604, %v1612
    %v1614 = vlaneseq
    %v1615 = vshrl.u32 %v1614, 7
    %v1616 = vsub.s32 2, %v1615
    %v1617 = vrot.slane %v1604, %v1616
    %v1618 = vlaneseq
    %v1619 = vshrl.u32 %v1618, 7
    %v1620 = vsub.s32 3, %v1619
    %v1621 = vrot.slane %v1604, %v1620
    %v1622 = vlaneseq
    %v1623 = vshrl.u32 %v1622, 7
    %v1624 = vsub.s32 4, %v1623
    %v1625 = vrot.slane %v1604, %v1624
    %v1626 = vlaneseq
    %v1627 = vshrl.u32 %v1626, 7
    %v1628 = vsub.s32 5, %v1627
    %v1629 = vrot.slane %v1604, %v1628
    %v1684 = vunpack.c.l.b16 %v1555
    %v1685 = vunpack.c.h.b16 %v1555
    %v1686 = vunpack.c.l.b16 %v1556
    %v1687 = vunpack.c.h.b16 %v1556
    %v1688 = vunpack.c.l.b16 %v1557
    %v1689 = vunpack.c.h.b16 %v1557
    %v1690 = vunpack.c.l.b16 %v1558
    %v1691 = vunpack.c.h.b16 %v1558
    %v1692 = vunpack.c.l.b16 %v1559
    %v1693 = vunpack.c.h.b16 %v1559
    %v1694 = vunpack.c.l.b16 %v1560
    %v1695 = vunpack.c.h.b16 %v1560
    %v1696 = vunpack.c.l.b16 %v1561
    %v1697 = vunpack.c.h.b16 %v1561
    %v1698 = vunpack.c.l.b16 %v1562
    %v1699 = vunpack.c.h.b16 %v1562
    %v1700 = vunpack.c.l.b16 %v1563
    %v1701 = vunpack.c.h.b16 %v1563
    %v1702 = vunpack.c.l.b16 %v1564
    %v1703 = vunpack.c.h.b16 %v1564
    %v1704 = vunpack.c.l.b16 %v1565
    %v1705 = vunpack.c.h.b16 %v1565
    %v1706 = vunpack.c.l.b16 %v1566
    %v1707 = vunpack.c.h.b16 %v1566
    %v1708 = vunpack.c.l.b16 %v1567
    %v1709 = vunpack.c.h.b16 %v1567
    %v1710 = vunpack.c.l.b16 %v1568
    %v1711 = vunpack.c.h.b16 %v1568
    %v1712 = vunpack.c.l.b16 %v1569
    %v1713 = vunpack.c.h.b16 %v1569
    %v1714 = vunpack.c.l.b16 %v1570
    %v1715 = vunpack.c.h.b16 %v1570
    %v1716 = vunpack.c.l.b16 %v1571
    %v1717 = vunpack.c.h.b16 %v1571
    %v1718 = vunpack.c.l.b16 %v1572
    %v1719 = vunpack.c.h.b16 %v1572
    %v1720 = vunpack.c.l.b16 %v1573
    %v1721 = vunpack.c.h.b16 %v1573
    %v1722 = vunpack.c.l.b16 %v1574
    %v1723 = vunpack.c.h.b16 %v1574
    %v1724 = vunpack.c.l.b16 %v1575
    %v1725 = vunpack.c.h.b16 %v1575
    %v1726 = vunpack.c.l.b16 %v1576
    %v1727 = vunpack.c.h.b16 %v1576
    %v1728 = vunpack.c.l.b16 %v1577
    %v1729 = vunpack.c.h.b16 %v1577
    %v1730 = vunpack.c.l.b16 %v1578
    %v1731 = vunpack.c.h.b16 %v1578
    %v1732 = vunpack.c.l.b16 %v1579
    %v1733 = vunpack.c.h.b16 %v1579
    %v1734 = vunpack.c.l.b16 %v1580
    %v1735 = vunpack.c.h.b16 %v1580
    %v1736 = vunpack.c.l.b16 %v1581
    %v1737 = vunpack.c.h.b16 %v1581
    %v1738 = vunpack.c.l.b16 %v1582
    %v1739 = vunpack.c.h.b16 %v1582
    %v1740 = vunpack.c.l.b16 %v1583
    %v1741 = vunpack.c.h.b16 %v1583
    %v1742 = vunpack.c.l.b16 %v1584
    %v1743 = vunpack.c.h.b16 %v1584
    %v1744 = vunpack.c.l.b16 %v1585
    %v1745 = vunpack.c.h.b16 %v1585
    %v1746 = vunpack.c.l.b16 %v1586
    %v1747 = vunpack.c.h.b16 %v1586
    %v1748 = vunpack.c.l.b16 %v1587
    %v1749 = vunpack.c.h.b16 %v1587
    %v1750 = vunpack.c.l.b16 %v1588
    %v1751 = vunpack.c.h.b16 %v1588
    %v1752 = vunpack.c.l.b16 %v1589
    %v1753 = vunpack.c.h.b16 %v1589
    %v1754 = vunpack.c.l.b16 %v1590
    %v1755 = vunpack.c.h.b16 %v1590
    %v1756 = vunpack.c.l.b16 %v1591
    %v1757 = vunpack.c.h.b16 %v1591
    %v1758 = vunpack.c.l.b16 %v1592
    %v1759 = vunpack.c.h.b16 %v1592
    %v1760 = vunpack.c.l.b16 %v1593
    %v1761 = vunpack.c.h.b16 %v1593
    %v1762 = vunpack.c.l.b16 %v1594
    %v1763 = vunpack.c.h.b16 %v1594
    %v1764 = vunpack.c.l.b16 %v1595
    %v1765 = vunpack.c.h.b16 %v1595
    %v1766 = vunpack.c.l.b16 %v1596
    %v1767 = vunpack.c.h.b16 %v1596
    %v1768 = vunpack.c.l.b16 %v1597
    %v1769 = vunpack.c.h.b16 %v1597
    %v1770 = vunpack.c.l.b16 %v1598
    %v1771 = vunpack.c.h.b16 %v1598
    %v1772 = vunpack.c.l.b16 %v1599
    %v1773 = vunpack.c.h.b16 %v1599
    %v1774 = vunpack.c.l.b16 %v1600
    %v1775 = vunpack.c.h.b16 %v1600
    %v1776 = vunpack.c.l.b16 %v1601
    %v1777 = vunpack.c.h.b16 %v1601
    %v1778 = vunpack.c.l.b16 %v1602
    %v1779 = vunpack.c.h.b16 %v1602
    %v1780 = vpack.c.b16 %v1690, %v1684
    %v1781 = vpack.c.b16 %v1691, %v1685
    %v1782 = vpack.c.b16 %v1692, %v1686
    %v1783 = vpack.c.b16 %v1693, %v1687
    %v1784 = vpack.c.b16 %v1694, %v1688
    %v1785 = vpack.c.b16 %v1695, %v1689
    %v1786 = vpack.c.b16 %v1702, %v1696
    %v1787 = vpack.c.b16 %v1703, %v1697
    %v1788 = vpack.c.b16 %v1704, %v1698
    %v1789 = vpack.c.b16 %v1705, %v1699
    %v1790 = vpack.c.b16 %v1706, %v1700
    %v1791 = vpack.c.b16 %v1707, %v1701
    %v1792 = vpack.c.b16 %v1714, %v1708
    %v1793 = vpack.c.b16 %v1715, %v1709
    %v1794 = vpack.c.b16 %v1716, %v1710
    %v1795 = vpack.c.b16 %v1717, %v1711
    %v1796 = vpack.c.b16 %v1718, %v1712
    %v1797 = vpack.c.b16 %v1719, %v1713
    %v1798 = vpack.c.b16 %v1726, %v1720
    %v1799 = vpack.c.b16 %v1727, %v1721
    %v1800 = vpack.c.b16 %v1728, %v1722
    %v1801 = vpack.c.b16 %v1729, %v1723
    %v1802 = vpack.c.b16 %v1730, %v1724
    %v1803 = vpack.c.b16 %v1731, %v1725
    %v1804 = vpack.c.b16 %v1738, %v1732
    %v1805 = vpack.c.b16 %v1739, %v1733
    %v1806 = vpack.c.b16 %v1740, %v1734
    %v1807 = vpack.c.b16 %v1741, %v1735
    %v1808 = vpack.c.b16 %v1742, %v1736
    %v1809 = vpack.c.b16 %v1743, %v1737
    %v1810 = vpack.c.b16 %v1750, %v1744
    %v1811 = vpack.c.b16 %v1751, %v1745
    %v1812 = vpack.c.b16 %v1752, %v1746
    %v1813 = vpack.c.b16 %v1753, %v1747
    %v1814 = vpack.c.b16 %v1754, %v1748
    %v1815 = vpack.c.b16 %v1755, %v1749
    %v1816 = vpack.c.b16 %v1762, %v1756
    %v1817 = vpack.c.b16 %v1763, %v1757
    %v1818 = vpack.c.b16 %v1764, %v1758
    %v1819 = vpack.c.b16 %v1765, %v1759
    %v1820 = vpack.c.b16 %v1766, %v1760
    %v1821 = vpack.c.b16 %v1767, %v1761
    %v1822 = vpack.c.b16 %v1774, %v1768
    %v1823 = vpack.c.b16 %v1775, %v1769
    %v1824 = vpack.c.b16 %v1776, %v1770
    %v1825 = vpack.c.b16 %v1777, %v1771
    %v1826 = vpack.c.b16 %v1778, %v1772
    %v1827 = vpack.c.b16 %v1779, %v1773
    %1876 = vmatprep.subr.bf16.mxu0 %v1781
    %1877 = vmatpush1.bf16.msra.mxu0 %v1780
    %1878 = vmatprep.subr.bf16.mxu0 %v1787
    %1879 = vmatpush1.bf16.msra.mxu0 %v1786
    %1880 = vmatprep.subr.bf16.mxu0 %v1793
    %1881 = vmatpush1.bf16.msra.mxu0 %v1792
    %1882 = vmatprep.subr.bf16.mxu0 %v1799
    %1883 = vmatpush1.bf16.msra.mxu0 %v1798
    %1884 = vmatprep.subr.bf16.mxu0 %v1805
    %1885 = vmatpush1.bf16.msra.mxu0 %v1804
    %1886 = vmatprep.subr.bf16.mxu0 %v1811
    %1887 = vmatpush1.bf16.msra.mxu0 %v1810
    %1888 = vmatprep.subr.bf16.mxu0 %v1817
    %1889 = vmatpush1.bf16.msra.mxu0 %v1816
    %1890 = vmatprep.subr.bf16.mxu0 %v1823
    %1891 = vmatpush1.bf16.msra.mxu0 %v1822
    %1892 = vmatprep.subr.bf16.mxu0 0
    %1893 = vmatpush1.bf16.msra.mxu0 0
    %1894 = vmatprep.subr.bf16.mxu0 0
    %1895 = vmatpush1.bf16.msra.mxu0 0
    %1896 = vmatprep.subr.bf16.mxu0 0
    %1897 = vmatpush1.bf16.msra.mxu0 0
    %1898 = vmatprep.subr.bf16.mxu0 0
    %1899 = vmatpush1.bf16.msra.mxu0 0
    %1900 = vmatprep.subr.bf16.mxu0 0
    %1901 = vmatpush1.bf16.msra.mxu0 0
    %1902 = vmatprep.subr.bf16.mxu0 0
    %1903 = vmatpush1.bf16.msra.mxu0 0
    %1904 = vmatprep.subr.bf16.mxu0 0
    %1905 = vmatpush1.bf16.msra.mxu0 0
    %1906 = vmatprep.subr.bf16.mxu0 0
    %1907 = vmatpush1.bf16.msra.mxu0 0
    %1908 = vmatprep.mubr.bf16.mxu0 0
    %1909 = vmatmul.mubr.bf16.gmra.mrb[0].mxu0 %v1553
    %v1910 = vpop.f32.mrb[0].mxu0
    %v1911 = vadd.f32 %v1609, %v1910
    %v1912 = vpop.f32.mrb[0].mxu0
    %v1913 = vadd.f32 %v1613, %v1912
    %v1914 = vpop.f32.mrb[0].mxu0
    %v1915 = vpop.f32.mrb[0].mxu0
    %1916 = vdwg.mxu0
    %1917 = vmatprep.subr.bf16.mxu0 %v1783
    %1918 = vmatpush1.bf16.msra.mxu0 %v1782
    %1919 = vmatprep.subr.bf16.mxu0 %v1789
    %1920 = vmatpush1.bf16.msra.mxu0 %v1788
    %1921 = vmatprep.subr.bf16.mxu0 %v1795
    %1922 = vmatpush1.bf16.msra.mxu0 %v1794
    %1923 = vmatprep.subr.bf16.mxu0 %v1801
    %1924 = vmatpush1.bf16.msra.mxu0 %v1800
    %1925 = vmatprep.subr.bf16.mxu0 %v1807
    %1926 = vmatpush1.bf16.msra.mxu0 %v1806
    %1927 = vmatprep.subr.bf16.mxu0 %v1813
    %1928 = vmatpush1.bf16.msra.mxu0 %v1812
    %1929 = vmatprep.subr.bf16.mxu0 %v1819
    %1930 = vmatpush1.bf16.msra.mxu0 %v1818
    %1931 = vmatprep.subr.bf16.mxu0 %v1825
    %1932 = vmatpush1.bf16.msra.mxu0 %v1824
    %1933 = vmatprep.subr.bf16.mxu0 0
    %1934 = vmatpush1.bf16.msra.mxu0 0
    %1935 = vmatprep.subr.bf16.mxu0 0
    %1936 = vmatpush1.bf16.msra.mxu0 0
    %1937 = vmatprep.subr.bf16.mxu0 0
    %1938 = vmatpush1.bf16.msra.mxu0 0
    %1939 = vmatprep.subr.bf16.mxu0 0
    %1940 = vmatpush1.bf16.msra.mxu0 0
    %1941 = vmatprep.subr.bf16.mxu0 0
    %1942 = vmatpush1.bf16.msra.mxu0 0
    %1943 = vmatprep.subr.bf16.mxu0 0
    %1944 = vmatpush1.bf16.msra.mxu0 0
    %1945 = vmatprep.subr.bf16.mxu0 0
    %1946 = vmatpush1.bf16.msra.mxu0 0
    %1947 = vmatprep.subr.bf16.mxu0 0
    %1948 = vmatpush1.bf16.msra.mxu0 0
    %1949 = vmatprep.mubr.bf16.mxu0 0
    %1950 = vmatmul.mubr.bf16.gmra.mrb[0].mxu0 %v1553
    %v1951 = vpop.f32.mrb[0].mxu0
    %v1952 = vadd.f32 %v1617, %v1951
    %v1953 = vpop.f32.mrb[0].mxu0
    %v1954 = vadd.f32 %v1621, %v1953
    %v1955 = vpop.f32.mrb[0].mxu0
    %v1956 = vpop.f32.mrb[0].mxu0
    %1957 = vdwg.mxu0
    %1958 = vmatprep.subr.bf16.mxu0 %v1785
    %1959 = vmatpush1.bf16.msra.mxu0 %v1784
    %1960 = vmatprep.subr.bf16.mxu0 %v1791
    %1961 = vmatpush1.bf16.msra.mxu0 %v1790
    %1962 = vmatprep.subr.bf16.mxu0 %v1797
    %1963 = vmatpush1.bf16.msra.mxu0 %v1796
    %1964 = vmatprep.subr.bf16.mxu0 %v1803
    %1965 = vmatpush1.bf16.msra.mxu0 %v1802
    %1966 = vmatprep.subr.bf16.mxu0 %v1809
    %1967 = vmatpush1.bf16.msra.mxu0 %v1808
    %1968 = vmatprep.subr.bf16.mxu0 %v1815
    %1969 = vmatpush1.bf16.msra.mxu0 %v1814
    %1970 = vmatprep.subr.bf16.mxu0 %v1821
    %1971 = vmatpush1.bf16.msra.mxu0 %v1820
    %1972 = vmatprep.subr.bf16.mxu0 %v1827
    %1973 = vmatpush1.bf16.msra.mxu0 %v1826
    %1974 = vmatprep.subr.bf16.mxu0 0
    %1975 = vmatpush1.bf16.msra.mxu0 0
    %1976 = vmatprep.subr.bf16.mxu0 0
    %1977 = vmatpush1.bf16.msra.mxu0 0
    %1978 = vmatprep.subr.bf16.mxu0 0
    %1979 = vmatpush1.bf16.msra.mxu0 0
    %1980 = vmatprep.subr.bf16.mxu0 0
    %1981 = vmatpush1.bf16.msra.mxu0 0
    %1982 = vmatprep.subr.bf16.mxu0 0
    %1983 = vmatpush1.bf16.msra.mxu0 0
    %1984 = vmatprep.subr.bf16.mxu0 0
    %1985 = vmatpush1.bf16.msra.mxu0 0
    %1986 = vmatprep.subr.bf16.mxu0 0
    %1987 = vmatpush1.bf16.msra.mxu0 0
    %1988 = vmatprep.subr.bf16.mxu0 0
    %1989 = vmatpush1.bf16.msra.mxu0 0
    %1990 = vmatprep.mubr.bf16.mxu0 0
    %1991 = vmatmul.mubr.bf16.gmra.mrb[0].mxu0 %v1553
    %v1992 = vpop.f32.mrb[0].mxu0
    %v1993 = vadd.f32 %v1625, %v1992
    %v1994 = vpop.f32.mrb[0].mxu0
    %v1995 = vadd.f32 %v1629, %v1994
    %v1996 = vpop.f32.mrb[0].mxu0
    %v1997 = vpop.f32.mrb[0].mxu0
    %1998 = vdwg.mxu0
    %v1999 = vpack.c.bf16 %v1911, %v1911
    %v2000 = vpack.c.bf16 %v1952, %v1952
    %2001 = vmatprep.subr.bf16.mxu0 0
    %2002 = vmatpush1.bf16.xpose.msra.mxu0 %v2000
    %2003 = vmatprep.subr.bf16.mxu0 0
    %2004 = vmatpush1.bf16.xpose.msra.mxu0 0
    %2005 = vmatprep.subr.bf16.mxu0 0
    %2006 = vmatpush1.bf16.xpose.msra.mxu0 0
    %2007 = vmatprep.subr.bf16.mxu0 0
    %2008 = vmatpush1.bf16.xpose.msra.mxu0 0
    %2009 = vmatprep.subr.bf16.mxu0 0
    %2010 = vmatpush1.bf16.xpose.msra.mxu0 0
    %2011 = vmatprep.subr.bf16.mxu0 0
    %2012 = vmatpush1.bf16.xpose.msra.mxu0 0
    %2013 = vmatprep.subr.bf16.mxu0 0
    %2014 = vmatpush1.bf16.xpose.msra.mxu0 0
    %2015 = vmatprep.subr.bf16.mxu0 0
    %2016 = vmatpush1.bf16.xpose.msra.mxu0 0
    %2017 = vmatprep.subr.bf16.mxu0 0
    %2018 = vmatpush1.bf16.xpose.msra.mxu0 0
    %2019 = vmatprep.subr.bf16.mxu0 0
    %2020 = vmatpush1.bf16.xpose.msra.mxu0 0
    %2021 = vmatprep.subr.bf16.mxu0 0
    %2022 = vmatpush1.bf16.xpose.msra.mxu0 0
    %2023 = vmatprep.subr.bf16.mxu0 0
    %2024 = vmatpush1.bf16.xpose.msra.mxu0 0
    %2025 = vmatprep.subr.bf16.mxu0 0
    %2026 = vmatpush1.bf16.xpose.msra.mxu0 0
    %2027 = vmatprep.subr.bf16.mxu0 0
    %2028 = vmatpush1.bf16.xpose.msra.mxu0 0
    %2029 = vmatprep.subr.bf16.mxu0 0
    %2030 = vmatpush1.bf16.xpose.msra.mxu0 0
    %2031 = vmatprep.subr.bf16.mxu0 0
    %2032 = vmatpush1.bf16.xpose.msra.mxu0 0
    %2033 = vmatprep.mubr.bf16.mxu0 0
    %2034 = vmatmul.mubr.bf16.gmra.mrb[0].mxu0 %v1999
    %v2035 = vpop.f32.mrb[0].mxu0
    %v2036 = vadd.f32 0.0, %v2035
    %v2037 = vpop.f32.mrb[0].mxu0
    %v2038 = vpop.f32.mrb[0].mxu0
    %v2039 = vpop.f32.mrb[0].mxu0
    %2040 = vdwg.mxu0
    %v2041 = vmul.f32 %v2036, 0.25
    %v2042 = vsel %vm930, %v2041, -inf
    %2043 = vmax.xlane.f32.xlu0 %v2042
    %v2044 = vpop.xlane.xlu0 %2043
    %v2045 = vsub.f32 %v2041, %v2044
    %v2046 = vmul.f32 %v2045, 1.442695
    %v2047 = vpow.pop %v2046
    %v2048 = vsel %vm930, %v2047, 0.0
    %2049 = vadd.xlane.f32.xlu0 %v2048
    %v2050 = vpop.xlane.xlu0 %2049
    %v2051 = vrcp.pop %v2050
    %v2052 = vmul.f32 %v2047, %v2051
    %v2053 = vpack.c.bf16 %v2052, %v2052
    %v2054 = vpack.c.bf16 %v1993, %v1993
    %v2056 = vsel %vm930, %v2053, 0
    %v2059 = vsel %vm947, %v2054, 0
    %2061 = vmatprep.subr.bf16.mxu0 0
    %2062 = vmatpush1.bf16.msra.mxu0 %v2059
    %2063 = vmatprep.subr.bf16.mxu0 0
    %2064 = vmatpush1.bf16.msra.mxu0 0
    %2065 = vmatprep.subr.bf16.mxu0 0
    %2066 = vmatpush1.bf16.msra.mxu0 0
    %2067 = vmatprep.subr.bf16.mxu0 0
    %2068 = vmatpush1.bf16.msra.mxu0 0
    %2069 = vmatprep.subr.bf16.mxu0 0
    %2070 = vmatpush1.bf16.msra.mxu0 0
    %2071 = vmatprep.subr.bf16.mxu0 0
    %2072 = vmatpush1.bf16.msra.mxu0 0
    %2073 = vmatprep.subr.bf16.mxu0 0
    %2074 = vmatpush1.bf16.msra.mxu0 0
    %2075 = vmatprep.subr.bf16.mxu0 0
    %2076 = vmatpush1.bf16.msra.mxu0 0
    %2077 = vmatprep.subr.bf16.mxu0 0
    %2078 = vmatpush1.bf16.msra.mxu0 0
    %2079 = vmatprep.subr.bf16.mxu0 0
    %2080 = vmatpush1.bf16.msra.mxu0 0
    %2081 = vmatprep.subr.bf16.mxu0 0
    %2082 = vmatpush1.bf16.msra.mxu0 0
    %2083 = vmatprep.subr.bf16.mxu0 0
    %2084 = vmatpush1.bf16.msra.mxu0 0
    %2085 = vmatprep.subr.bf16.mxu0 0
    %2086 = vmatpush1.bf16.msra.mxu0 0
    %2087 = vmatprep.subr.bf16.mxu0 0
    %2088 = vmatpush1.bf16.msra.mxu0 0
    %2089 = vmatprep.subr.bf16.mxu0 0
    %2090 = vmatpush1.bf16.msra.mxu0 0
    %2091 = vmatprep.subr.bf16.mxu0 0
    %2092 = vmatpush1.bf16.msra.mxu0 0
    %2093 = vmatprep.mubr.bf16.mxu0 0
    %2094 = vmatmul.mubr.bf16.gmra.mrb[0].mxu0 %v2056
    %v2095 = vpop.f32.mrb[0].mxu0
    %v2096 = vadd.f32 0.0, %v2095
    %v2097 = vpop.f32.mrb[0].mxu0
    %v2098 = vpop.f32.mrb[0].mxu0
    %v2099 = vpop.f32.mrb[0].mxu0
    %2100 = vdwg.mxu0
    %v2101 = vpack.c.bf16 %v1913, %v1913
    %v2102 = vpack.c.bf16 %v1954, %v1954
    %2103 = vmatprep.subr.bf16.mxu0 0
    %2104 = vmatpush1.bf16.xpose.msra.mxu0 %v2102
    %2105 = vmatprep.subr.bf16.mxu0 0
    %2106 = vmatpush1.bf16.xpose.msra.mxu0 0
    %2107 = vmatprep.subr.bf16.mxu0 0
    %2108 = vmatpush1.bf16.xpose.msra.mxu0 0
    %2109 = vmatprep.subr.bf16.mxu0 0
    %2110 = vmatpush1.bf16.xpose.msra.mxu0 0
    %2111 = vmatprep.subr.bf16.mxu0 0
    %2112 = vmatpush1.bf16.xpose.msra.mxu0 0
    %2113 = vmatprep.subr.bf16.mxu0 0
    %2114 = vmatpush1.bf16.xpose.msra.mxu0 0
    %2115 = vmatprep.subr.bf16.mxu0 0
    %2116 = vmatpush1.bf16.xpose.msra.mxu0 0
    %2117 = vmatprep.subr.bf16.mxu0 0
    %2118 = vmatpush1.bf16.xpose.msra.mxu0 0
    %2119 = vmatprep.subr.bf16.mxu0 0
    %2120 = vmatpush1.bf16.xpose.msra.mxu0 0
    %2121 = vmatprep.subr.bf16.mxu0 0
    %2122 = vmatpush1.bf16.xpose.msra.mxu0 0
    %2123 = vmatprep.subr.bf16.mxu0 0
    %2124 = vmatpush1.bf16.xpose.msra.mxu0 0
    %2125 = vmatprep.subr.bf16.mxu0 0
    %2126 = vmatpush1.bf16.xpose.msra.mxu0 0
    %2127 = vmatprep.subr.bf16.mxu0 0
    %2128 = vmatpush1.bf16.xpose.msra.mxu0 0
    %2129 = vmatprep.subr.bf16.mxu0 0
    %2130 = vmatpush1.bf16.xpose.msra.mxu0 0
    %2131 = vmatprep.subr.bf16.mxu0 0
    %2132 = vmatpush1.bf16.xpose.msra.mxu0 0
    %2133 = vmatprep.subr.bf16.mxu0 0
    %2134 = vmatpush1.bf16.xpose.msra.mxu0 0
    %2135 = vmatprep.mubr.bf16.mxu0 0
    %2136 = vmatmul.mubr.bf16.gmra.mrb[0].mxu0 %v2101
    %v2137 = vpop.f32.mrb[0].mxu0
    %v2138 = vadd.f32 0.0, %v2137
    %v2139 = vpop.f32.mrb[0].mxu0
    %v2140 = vpop.f32.mrb[0].mxu0
    %v2141 = vpop.f32.mrb[0].mxu0
    %2142 = vdwg.mxu0
    %v2143 = vmul.f32 %v2138, 0.25
    %v2144 = vsel %vm930, %v2143, -inf
    %2145 = vmax.xlane.f32.xlu0 %v2144
    %v2146 = vpop.xlane.xlu0 %2145
    %v2147 = vsub.f32 %v2143, %v2146
    %v2148 = vmul.f32 %v2147, 1.442695
    %v2149 = vpow.pop %v2148
    %v2150 = vsel %vm930, %v2149, 0.0
    %2151 = vadd.xlane.f32.xlu0 %v2150
    %v2152 = vpop.xlane.xlu0 %2151
    %v2153 = vrcp.pop %v2152
    %v2154 = vmul.f32 %v2149, %v2153
    %v2155 = vpack.c.bf16 %v2154, %v2154
    %v2156 = vpack.c.bf16 %v1995, %v1995
    %v2158 = vsel %vm930, %v2155, 0
    %v2161 = vsel %vm947, %v2156, 0
    %2163 = vmatprep.subr.bf16.mxu0 0
    %2164 = vmatpush1.bf16.msra.mxu0 %v2161
    %2165 = vmatprep.subr.bf16.mxu0 0
    %2166 = vmatpush1.bf16.msra.mxu0 0
    %2167 = vmatprep.subr.bf16.mxu0 0
    %2168 = vmatpush1.bf16.msra.mxu0 0
    %2169 = vmatprep.subr.bf16.mxu0 0
    %2170 = vmatpush1.bf16.msra.mxu0 0
    %2171 = vmatprep.subr.bf16.mxu0 0
    %2172 = vmatpush1.bf16.msra.mxu0 0
    %2173 = vmatprep.subr.bf16.mxu0 0
    %2174 = vmatpush1.bf16.msra.mxu0 0
    %2175 = vmatprep.subr.bf16.mxu0 0
    %2176 = vmatpush1.bf16.msra.mxu0 0
    %2177 = vmatprep.subr.bf16.mxu0 0
    %2178 = vmatpush1.bf16.msra.mxu0 0
    %2179 = vmatprep.subr.bf16.mxu0 0
    %2180 = vmatpush1.bf16.msra.mxu0 0
    %2181 = vmatprep.subr.bf16.mxu0 0
    %2182 = vmatpush1.bf16.msra.mxu0 0
    %2183 = vmatprep.subr.bf16.mxu0 0
    %2184 = vmatpush1.bf16.msra.mxu0 0
    %2185 = vmatprep.subr.bf16.mxu0 0
    %2186 = vmatpush1.bf16.msra.mxu0 0
    %2187 = vmatprep.subr.bf16.mxu0 0
    %2188 = vmatpush1.bf16.msra.mxu0 0
    %2189 = vmatprep.subr.bf16.mxu0 0
    %2190 = vmatpush1.bf16.msra.mxu0 0
    %2191 = vmatprep.subr.bf16.mxu0 0
    %2192 = vmatpush1.bf16.msra.mxu0 0
    %2193 = vmatprep.subr.bf16.mxu0 0
    %2194 = vmatpush1.bf16.msra.mxu0 0
    %2195 = vmatprep.mubr.bf16.mxu0 0
    %2196 = vmatmul.mubr.bf16.gmra.mrb[0].mxu0 %v2158
    %v2197 = vpop.f32.mrb[0].mxu0
    %v2198 = vadd.f32 0.0, %v2197
    %v2199 = vpop.f32.mrb[0].mxu0
    %v2200 = vpop.f32.mrb[0].mxu0
    %v2201 = vpop.f32.mrb[0].mxu0
    %2202 = vdwg.mxu0
    %v2203 = vpack.c.bf16 %v2096, %v2096
    %v2204 = vpack.c.bf16 %v2198, %v2198
    %s2205 = scalar_lea.vmem [#allocation14], 128
    %v2206 = vld [vmem:[%s2205] sm:$0xf]
    %v2207 = vld [vmem:[%s2205 + $0x4] sm:$0xf]
    %v2208 = vld [vmem:[%s2205 + $0x8] sm:$0xf]
    %v2209 = vld [vmem:[%s2205 + $0xc] sm:$0xf]
    %v2210 = vld [vmem:[%s2205 + $0x10] sm:$0xf]
    %v2211 = vld [vmem:[%s2205 + $0x14] sm:$0xf]
    %v2212 = vld [vmem:[%s2205 + $0x18] sm:$0xf]
    %v2213 = vld [vmem:[%s2205 + $0x1c] sm:$0xf]
    %v2214 = vld [vmem:[%s2205 + $0x20] sm:$0xf]
    %v2215 = vld [vmem:[%s2205 + $0x24] sm:$0xf]
    %v2216 = vld [vmem:[%s2205 + $0x28] sm:$0xf]
    %v2217 = vld [vmem:[%s2205 + $0x2c] sm:$0xf]
    %v2218 = vld [vmem:[%s2205 + $0x30] sm:$0xf]
    %v2219 = vld [vmem:[%s2205 + $0x34] sm:$0xf]
    %v2220 = vld [vmem:[%s2205 + $0x38] sm:$0xf]
    %v2221 = vld [vmem:[%s2205 + $0x3c] sm:$0xf]
    %v2222 = vld [vmem:[%s2205 + $0x40] sm:$0xf]
    %v2223 = vld [vmem:[%s2205 + $0x44] sm:$0xf]
    %v2224 = vld [vmem:[%s2205 + $0x48] sm:$0xf]
    %v2225 = vld [vmem:[%s2205 + $0x4c] sm:$0xf]
    %v2226 = vld [vmem:[%s2205 + $0x50] sm:$0xf]
    %v2227 = vld [vmem:[%s2205 + $0x54] sm:$0xf]
    %v2228 = vld [vmem:[%s2205 + $0x58] sm:$0xf]
    %v2229 = vld [vmem:[%s2205 + $0x5c] sm:$0xf]
    %v2230 = vld [vmem:[%s2205 + $0x60] sm:$0xf]
    %v2231 = vld [vmem:[%s2205 + $0x64] sm:$0xf]
    %v2232 = vld [vmem:[%s2205 + $0x68] sm:$0xf]
    %v2233 = vld [vmem:[%s2205 + $0x6c] sm:$0xf]
    %v2234 = vld [vmem:[%s2205 + $0x70] sm:$0xf]
    %v2235 = vld [vmem:[%s2205 + $0x74] sm:$0xf]
    %v2236 = vld [vmem:[%s2205 + $0x78] sm:$0xf]
    %v2237 = vld [vmem:[%s2205 + $0x7c] sm:$0xf]
    %s2238 = scalar_lea.vmem %s8, 1
    %v2239 = vld [vmem:[%s2238] sm:$0x1]
    %v2241 = vlaneseq
    %v2242 = vshrl.u32 %v2241, 7
    %v2243 = vsub.s32 0, %v2242
    %v2244 = vrot.slane %v2239, %v2243
    %v2278 = vunpack.c.l.b16 %v2206
    %v2279 = vunpack.c.l.b16 %v2207
    %v2280 = vunpack.c.l.b16 %v2208
    %v2281 = vunpack.c.l.b16 %v2209
    %v2282 = vunpack.c.l.b16 %v2210
    %v2283 = vunpack.c.l.b16 %v2211
    %v2284 = vunpack.c.l.b16 %v2212
    %v2285 = vunpack.c.l.b16 %v2213
    %v2286 = vunpack.c.l.b16 %v2214
    %v2287 = vunpack.c.l.b16 %v2215
    %v2288 = vunpack.c.l.b16 %v2216
    %v2289 = vunpack.c.l.b16 %v2217
    %v2290 = vunpack.c.l.b16 %v2218
    %v2291 = vunpack.c.l.b16 %v2219
    %v2292 = vunpack.c.l.b16 %v2220
    %v2293 = vunpack.c.l.b16 %v2221
    %v2294 = vunpack.c.l.b16 %v2222
    %v2295 = vunpack.c.l.b16 %v2223
    %v2296 = vunpack.c.l.b16 %v2224
    %v2297 = vunpack.c.l.b16 %v2225
    %v2298 = vunpack.c.l.b16 %v2226
    %v2299 = vunpack.c.l.b16 %v2227
    %v2300 = vunpack.c.l.b16 %v2228
    %v2301 = vunpack.c.l.b16 %v2229
    %v2302 = vunpack.c.l.b16 %v2230
    %v2303 = vunpack.c.l.b16 %v2231
    %v2304 = vunpack.c.l.b16 %v2232
    %v2305 = vunpack.c.l.b16 %v2233
    %v2306 = vunpack.c.l.b16 %v2234
    %v2307 = vunpack.c.l.b16 %v2235
    %v2308 = vunpack.c.l.b16 %v2236
    %v2309 = vunpack.c.l.b16 %v2237
    %v2310 = vpack.c.b16 %v2279, %v2278
    %v2311 = vpack.c.b16 %v2281, %v2280
    %v2312 = vpack.c.b16 %v2283, %v2282
    %v2313 = vpack.c.b16 %v2285, %v2284
    %v2314 = vpack.c.b16 %v2287, %v2286
    %v2315 = vpack.c.b16 %v2289, %v2288
    %v2316 = vpack.c.b16 %v2291, %v2290
    %v2317 = vpack.c.b16 %v2293, %v2292
    %v2318 = vpack.c.b16 %v2295, %v2294
    %v2319 = vpack.c.b16 %v2297, %v2296
    %v2320 = vpack.c.b16 %v2299, %v2298
    %v2321 = vpack.c.b16 %v2301, %v2300
    %v2322 = vpack.c.b16 %v2303, %v2302
    %v2323 = vpack.c.b16 %v2305, %v2304
    %v2324 = vpack.c.b16 %v2307, %v2306
    %v2325 = vpack.c.b16 %v2309, %v2308
    %2342 = vmatprep.subr.bf16.mxu0 0
    %2343 = vmatpush1.bf16.msra.mxu0 %v2310
    %2344 = vmatprep.subr.bf16.mxu0 0
    %2345 = vmatpush1.bf16.msra.mxu0 %v2311
    %2346 = vmatprep.subr.bf16.mxu0 0
    %2347 = vmatpush1.bf16.msra.mxu0 %v2312
    %2348 = vmatprep.subr.bf16.mxu0 0
    %2349 = vmatpush1.bf16.msra.mxu0 %v2313
    %2350 = vmatprep.subr.bf16.mxu0 0
    %2351 = vmatpush1.bf16.msra.mxu0 %v2314
    %2352 = vmatprep.subr.bf16.mxu0 0
    %2353 = vmatpush1.bf16.msra.mxu0 %v2315
    %2354 = vmatprep.subr.bf16.mxu0 0
    %2355 = vmatpush1.bf16.msra.mxu0 %v2316
    %2356 = vmatprep.subr.bf16.mxu0 0
    %2357 = vmatpush1.bf16.msra.mxu0 %v2317
    %2358 = vmatprep.subr.bf16.mxu0 0
    %2359 = vmatpush1.bf16.msra.mxu0 %v2318
    %2360 = vmatprep.subr.bf16.mxu0 0
    %2361 = vmatpush1.bf16.msra.mxu0 %v2319
    %2362 = vmatprep.subr.bf16.mxu0 0
    %2363 = vmatpush1.bf16.msra.mxu0 %v2320
    %2364 = vmatprep.subr.bf16.mxu0 0
    %2365 = vmatpush1.bf16.msra.mxu0 %v2321
    %2366 = vmatprep.subr.bf16.mxu0 0
    %2367 = vmatpush1.bf16.msra.mxu0 %v2322
    %2368 = vmatprep.subr.bf16.mxu0 0
    %2369 = vmatpush1.bf16.msra.mxu0 %v2323
    %2370 = vmatprep.subr.bf16.mxu0 0
    %2371 = vmatpush1.bf16.msra.mxu0 %v2324
    %2372 = vmatprep.subr.bf16.mxu0 0
    %2373 = vmatpush1.bf16.msra.mxu0 %v2325
    %2374 = vmatprep.mubr.bf16.mxu0 %v2204
    %2375 = vmatmul.mubr.bf16.gmra.mrb[0].mxu0 %v2203
    %v2376 = vpop.f32.mrb[0].mxu0
    %v2377 = vadd.f32 %v2244, %v2376
    %v2378 = vpop.f32.mrb[0].mxu0
    %v2379 = vpop.f32.mrb[0].mxu0
    %v2380 = vpop.f32.mrb[0].mxu0
    %2381 = vdwg.mxu0
    %v2382 = vadd.f32 %v1552, %v2377
    %s2383 = scalar_lea.vmem [#allocation22], 1
    %v2384 = vld [vmem:[%s2383] sm:$0x1]
    %s2385 = scalar_lea.vmem [#allocation23], 1
    %v2386 = vld [vmem:[%s2385] sm:$0x1]
    %2387 = vadd.xlane.f32.xlu0 %v2382
    %v2388 = vpop.xlane.xlu0 %2387
    %v2389 = vmul.f32 %v2388, 0.03125
    %v2390 = vsub.f32 %v2382, %v2389
    %v2391 = vsel %vm442, %v2390, 0.0
    %v2392 = vmul.f32 %v2391, %v2391
    %2393 = vadd.xlane.f32.xlu0 %v2392
    %v2394 = vpop.xlane.xlu0 %2393
    %v2395 = vmul.f32 %v2394, 0.03125
    %v2396 = vadd.f32 %v2395, 1e-05
    %v2397 = vrsqrt.pop %v2396
    %v2398 = vmul.f32 %v2391, %v2397
    %v2400 = vlaneseq
    %v2401 = vshrl.u32 %v2400, 7
    %v2402 = vsub.s32 0, %v2401
    %v2403 = vrot.slane %v2384, %v2402
    %v2405 = vmul.f32 %v2398, %v2403
    %v2407 = vlaneseq
    %v2408 = vshrl.u32 %v2407, 7
    %v2409 = vsub.s32 0, %v2408
    %v2410 = vrot.slane %v2386, %v2409
    %v2412 = vadd.f32 %v2405, %v2410
    %v2413 = vpack.c.bf16 %v2412, %v2412
    %s2414 = scalar_lea.vmem [#allocation16], 64
    %v2415 = vld [vmem:[%s2414] sm:$0xf]
    %v2416 = vld [vmem:[%s2414 + $0x4] sm:$0xf]
    %v2417 = vld [vmem:[%s2414 + $0x8] sm:$0xf]
    %v2418 = vld [vmem:[%s2414 + $0xc] sm:$0xf]
    %v2419 = vld [vmem:[%s2414 + $0x10] sm:$0xf]
    %v2420 = vld [vmem:[%s2414 + $0x14] sm:$0xf]
    %v2421 = vld [vmem:[%s2414 + $0x18] sm:$0xf]
    %v2422 = vld [vmem:[%s2414 + $0x1c] sm:$0xf]
    %v2423 = vld [vmem:[%s2414 + $0x20] sm:$0xf]
    %v2424 = vld [vmem:[%s2414 + $0x24] sm:$0xf]
    %v2425 = vld [vmem:[%s2414 + $0x28] sm:$0xf]
    %v2426 = vld [vmem:[%s2414 + $0x2c] sm:$0xf]
    %v2427 = vld [vmem:[%s2414 + $0x30] sm:$0xf]
    %v2428 = vld [vmem:[%s2414 + $0x34] sm:$0xf]
    %v2429 = vld [vmem:[%s2414 + $0x38] sm:$0xf]
    %v2430 = vld [vmem:[%s2414 + $0x3c] sm:$0xf]
    %s2431 = scalar_lea.vmem [#allocation17], 1
    %v2432 = vld [vmem:[%s2431] sm:$0x1]
    %v2434 = vlaneseq
    %v2435 = vshrl.u32 %v2434, 7
    %v2436 = vsub.s32 0, %v2435
    %v2437 = vrot.slane %v2432, %v2436
    %v2455 = vunpack.c.l.b16 %v2415
    %v2456 = vunpack.c.l.b16 %v2416
    %v2457 = vunpack.c.l.b16 %v2417
    %v2458 = vunpack.c.l.b16 %v2418
    %v2459 = vunpack.c.l.b16 %v2419
    %v2460 = vunpack.c.l.b16 %v2420
    %v2461 = vunpack.c.l.b16 %v2421
    %v2462 = vunpack.c.l.b16 %v2422
    %v2463 = vunpack.c.l.b16 %v2423
    %v2464 = vunpack.c.l.b16 %v2424
    %v2465 = vunpack.c.l.b16 %v2425
    %v2466 = vunpack.c.l.b16 %v2426
    %v2467 = vunpack.c.l.b16 %v2427
    %v2468 = vunpack.c.l.b16 %v2428
    %v2469 = vunpack.c.l.b16 %v2429
    %v2470 = vunpack.c.l.b16 %v2430
    %v2471 = vpack.c.b16 %v2456, %v2455
    %v2472 = vpack.c.b16 %v2458, %v2457
    %v2473 = vpack.c.b16 %v2460, %v2459
    %v2474 = vpack.c.b16 %v2462, %v2461
    %v2475 = vpack.c.b16 %v2464, %v2463
    %v2476 = vpack.c.b16 %v2466, %v2465
    %v2477 = vpack.c.b16 %v2468, %v2467
    %v2478 = vpack.c.b16 %v2470, %v2469
    %2487 = vmatprep.subr.bf16.mxu0 0
    %2488 = vmatpush1.bf16.msra.mxu0 %v2471
    %2489 = vmatprep.subr.bf16.mxu0 0
    %2490 = vmatpush1.bf16.msra.mxu0 %v2472
    %2491 = vmatprep.subr.bf16.mxu0 0
    %2492 = vmatpush1.bf16.msra.mxu0 %v2473
    %2493 = vmatprep.subr.bf16.mxu0 0
    %2494 = vmatpush1.bf16.msra.mxu0 %v2474
    %2495 = vmatprep.subr.bf16.mxu0 0
    %2496 = vmatpush1.bf16.msra.mxu0 %v2475
    %2497 = vmatprep.subr.bf16.mxu0 0
    %2498 = vmatpush1.bf16.msra.mxu0 %v2476
    %2499 = vmatprep.subr.bf16.mxu0 0
    %2500 = vmatpush1.bf16.msra.mxu0 %v2477
    %2501 = vmatprep.subr.bf16.mxu0 0
    %2502 = vmatpush1.bf16.msra.mxu0 %v2478
    %2503 = vmatprep.subr.bf16.mxu0 0
    %2504 = vmatpush1.bf16.msra.mxu0 0
    %2505 = vmatprep.subr.bf16.mxu0 0
    %2506 = vmatpush1.bf16.msra.mxu0 0
    %2507 = vmatprep.subr.bf16.mxu0 0
    %2508 = vmatpush1.bf16.msra.mxu0 0
    %2509 = vmatprep.subr.bf16.mxu0 0
    %2510 = vmatpush1.bf16.msra.mxu0 0
    %2511 = vmatprep.subr.bf16.mxu0 0
    %2512 = vmatpush1.bf16.msra.mxu0 0
    %2513 = vmatprep.subr.bf16.mxu0 0
    %2514 = vmatpush1.bf16.msra.mxu0 0
    %2515 = vmatprep.subr.bf16.mxu0 0
    %2516 = vmatpush1.bf16.msra.mxu0 0
    %2517 = vmatprep.subr.bf16.mxu0 0
    %2518 = vmatpush1.bf16.msra.mxu0 0
    %2519 = vmatprep.mubr.bf16.mxu0 0
    %2520 = vmatmul.mubr.bf16.gmra.mrb[0].mxu0 %v2413
    %v2521 = vpop.f32.mrb[0].mxu0
    %v2522 = vadd.f32 %v2437, %v2521
    %v2523 = vpop.f32.mrb[0].mxu0
    %v2524 = vpop.f32.mrb[0].mxu0
    %v2525 = vpop.f32.mrb[0].mxu0
    %2526 = vdwg.mxu0
    %v2527 = vmax.f32 %v2522, 0.0
    %v2528 = vpack.c.bf16 %v2527, %v2527
    %s2529 = scalar_lea.vmem [#allocation19], 64
    %v2530 = vld [vmem:[%s2529] sm:$0xf]
    %v2531 = vld [vmem:[%s2529 + $0x4] sm:$0xf]
    %v2532 = vld [vmem:[%s2529 + $0x8] sm:$0xf]
    %v2533 = vld [vmem:[%s2529 + $0xc] sm:$0xf]
    %v2534 = vld [vmem:[%s2529 + $0x10] sm:$0xf]
    %v2535 = vld [vmem:[%s2529 + $0x14] sm:$0xf]
    %v2536 = vld [vmem:[%s2529 + $0x18] sm:$0xf]
    %v2537 = vld [vmem:[%s2529 + $0x1c] sm:$0xf]
    %v2538 = vld [vmem:[%s2529 + $0x20] sm:$0xf]
    %v2539 = vld [vmem:[%s2529 + $0x24] sm:$0xf]
    %v2540 = vld [vmem:[%s2529 + $0x28] sm:$0xf]
    %v2541 = vld [vmem:[%s2529 + $0x2c] sm:$0xf]
    %v2542 = vld [vmem:[%s2529 + $0x30] sm:$0xf]
    %v2543 = vld [vmem:[%s2529 + $0x34] sm:$0xf]
    %v2544 = vld [vmem:[%s2529 + $0x38] sm:$0xf]
    %v2545 = vld [vmem:[%s2529 + $0x3c] sm:$0xf]
    %s2546 = scalar_lea.vmem [#allocation20], 1
    %v2547 = vld [vmem:[%s2546] sm:$0x1]
    %v2549 = vlaneseq
    %v2550 = vshrl.u32 %v2549, 7
    %v2551 = vsub.s32 0, %v2550
    %v2552 = vrot.slane %v2547, %v2551
    %v2570 = vunpack.c.l.b16 %v2530
    %v2571 = vunpack.c.l.b16 %v2531
    %v2572 = vunpack.c.l.b16 %v2532
    %v2573 = vunpack.c.l.b16 %v2533
    %v2574 = vunpack.c.l.b16 %v2534
    %v2575 = vunpack.c.l.b16 %v2535
    %v2576 = vunpack.c.l.b16 %v2536
    %v2577 = vunpack.c.l.b16 %v2537
    %v2578 = vunpack.c.l.b16 %v2538
    %v2579 = vunpack.c.l.b16 %v2539
    %v2580 = vunpack.c.l.b16 %v2540
    %v2581 = vunpack.c.l.b16 %v2541
    %v2582 = vunpack.c.l.b16 %v2542
    %v2583 = vunpack.c.l.b16 %v2543
    %v2584 = vunpack.c.l.b16 %v2544
    %v2585 = vunpack.c.l.b16 %v2545
    %v2586 = vpack.c.b16 %v2571, %v2570
    %v2587 = vpack.c.b16 %v2573, %v2572
    %v2588 = vpack.c.b16 %v2575, %v2574
    %v2589 = vpack.c.b16 %v2577, %v2576
    %v2590 = vpack.c.b16 %v2579, %v2578
    %v2591 = vpack.c.b16 %v2581, %v2580
    %v2592 = vpack.c.b16 %v2583, %v2582
    %v2593 = vpack.c.b16 %v2585, %v2584
    %2602 = vmatprep.subr.bf16.mxu0 0
    %2603 = vmatpush1.bf16.msra.mxu0 %v2586
    %2604 = vmatprep.subr.bf16.mxu0 0
    %2605 = vmatpush1.bf16.msra.mxu0 %v2587
    %2606 = vmatprep.subr.bf16.mxu0 0
    %2607 = vmatpush1.bf16.msra.mxu0 %v2588
    %2608 = vmatprep.subr.bf16.mxu0 0
    %2609 = vmatpush1.bf16.msra.mxu0 %v2589
    %2610 = vmatprep.subr.bf16.mxu0 0
    %2611 = vmatpush1.bf16.msra.mxu0 %v2590
    %2612 = vmatprep.subr.bf16.mxu0 0
    %2613 = vmatpush1.bf16.msra.mxu0 %v2591
    %2614 = vmatprep.subr.bf16.mxu0 0
    %2615 = vmatpush1.bf16.msra.mxu0 %v2592
    %2616 = vmatprep.subr.bf16.mxu0 0
    %2617 = vmatpush1.bf16.msra.mxu0 %v2593
    %2618 = vmatprep.subr.bf16.mxu0 0
    %2619 = vmatpush1.bf16.msra.mxu0 0
    %2620 = vmatprep.subr.bf16.mxu0 0
    %2621 = vmatpush1.bf16.msra.mxu0 0
    %2622 = vmatprep.subr.bf16.mxu0 0
    %2623 = vmatpush1.bf16.msra.mxu0 0
    %2624 = vmatprep.subr.bf16.mxu0 0
    %2625 = vmatpush1.bf16.msra.mxu0 0
    %2626 = vmatprep.subr.bf16.mxu0 0
    %2627 = vmatpush1.bf16.msra.mxu0 0
    %2628 = vmatprep.subr.bf16.mxu0 0
    %2629 = vmatpush1.bf16.msra.mxu0 0
    %2630 = vmatprep.subr.bf16.mxu0 0
    %2631 = vmatpush1.bf16.msra.mxu0 0
    %2632 = vmatprep.subr.bf16.mxu0 0
    %2633 = vmatpush1.bf16.msra.mxu0 0
    %2634 = vmatprep.mubr.bf16.mxu0 0
    %2635 = vmatmul.mubr.bf16.gmra.mrb[0].mxu0 %v2528
    %v2636 = vpop.f32.mrb[0].mxu0
    %v2637 = vadd.f32 %v2552, %v2636
    %v2638 = vpop.f32.mrb[0].mxu0
    %v2639 = vpop.f32.mrb[0].mxu0
    %v2640 = vpop.f32.mrb[0].mxu0
    %2641 = vdwg.mxu0
    %v2642 = vadd.f32 %v2412, %v2637
    %s2643 = scalar_lea.vmem [#allocation25], 1
    %v2644 = vld [vmem:[%s2643] sm:$0x1]
    %s2645 = scalar_lea.vmem [#allocation26], 1
    %v2646 = vld [vmem:[%s2645] sm:$0x1]
    %2647 = vadd.xlane.f32.xlu0 %v2642
    %v2648 = vpop.xlane.xlu0 %2647
    %v2649 = vmul.f32 %v2648, 0.03125
    %v2650 = vsub.f32 %v2642, %v2649
    %v2651 = vsel %vm442, %v2650, 0.0
    %v2652 = vmul.f32 %v2651, %v2651
    %2653 = vadd.xlane.f32.xlu0 %v2652
    %v2654 = vpop.xlane.xlu0 %2653
    %v2655 = vmul.f32 %v2654, 0.03125
    %v2656 = vadd.f32 %v2655, 1e-05
    %v2657 = vrsqrt.pop %v2656
    %v2658 = vmul.f32 %v2651, %v2657
    %v2660 = vlaneseq
    %v2661 = vshrl.u32 %v2660, 7
    %v2662 = vsub.s32 0, %v2661
    %v2663 = vrot.slane %v2644, %v2662
    %v2665 = vmul.f32 %v2658, %v2663
    %v2667 = vlaneseq
    %v2668 = vshrl.u32 %v2667, 7
    %v2669 = vsub.s32 0, %v2668
    %v2670 = vrot.slane %v2646, %v2669
    %v2672 = vadd.f32 %v2665, %v2670
    %v2673 = vld [vmem:[#allocation5] sm:$0xff]
    %v2674 = vadd.f32 %v2673, %v428
    %s2675 = scalar_lea.vmem [#allocation10], 1
    %v2676 = vld [vmem:[%s2675] sm:$0x1]
    %v2678 = vlaneseq
    %v2679 = vshrl.u32 %v2678, 7
    %v2680 = vsub.s32 0, %v2679
    %v2681 = vrot.slane %v2676, %v2680
    %v2683 = vadd.f32 %v2674, %v2681
    %vm2684 = vcmp.lt.s32.totalorder %v292, 56
    %v2685 = vpack.c.bf16 %v2683, %v2683
    %s2686 = scalar_lea.vmem [#allocation11], 768
    %v2687 = vld [vmem:[%s2686] sm:$0xff]
    %v2688 = vld [vmem:[%s2686 + $0x8] sm:$0xff]
    %v2689 = vld [vmem:[%s2686 + $0x10] sm:$0xff]
    %v2690 = vld [vmem:[%s2686 + $0x18] sm:$0xff]
    %v2691 = vld [vmem:[%s2686 + $0x20] sm:$0xff]
    %v2692 = vld [vmem:[%s2686 + $0x28] sm:$0xff]
    %v2693 = vld [vmem:[%s2686 + $0x30] sm:$0xff]
    %v2694 = vld [vmem:[%s2686 + $0x38] sm:$0xff]
    %v2695 = vld [vmem:[%s2686 + $0x40] sm:$0xff]
    %v2696 = vld [vmem:[%s2686 + $0x48] sm:$0xff]
    %v2697 = vld [vmem:[%s2686 + $0x50] sm:$0xff]
    %v2698 = vld [vmem:[%s2686 + $0x58] sm:$0xff]
    %v2699 = vld [vmem:[%s2686 + $0x60] sm:$0xff]
    %v2700 = vld [vmem:[%s2686 + $0x68] sm:$0xff]
    %v2701 = vld [vmem:[%s2686 + $0x70] sm:$0xff]
    %v2702 = vld [vmem:[%s2686 + $0x78] sm:$0xff]
    %v2703 = vld [vmem:[%s2686 + $0x80] sm:$0xff]
    %v2704 = vld [vmem:[%s2686 + $0x88] sm:$0xff]
    %v2705 = vld [vmem:[%s2686 + $0x90] sm:$0xff]
    %v2706 = vld [vmem:[%s2686 + $0x98] sm:$0xff]
    %v2707 = vld [vmem:[%s2686 + $0xa0] sm:$0xff]
    %v2708 = vld [vmem:[%s2686 + $0xa8] sm:$0xff]
    %v2709 = vld [vmem:[%s2686 + $0xb0] sm:$0xff]
    %v2710 = vld [vmem:[%s2686 + $0xb8] sm:$0xff]
    %v2711 = vld [vmem:[%s2686 + $0xc0] sm:$0xff]
    %v2712 = vld [vmem:[%s2686 + $0xc8] sm:$0xff]
    %v2713 = vld [vmem:[%s2686 + $0xd0] sm:$0xff]
    %v2714 = vld [vmem:[%s2686 + $0xd8] sm:$0xff]
    %v2715 = vld [vmem:[%s2686 + $0xe0] sm:$0xff]
    %v2716 = vld [vmem:[%s2686 + $0xe8] sm:$0xff]
    %v2717 = vld [vmem:[%s2686 + $0xf0] sm:$0xff]
    %v2718 = vld [vmem:[%s2686 + $0xf8] sm:$0xff]
    %v2719 = vld [vmem:[%s2686 + $0x100] sm:$0xff]
    %v2720 = vld [vmem:[%s2686 + $0x108] sm:$0xff]
    %v2721 = vld [vmem:[%s2686 + $0x110] sm:$0xff]
    %v2722 = vld [vmem:[%s2686 + $0x118] sm:$0xff]
    %v2723 = vld [vmem:[%s2686 + $0x120] sm:$0xff]
    %v2724 = vld [vmem:[%s2686 + $0x128] sm:$0xff]
    %v2725 = vld [vmem:[%s2686 + $0x130] sm:$0xff]
    %v2726 = vld [vmem:[%s2686 + $0x138] sm:$0xff]
    %v2727 = vld [vmem:[%s2686 + $0x140] sm:$0xff]
    %v2728 = vld [vmem:[%s2686 + $0x148] sm:$0xff]
    %v2729 = vld [vmem:[%s2686 + $0x150] sm:$0xff]
    %v2730 = vld [vmem:[%s2686 + $0x158] sm:$0xff]
    %v2731 = vld [vmem:[%s2686 + $0x160] sm:$0xff]
    %v2732 = vld [vmem:[%s2686 + $0x168] sm:$0xff]
    %v2733 = vld [vmem:[%s2686 + $0x170] sm:$0xff]
    %v2734 = vld [vmem:[%s2686 + $0x178] sm:$0xff]
    %s2735 = scalar_lea.vmem [#allocation13], 12
    %v2736 = vld [vmem:[%s2735] sm:$0x3f]
    %v2738 = vlaneseq
    %v2739 = vshrl.u32 %v2738, 7
    %v2740 = vsub.s32 0, %v2739
    %v2741 = vrot.slane %v2736, %v2740
    %v2742 = vlaneseq
    %v2743 = vshrl.u32 %v2742, 7
    %v2744 = vsub.s32 1, %v2743
    %v2745 = vrot.slane %v2736, %v2744
    %v2746 = vlaneseq
    %v2747 = vshrl.u32 %v2746, 7
    %v2748 = vsub.s32 2, %v2747
    %v2749 = vrot.slane %v2736, %v2748
    %v2750 = vlaneseq
    %v2751 = vshrl.u32 %v2750, 7
    %v2752 = vsub.s32 3, %v2751
    %v2753 = vrot.slane %v2736, %v2752
    %v2754 = vlaneseq
    %v2755 = vshrl.u32 %v2754, 7
    %v2756 = vsub.s32 4, %v2755
    %v2757 = vrot.slane %v2736, %v2756
    %v2758 = vlaneseq
    %v2759 = vshrl.u32 %v2758, 7
    %v2760 = vsub.s32 5, %v2759
    %v2761 = vrot.slane %v2736, %v2760
    %v2816 = vunpack.c.l.b16 %v2687
    %v2817 = vunpack.c.h.b16 %v2687
    %v2818 = vunpack.c.l.b16 %v2688
    %v2819 = vunpack.c.h.b16 %v2688
    %v2820 = vunpack.c.l.b16 %v2689
    %v2821 = vunpack.c.h.b16 %v2689
    %v2822 = vunpack.c.l.b16 %v2690
    %v2823 = vunpack.c.h.b16 %v2690
    %v2824 = vunpack.c.l.b16 %v2691
    %v2825 = vunpack.c.h.b16 %v2691
    %v2826 = vunpack.c.l.b16 %v2692
    %v2827 = vunpack.c.h.b16 %v2692
    %v2828 = vunpack.c.l.b16 %v2693
    %v2829 = vunpack.c.h.b16 %v2693
    %v2830 = vunpack.c.l.b16 %v2694
    %v2831 = vunpack.c.h.b16 %v2694
    %v2832 = vunpack.c.l.b16 %v2695
    %v2833 = vunpack.c.h.b16 %v2695
    %v2834 = vunpack.c.l.b16 %v2696
    %v2835 = vunpack.c.h.b16 %v2696
    %v2836 = vunpack.c.l.b16 %v2697
    %v2837 = vunpack.c.h.b16 %v2697
    %v2838 = vunpack.c.l.b16 %v2698
    %v2839 = vunpack.c.h.b16 %v2698
    %v2840 = vunpack.c.l.b16 %v2699
    %v2841 = vunpack.c.h.b16 %v2699
    %v2842 = vunpack.c.l.b16 %v2700
    %v2843 = vunpack.c.h.b16 %v2700
    %v2844 = vunpack.c.l.b16 %v2701
    %v2845 = vunpack.c.h.b16 %v2701
    %v2846 = vunpack.c.l.b16 %v2702
    %v2847 = vunpack.c.h.b16 %v2702
    %v2848 = vunpack.c.l.b16 %v2703
    %v2849 = vunpack.c.h.b16 %v2703
    %v2850 = vunpack.c.l.b16 %v2704
    %v2851 = vunpack.c.h.b16 %v2704
    %v2852 = vunpack.c.l.b16 %v2705
    %v2853 = vunpack.c.h.b16 %v2705
    %v2854 = vunpack.c.l.b16 %v2706
    %v2855 = vunpack.c.h.b16 %v2706
    %v2856 = vunpack.c.l.b16 %v2707
    %v2857 = vunpack.c.h.b16 %v2707
    %v2858 = vunpack.c.l.b16 %v2708
    %v2859 = vunpack.c.h.b16 %v2708
    %v2860 = vunpack.c.l.b16 %v2709
    %v2861 = vunpack.c.h.b16 %v2709
    %v2862 = vunpack.c.l.b16 %v2710
    %v2863 = vunpack.c.h.b16 %v2710
    %v2864 = vunpack.c.l.b16 %v2711
    %v2865 = vunpack.c.h.b16 %v2711
    %v2866 = vunpack.c.l.b16 %v2712
    %v2867 = vunpack.c.h.b16 %v2712
    %v2868 = vunpack.c.l.b16 %v2713
    %v2869 = vunpack.c.h.b16 %v2713
    %v2870 = vunpack.c.l.b16 %v2714
    %v2871 = vunpack.c.h.b16 %v2714
    %v2872 = vunpack.c.l.b16 %v2715
    %v2873 = vunpack.c.h.b16 %v2715
    %v2874 = vunpack.c.l.b16 %v2716
    %v2875 = vunpack.c.h.b16 %v2716
    %v2876 = vunpack.c.l.b16 %v2717
    %v2877 = vunpack.c.h.b16 %v2717
    %v2878 = vunpack.c.l.b16 %v2718
    %v2879 = vunpack.c.h.b16 %v2718
    %v2880 = vunpack.c.l.b16 %v2719
    %v2881 = vunpack.c.h.b16 %v2719
    %v2882 = vunpack.c.l.b16 %v2720
    %v2883 = vunpack.c.h.b16 %v2720
    %v2884 = vunpack.c.l.b16 %v2721
    %v2885 = vunpack.c.h.b16 %v2721
    %v2886 = vunpack.c.l.b16 %v2722
    %v2887 = vunpack.c.h.b16 %v2722
    %v2888 = vunpack.c.l.b16 %v2723
    %v2889 = vunpack.c.h.b16 %v2723
    %v2890 = vunpack.c.l.b16 %v2724
    %v2891 = vunpack.c.h.b16 %v2724
    %v2892 = vunpack.c.l.b16 %v2725
    %v2893 = vunpack.c.h.b16 %v2725
    %v2894 = vunpack.c.l.b16 %v2726
    %v2895 = vunpack.c.h.b16 %v2726
    %v2896 = vunpack.c.l.b16 %v2727
    %v2897 = vunpack.c.h.b16 %v2727
    %v2898 = vunpack.c.l.b16 %v2728
    %v2899 = vunpack.c.h.b16 %v2728
    %v2900 = vunpack.c.l.b16 %v2729
    %v2901 = vunpack.c.h.b16 %v2729
    %v2902 = vunpack.c.l.b16 %v2730
    %v2903 = vunpack.c.h.b16 %v2730
    %v2904 = vunpack.c.l.b16 %v2731
    %v2905 = vunpack.c.h.b16 %v2731
    %v2906 = vunpack.c.l.b16 %v2732
    %v2907 = vunpack.c.h.b16 %v2732
    %v2908 = vunpack.c.l.b16 %v2733
    %v2909 = vunpack.c.h.b16 %v2733
    %v2910 = vunpack.c.l.b16 %v2734
    %v2911 = vunpack.c.h.b16 %v2734
    %v2912 = vpack.c.b16 %v2822, %v2816
    %v2913 = vpack.c.b16 %v2823, %v2817
    %v2914 = vpack.c.b16 %v2824, %v2818
    %v2915 = vpack.c.b16 %v2825, %v2819
    %v2916 = vpack.c.b16 %v2826, %v2820
    %v2917 = vpack.c.b16 %v2827, %v2821
    %v2918 = vpack.c.b16 %v2834, %v2828
    %v2919 = vpack.c.b16 %v2835, %v2829
    %v2920 = vpack.c.b16 %v2836, %v2830
    %v2921 = vpack.c.b16 %v2837, %v2831
    %v2922 = vpack.c.b16 %v2838, %v2832
    %v2923 = vpack.c.b16 %v2839, %v2833
    %v2924 = vpack.c.b16 %v2846, %v2840
    %v2925 = vpack.c.b16 %v2847, %v2841
    %v2926 = vpack.c.b16 %v2848, %v2842
    %v2927 = vpack.c.b16 %v2849, %v2843
    %v2928 = vpack.c.b16 %v2850, %v2844
    %v2929 = vpack.c.b16 %v2851, %v2845
    %v2930 = vpack.c.b16 %v2858, %v2852
    %v2931 = vpack.c.b16 %v2859, %v2853
    %v2932 = vpack.c.b16 %v2860, %v2854
    %v2933 = vpack.c.b16 %v2861, %v2855
    %v2934 = vpack.c.b16 %v2862, %v2856
    %v2935 = vpack.c.b16 %v2863, %v2857
    %v2936 = vpack.c.b16 %v2870, %v2864
    %v2937 = vpack.c.b16 %v2871, %v2865
    %v2938 = vpack.c.b16 %v2872, %v2866
    %v2939 = vpack.c.b16 %v2873, %v2867
    %v2940 = vpack.c.b16 %v2874, %v2868
    %v2941 = vpack.c.b16 %v2875, %v2869
    %v2942 = vpack.c.b16 %v2882, %v2876
    %v2943 = vpack.c.b16 %v2883, %v2877
    %v2944 = vpack.c.b16 %v2884, %v2878
    %v2945 = vpack.c.b16 %v2885, %v2879
    %v2946 = vpack.c.b16 %v2886, %v2880
    %v2947 = vpack.c.b16 %v2887, %v2881
    %v2948 = vpack.c.b16 %v2894, %v2888
    %v2949 = vpack.c.b16 %v2895, %v2889
    %v2950 = vpack.c.b16 %v2896, %v2890
    %v2951 = vpack.c.b16 %v2897, %v2891
    %v2952 = vpack.c.b16 %v2898, %v2892
    %v2953 = vpack.c.b16 %v2899, %v2893
    %v2954 = vpack.c.b16 %v2906, %v2900
    %v2955 = vpack.c.b16 %v2907, %v2901
    %v2956 = vpack.c.b16 %v2908, %v2902
    %v2957 = vpack.c.b16 %v2909, %v2903
    %v2958 = vpack.c.b16 %v2910, %v2904
    %v2959 = vpack.c.b16 %v2911, %v2905
    %3008 = vmatprep.subr.bf16.mxu0 %v2913
    %3009 = vmatpush1.bf16.msra.mxu0 %v2912
    %3010 = vmatprep.subr.bf16.mxu0 %v2919
    %3011 = vmatpush1.bf16.msra.mxu0 %v2918
    %3012 = vmatprep.subr.bf16.mxu0 %v2925
    %3013 = vmatpush1.bf16.msra.mxu0 %v2924
    %3014 = vmatprep.subr.bf16.mxu0 %v2931
    %3015 = vmatpush1.bf16.msra.mxu0 %v2930
    %3016 = vmatprep.subr.bf16.mxu0 %v2937
    %3017 = vmatpush1.bf16.msra.mxu0 %v2936
    %3018 = vmatprep.subr.bf16.mxu0 %v2943
    %3019 = vmatpush1.bf16.msra.mxu0 %v2942
    %3020 = vmatprep.subr.bf16.mxu0 %v2949
    %3021 = vmatpush1.bf16.msra.mxu0 %v2948
    %3022 = vmatprep.subr.bf16.mxu0 %v2955
    %3023 = vmatpush1.bf16.msra.mxu0 %v2954
    %3024 = vmatprep.subr.bf16.mxu0 0
    %3025 = vmatpush1.bf16.msra.mxu0 0
    %3026 = vmatprep.subr.bf16.mxu0 0
    %3027 = vmatpush1.bf16.msra.mxu0 0
    %3028 = vmatprep.subr.bf16.mxu0 0
    %3029 = vmatpush1.bf16.msra.mxu0 0
    %3030 = vmatprep.subr.bf16.mxu0 0
    %3031 = vmatpush1.bf16.msra.mxu0 0
    %3032 = vmatprep.subr.bf16.mxu0 0
    %3033 = vmatpush1.bf16.msra.mxu0 0
    %3034 = vmatprep.subr.bf16.mxu0 0
    %3035 = vmatpush1.bf16.msra.mxu0 0
    %3036 = vmatprep.subr.bf16.mxu0 0
    %3037 = vmatpush1.bf16.msra.mxu0 0
    %3038 = vmatprep.subr.bf16.mxu0 0
    %3039 = vmatpush1.bf16.msra.mxu0 0
    %3040 = vmatprep.mubr.bf16.mxu0 0
    %3041 = vmatmul.mubr.bf16.gmra.mrb[0].mxu0 %v2685
    %v3042 = vpop.f32.mrb[0].mxu0
    %v3043 = vadd.f32 %v2741, %v3042
    %v3044 = vpop.f32.mrb[0].mxu0
    %v3045 = vadd.f32 %v2745, %v3044
    %v3046 = vpop.f32.mrb[0].mxu0
    %v3047 = vpop.f32.mrb[0].mxu0
    %3048 = vdwg.mxu0
    %3049 = vmatprep.subr.bf16.mxu0 %v2915
    %3050 = vmatpush1.bf16.msra.mxu0 %v2914
    %3051 = vmatprep.subr.bf16.mxu0 %v2921
    %3052 = vmatpush1.bf16.msra.mxu0 %v2920
    %3053 = vmatprep.subr.bf16.mxu0 %v2927
    %3054 = vmatpush1.bf16.msra.mxu0 %v2926
    %3055 = vmatprep.subr.bf16.mxu0 %v2933
    %3056 = vmatpush1.bf16.msra.mxu0 %v2932
    %3057 = vmatprep.subr.bf16.mxu0 %v2939
    %3058 = vmatpush1.bf16.msra.mxu0 %v2938
    %3059 = vmatprep.subr.bf16.mxu0 %v2945
    %3060 = vmatpush1.bf16.msra.mxu0 %v2944
    %3061 = vmatprep.subr.bf16.mxu0 %v2951
    %3062 = vmatpush1.bf16.msra.mxu0 %v2950
    %3063 = vmatprep.subr.bf16.mxu0 %v2957
    %3064 = vmatpush1.bf16.msra.mxu0 %v2956
    %3065 = vmatprep.subr.bf16.mxu0 0
    %3066 = vmatpush1.bf16.msra.mxu0 0
    %3067 = vmatprep.subr.bf16.mxu0 0
    %3068 = vmatpush1.bf16.msra.mxu0 0
    %3069 = vmatprep.subr.bf16.mxu0 0
    %3070 = vmatpush1.bf16.msra.mxu0 0
    %3071 = vmatprep.subr.bf16.mxu0 0
    %3072 = vmatpush1.bf16.msra.mxu0 0
    %3073 = vmatprep.subr.bf16.mxu0 0
    %3074 = vmatpush1.bf16.msra.mxu0 0
    %3075 = vmatprep.subr.bf16.mxu0 0
    %3076 = vmatpush1.bf16.msra.mxu0 0
    %3077 = vmatprep.subr.bf16.mxu0 0
    %3078 = vmatpush1.bf16.msra.mxu0 0
    %3079 = vmatprep.subr.bf16.mxu0 0
    %3080 = vmatpush1.bf16.msra.mxu0 0
    %3081 = vmatprep.mubr.bf16.mxu0 0
    %3082 = vmatmul.mubr.bf16.gmra.mrb[0].mxu0 %v2685
    %v3083 = vpop.f32.mrb[0].mxu0
    %v3084 = vadd.f32 %v2749, %v3083
    %v3085 = vpop.f32.mrb[0].mxu0
    %v3086 = vadd.f32 %v2753, %v3085
    %v3087 = vpop.f32.mrb[0].mxu0
    %v3088 = vpop.f32.mrb[0].mxu0
    %3089 = vdwg.mxu0
    %3090 = vmatprep.subr.bf16.mxu0 %v2917
    %3091 = vmatpush1.bf16.msra.mxu0 %v2916
    %3092 = vmatprep.subr.bf16.mxu0 %v2923
    %3093 = vmatpush1.bf16.msra.mxu0 %v2922
    %3094 = vmatprep.subr.bf16.mxu0 %v2929
    %3095 = vmatpush1.bf16.msra.mxu0 %v2928
    %3096 = vmatprep.subr.bf16.mxu0 %v2935
    %3097 = vmatpush1.bf16.msra.mxu0 %v2934
    %3098 = vmatprep.subr.bf16.mxu0 %v2941
    %3099 = vmatpush1.bf16.msra.mxu0 %v2940
    %3100 = vmatprep.subr.bf16.mxu0 %v2947
    %3101 = vmatpush1.bf16.msra.mxu0 %v2946
    %3102 = vmatprep.subr.bf16.mxu0 %v2953
    %3103 = vmatpush1.bf16.msra.mxu0 %v2952
    %3104 = vmatprep.subr.bf16.mxu0 %v2959
    %3105 = vmatpush1.bf16.msra.mxu0 %v2958
    %3106 = vmatprep.subr.bf16.mxu0 0
    %3107 = vmatpush1.bf16.msra.mxu0 0
    %3108 = vmatprep.subr.bf16.mxu0 0
    %3109 = vmatpush1.bf16.msra.mxu0 0
    %3110 = vmatprep.subr.bf16.mxu0 0
    %3111 = vmatpush1.bf16.msra.mxu0 0
    %3112 = vmatprep.subr.bf16.mxu0 0
    %3113 = vmatpush1.bf16.msra.mxu0 0
    %3114 = vmatprep.subr.bf16.mxu0 0
    %3115 = vmatpush1.bf16.msra.mxu0 0
    %3116 = vmatprep.subr.bf16.mxu0 0
    %3117 = vmatpush1.bf16.msra.mxu0 0
    %3118 = vmatprep.subr.bf16.mxu0 0
    %3119 = vmatpush1.bf16.msra.mxu0 0
    %3120 = vmatprep.subr.bf16.mxu0 0
    %3121 = vmatpush1.bf16.msra.mxu0 0
    %3122 = vmatprep.mubr.bf16.mxu0 0
    %3123 = vmatmul.mubr.bf16.gmra.mrb[0].mxu0 %v2685
    %v3124 = vpop.f32.mrb[0].mxu0
    %v3125 = vadd.f32 %v2757, %v3124
    %v3126 = vpop.f32.mrb[0].mxu0
    %v3127 = vadd.f32 %v2761, %v3126
    %v3128 = vpop.f32.mrb[0].mxu0
    %v3129 = vpop.f32.mrb[0].mxu0
    %3130 = vdwg.mxu0
    %v3131 = vpack.c.bf16 %v3043, %v3043
    %v3132 = vpack.c.bf16 %v3084, %v3084
    %3133 = vmatprep.subr.bf16.mxu0 0
    %3134 = vmatpush1.bf16.xpose.msra.mxu0 %v3132
    %3135 = vmatprep.subr.bf16.mxu0 0
    %3136 = vmatpush1.bf16.xpose.msra.mxu0 0
    %3137 = vmatprep.subr.bf16.mxu0 0
    %3138 = vmatpush1.bf16.xpose.msra.mxu0 0
    %3139 = vmatprep.subr.bf16.mxu0 0
    %3140 = vmatpush1.bf16.xpose.msra.mxu0 0
    %3141 = vmatprep.subr.bf16.mxu0 0
    %3142 = vmatpush1.bf16.xpose.msra.mxu0 0
    %3143 = vmatprep.subr.bf16.mxu0 0
    %3144 = vmatpush1.bf16.xpose.msra.mxu0 0
    %3145 = vmatprep.subr.bf16.mxu0 0
    %3146 = vmatpush1.bf16.xpose.msra.mxu0 0
    %3147 = vmatprep.subr.bf16.mxu0 0
    %3148 = vmatpush1.bf16.xpose.msra.mxu0 0
    %3149 = vmatprep.subr.bf16.mxu0 0
    %3150 = vmatpush1.bf16.xpose.msra.mxu0 0
    %3151 = vmatprep.subr.bf16.mxu0 0
    %3152 = vmatpush1.bf16.xpose.msra.mxu0 0
    %3153 = vmatprep.subr.bf16.mxu0 0
    %3154 = vmatpush1.bf16.xpose.msra.mxu0 0
    %3155 = vmatprep.subr.bf16.mxu0 0
    %3156 = vmatpush1.bf16.xpose.msra.mxu0 0
    %3157 = vmatprep.subr.bf16.mxu0 0
    %3158 = vmatpush1.bf16.xpose.msra.mxu0 0
    %3159 = vmatprep.subr.bf16.mxu0 0
    %3160 = vmatpush1.bf16.xpose.msra.mxu0 0
    %3161 = vmatprep.subr.bf16.mxu0 0
    %3162 = vmatpush1.bf16.xpose.msra.mxu0 0
    %3163 = vmatprep.subr.bf16.mxu0 0
    %3164 = vmatpush1.bf16.xpose.msra.mxu0 0
    %3165 = vmatprep.mubr.bf16.mxu0 0
    %3166 = vmatmul.mubr.bf16.gmra.mrb[0].mxu0 %v3131
    %v3167 = vpop.f32.mrb[0].mxu0
    %v3168 = vadd.f32 0.0, %v3167
    %v3169 = vpop.f32.mrb[0].mxu0
    %v3170 = vpop.f32.mrb[0].mxu0
    %v3171 = vpop.f32.mrb[0].mxu0
    %3172 = vdwg.mxu0
    %v3173 = vmul.f32 %v3168, 0.18898223
    %v3174 = vsel %vm930, %v3173, -inf
    %3175 = vmax.xlane.f32.xlu0 %v3174
    %v3176 = vpop.xlane.xlu0 %3175
    %v3177 = vsub.f32 %v3173, %v3176
    %v3178 = vmul.f32 %v3177, 1.442695
    %v3179 = vpow.pop %v3178
    %v3180 = vsel %vm930, %v3179, 0.0
    %3181 = vadd.xlane.f32.xlu0 %v3180
    %v3182 = vpop.xlane.xlu0 %3181
    %v3183 = vrcp.pop %v3182
    %v3184 = vmul.f32 %v3179, %v3183
    %v3185 = vpack.c.bf16 %v3184, %v3184
    %v3186 = vpack.c.bf16 %v3125, %v3125
    %v3188 = vsel %vm930, %v3185, 0
    %v3191 = vsel %vm947, %v3186, 0
    %3193 = vmatprep.subr.bf16.mxu0 0
    %3194 = vmatpush1.bf16.msra.mxu0 %v3191
    %3195 = vmatprep.subr.bf16.mxu0 0
    %3196 = vmatpush1.bf16.msra.mxu0 0
    %3197 = vmatprep.subr.bf16.mxu0 0
    %3198 = vmatpush1.bf16.msra.mxu0 0
    %3199 = vmatprep.subr.bf16.mxu0 0
    %3200 = vmatpush1.bf16.msra.mxu0 0
    %3201 = vmatprep.subr.bf16.mxu0 0
    %3202 = vmatpush1.bf16.msra.mxu0 0
    %3203 = vmatprep.subr.bf16.mxu0 0
    %3204 = vmatpush1.bf16.msra.mxu0 0
    %3205 = vmatprep.subr.bf16.mxu0 0
    %3206 = vmatpush1.bf16.msra.mxu0 0
    %3207 = vmatprep.subr.bf16.mxu0 0
    %3208 = vmatpush1.bf16.msra.mxu0 0
    %3209 = vmatprep.subr.bf16.mxu0 0
    %3210 = vmatpush1.bf16.msra.mxu0 0
    %3211 = vmatprep.subr.bf16.mxu0 0
    %3212 = vmatpush1.bf16.msra.mxu0 0
    %3213 = vmatprep.subr.bf16.mxu0 0
    %3214 = vmatpush1.bf16.msra.mxu0 0
    %3215 = vmatprep.subr.bf16.mxu0 0
    %3216 = vmatpush1.bf16.msra.mxu0 0
    %3217 = vmatprep.subr.bf16.mxu0 0
    %3218 = vmatpush1.bf16.msra.mxu0 0
    %3219 = vmatprep.subr.bf16.mxu0 0
    %3220 = vmatpush1.bf16.msra.mxu0 0
    %3221 = vmatprep.subr.bf16.mxu0 0
    %3222 = vmatpush1.bf16.msra.mxu0 0
    %3223 = vmatprep.subr.bf16.mxu0 0
    %3224 = vmatpush1.bf16.msra.mxu0 0
    %3225 = vmatprep.mubr.bf16.mxu0 0
    %3226 = vmatmul.mubr.bf16.gmra.mrb[0].mxu0 %v3188
    %v3227 = vpop.f32.mrb[0].mxu0
    %v3228 = vadd.f32 0.0, %v3227
    %v3229 = vpop.f32.mrb[0].mxu0
    %v3230 = vpop.f32.mrb[0].mxu0
    %v3231 = vpop.f32.mrb[0].mxu0
    %3232 = vdwg.mxu0
    %v3233 = vpack.c.bf16 %v3045, %v3045
    %v3234 = vpack.c.bf16 %v3086, %v3086
    %3235 = vmatprep.subr.bf16.mxu0 0
    %3236 = vmatpush1.bf16.xpose.msra.mxu0 %v3234
    %3237 = vmatprep.subr.bf16.mxu0 0
    %3238 = vmatpush1.bf16.xpose.msra.mxu0 0
    %3239 = vmatprep.subr.bf16.mxu0 0
    %3240 = vmatpush1.bf16.xpose.msra.mxu0 0
    %3241 = vmatprep.subr.bf16.mxu0 0
    %3242 = vmatpush1.bf16.xpose.msra.mxu0 0
    %3243 = vmatprep.subr.bf16.mxu0 0
    %3244 = vmatpush1.bf16.xpose.msra.mxu0 0
    %3245 = vmatprep.subr.bf16.mxu0 0
    %3246 = vmatpush1.bf16.xpose.msra.mxu0 0
    %3247 = vmatprep.subr.bf16.mxu0 0
    %3248 = vmatpush1.bf16.xpose.msra.mxu0 0
    %3249 = vmatprep.subr.bf16.mxu0 0
    %3250 = vmatpush1.bf16.xpose.msra.mxu0 0
    %3251 = vmatprep.subr.bf16.mxu0 0
    %3252 = vmatpush1.bf16.xpose.msra.mxu0 0
    %3253 = vmatprep.subr.bf16.mxu0 0
    %3254 = vmatpush1.bf16.xpose.msra.mxu0 0
    %3255 = vmatprep.subr.bf16.mxu0 0
    %3256 = vmatpush1.bf16.xpose.msra.mxu0 0
    %3257 = vmatprep.subr.bf16.mxu0 0
    %3258 = vmatpush1.bf16.xpose.msra.mxu0 0
    %3259 = vmatprep.subr.bf16.mxu0 0
    %3260 = vmatpush1.bf16.xpose.msra.mxu0 0
    %3261 = vmatprep.subr.bf16.mxu0 0
    %3262 = vmatpush1.bf16.xpose.msra.mxu0 0
    %3263 = vmatprep.subr.bf16.mxu0 0
    %3264 = vmatpush1.bf16.xpose.msra.mxu0 0
    %3265 = vmatprep.subr.bf16.mxu0 0
    %3266 = vmatpush1.bf16.xpose.msra.mxu0 0
    %3267 = vmatprep.mubr.bf16.mxu0 0
    %3268 = vmatmul.mubr.bf16.gmra.mrb[0].mxu0 %v3233
    %v3269 = vpop.f32.mrb[0].mxu0
    %v3270 = vadd.f32 0.0, %v3269
    %v3271 = vpop.f32.mrb[0].mxu0
    %v3272 = vpop.f32.mrb[0].mxu0
    %v3273 = vpop.f32.mrb[0].mxu0
    %3274 = vdwg.mxu0
    %v3275 = vmul.f32 %v3270, 0.18898223
    %v3276 = vsel %vm930, %v3275, -inf
    %3277 = vmax.xlane.f32.xlu0 %v3276
    %v3278 = vpop.xlane.xlu0 %3277
    %v3279 = vsub.f32 %v3275, %v3278
    %v3280 = vmul.f32 %v3279, 1.442695
    %v3281 = vpow.pop %v3280
    %v3282 = vsel %vm930, %v3281, 0.0
    %3283 = vadd.xlane.f32.xlu0 %v3282
    %v3284 = vpop.xlane.xlu0 %3283
    %v3285 = vrcp.pop %v3284
    %v3286 = vmul.f32 %v3281, %v3285
    %v3287 = vpack.c.bf16 %v3286, %v3286
    %v3288 = vpack.c.bf16 %v3127, %v3127
    %v3290 = vsel %vm930, %v3287, 0
    %v3293 = vsel %vm947, %v3288, 0
    %3295 = vmatprep.subr.bf16.mxu0 0
    %3296 = vmatpush1.bf16.msra.mxu0 %v3293
    %3297 = vmatprep.subr.bf16.mxu0 0
    %3298 = vmatpush1.bf16.msra.mxu0 0
    %3299 = vmatprep.subr.bf16.mxu0 0
    %3300 = vmatpush1.bf16.msra.mxu0 0
    %3301 = vmatprep.subr.bf16.mxu0 0
    %3302 = vmatpush1.bf16.msra.mxu0 0
    %3303 = vmatprep.subr.bf16.mxu0 0
    %3304 = vmatpush1.bf16.msra.mxu0 0
    %3305 = vmatprep.subr.bf16.mxu0 0
    %3306 = vmatpush1.bf16.msra.mxu0 0
    %3307 = vmatprep.subr.bf16.mxu0 0
    %3308 = vmatpush1.bf16.msra.mxu0 0
    %3309 = vmatprep.subr.bf16.mxu0 0
    %3310 = vmatpush1.bf16.msra.mxu0 0
    %3311 = vmatprep.subr.bf16.mxu0 0
    %3312 = vmatpush1.bf16.msra.mxu0 0
    %3313 = vmatprep.subr.bf16.mxu0 0
    %3314 = vmatpush1.bf16.msra.mxu0 0
    %3315 = vmatprep.subr.bf16.mxu0 0
    %3316 = vmatpush1.bf16.msra.mxu0 0
    %3317 = vmatprep.subr.bf16.mxu0 0
    %3318 = vmatpush1.bf16.msra.mxu0 0
    %3319 = vmatprep.subr.bf16.mxu0 0
    %3320 = vmatpush1.bf16.msra.mxu0 0
    %3321 = vmatprep.subr.bf16.mxu0 0
    %3322 = vmatpush1.bf16.msra.mxu0 0
    %3323 = vmatprep.subr.bf16.mxu0 0
    %3324 = vmatpush1.bf16.msra.mxu0 0
    %3325 = vmatprep.subr.bf16.mxu0 0
    %3326 = vmatpush1.bf16.msra.mxu0 0
    %3327 = vmatprep.mubr.bf16.mxu0 0
    %3328 = vmatmul.mubr.bf16.gmra.mrb[0].mxu0 %v3290
    %v3329 = vpop.f32.mrb[0].mxu0
    %v3330 = vadd.f32 0.0, %v3329
    %v3331 = vpop.f32.mrb[0].mxu0
    %v3332 = vpop.f32.mrb[0].mxu0
    %v3333 = vpop.f32.mrb[0].mxu0
    %3334 = vdwg.mxu0
    %v3335 = vpack.c.bf16 %v3228, %v3228
    %v3336 = vpack.c.bf16 %v3330, %v3330
    %s3337 = scalar_lea.vmem [#allocation14], 256
    %v3338 = vld [vmem:[%s3337] sm:$0xf]
    %v3339 = vld [vmem:[%s3337 + $0x4] sm:$0xf]
    %v3340 = vld [vmem:[%s3337 + $0x8] sm:$0xf]
    %v3341 = vld [vmem:[%s3337 + $0xc] sm:$0xf]
    %v3342 = vld [vmem:[%s3337 + $0x10] sm:$0xf]
    %v3343 = vld [vmem:[%s3337 + $0x14] sm:$0xf]
    %v3344 = vld [vmem:[%s3337 + $0x18] sm:$0xf]
    %v3345 = vld [vmem:[%s3337 + $0x1c] sm:$0xf]
    %v3346 = vld [vmem:[%s3337 + $0x20] sm:$0xf]
    %v3347 = vld [vmem:[%s3337 + $0x24] sm:$0xf]
    %v3348 = vld [vmem:[%s3337 + $0x28] sm:$0xf]
    %v3349 = vld [vmem:[%s3337 + $0x2c] sm:$0xf]
    %v3350 = vld [vmem:[%s3337 + $0x30] sm:$0xf]
    %v3351 = vld [vmem:[%s3337 + $0x34] sm:$0xf]
    %v3352 = vld [vmem:[%s3337 + $0x38] sm:$0xf]
    %v3353 = vld [vmem:[%s3337 + $0x3c] sm:$0xf]
    %v3354 = vld [vmem:[%s3337 + $0x40] sm:$0xf]
    %v3355 = vld [vmem:[%s3337 + $0x44] sm:$0xf]
    %v3356 = vld [vmem:[%s3337 + $0x48] sm:$0xf]
    %v3357 = vld [vmem:[%s3337 + $0x4c] sm:$0xf]
    %v3358 = vld [vmem:[%s3337 + $0x50] sm:$0xf]
    %v3359 = vld [vmem:[%s3337 + $0x54] sm:$0xf]
    %v3360 = vld [vmem:[%s3337 + $0x58] sm:$0xf]
    %v3361 = vld [vmem:[%s3337 + $0x5c] sm:$0xf]
    %v3362 = vld [vmem:[%s3337 + $0x60] sm:$0xf]
    %v3363 = vld [vmem:[%s3337 + $0x64] sm:$0xf]
    %v3364 = vld [vmem:[%s3337 + $0x68] sm:$0xf]
    %v3365 = vld [vmem:[%s3337 + $0x6c] sm:$0xf]
    %v3366 = vld [vmem:[%s3337 + $0x70] sm:$0xf]
    %v3367 = vld [vmem:[%s3337 + $0x74] sm:$0xf]
    %v3368 = vld [vmem:[%s3337 + $0x78] sm:$0xf]
    %v3369 = vld [vmem:[%s3337 + $0x7c] sm:$0xf]
    %s3370 = scalar_lea.vmem %s8, 2
    %v3371 = vld [vmem:[%s3370] sm:$0x1]
    %v3373 = vlaneseq
    %v3374 = vshrl.u32 %v3373, 7
    %v3375 = vsub.s32 0, %v3374
    %v3376 = vrot.slane %v3371, %v3375
    %v3410 = vunpack.c.l.b16 %v3338
    %v3411 = vunpack.c.l.b16 %v3339
    %v3412 = vunpack.c.l.b16 %v3340
    %v3413 = vunpack.c.l.b16 %v3341
    %v3414 = vunpack.c.l.b16 %v3342
    %v3415 = vunpack.c.l.b16 %v3343
    %v3416 = vunpack.c.l.b16 %v3344
    %v3417 = vunpack.c.l.b16 %v3345
    %v3418 = vunpack.c.l.b16 %v3346
    %v3419 = vunpack.c.l.b16 %v3347
    %v3420 = vunpack.c.l.b16 %v3348
    %v3421 = vunpack.c.l.b16 %v3349
    %v3422 = vunpack.c.l.b16 %v3350
    %v3423 = vunpack.c.l.b16 %v3351
    %v3424 = vunpack.c.l.b16 %v3352
    %v3425 = vunpack.c.l.b16 %v3353
    %v3426 = vunpack.c.l.b16 %v3354
    %v3427 = vunpack.c.l.b16 %v3355
    %v3428 = vunpack.c.l.b16 %v3356
    %v3429 = vunpack.c.l.b16 %v3357
    %v3430 = vunpack.c.l.b16 %v3358
    %v3431 = vunpack.c.l.b16 %v3359
    %v3432 = vunpack.c.l.b16 %v3360
    %v3433 = vunpack.c.l.b16 %v3361
    %v3434 = vunpack.c.l.b16 %v3362
    %v3435 = vunpack.c.l.b16 %v3363
    %v3436 = vunpack.c.l.b16 %v3364
    %v3437 = vunpack.c.l.b16 %v3365
    %v3438 = vunpack.c.l.b16 %v3366
    %v3439 = vunpack.c.l.b16 %v3367
    %v3440 = vunpack.c.l.b16 %v3368
    %v3441 = vunpack.c.l.b16 %v3369
    %v3442 = vpack.c.b16 %v3411, %v3410
    %v3443 = vpack.c.b16 %v3413, %v3412
    %v3444 = vpack.c.b16 %v3415, %v3414
    %v3445 = vpack.c.b16 %v3417, %v3416
    %v3446 = vpack.c.b16 %v3419, %v3418
    %v3447 = vpack.c.b16 %v3421, %v3420
    %v3448 = vpack.c.b16 %v3423, %v3422
    %v3449 = vpack.c.b16 %v3425, %v3424
    %v3450 = vpack.c.b16 %v3427, %v3426
    %v3451 = vpack.c.b16 %v3429, %v3428
    %v3452 = vpack.c.b16 %v3431, %v3430
    %v3453 = vpack.c.b16 %v3433, %v3432
    %v3454 = vpack.c.b16 %v3435, %v3434
    %v3455 = vpack.c.b16 %v3437, %v3436
    %v3456 = vpack.c.b16 %v3439, %v3438
    %v3457 = vpack.c.b16 %v3441, %v3440
    %3474 = vmatprep.subr.bf16.mxu0 0
    %3475 = vmatpush1.bf16.msra.mxu0 %v3442
    %3476 = vmatprep.subr.bf16.mxu0 0
    %3477 = vmatpush1.bf16.msra.mxu0 %v3443
    %3478 = vmatprep.subr.bf16.mxu0 0
    %3479 = vmatpush1.bf16.msra.mxu0 %v3444
    %3480 = vmatprep.subr.bf16.mxu0 0
    %3481 = vmatpush1.bf16.msra.mxu0 %v3445
    %3482 = vmatprep.subr.bf16.mxu0 0
    %3483 = vmatpush1.bf16.msra.mxu0 %v3446
    %3484 = vmatprep.subr.bf16.mxu0 0
    %3485 = vmatpush1.bf16.msra.mxu0 %v3447
    %3486 = vmatprep.subr.bf16.mxu0 0
    %3487 = vmatpush1.bf16.msra.mxu0 %v3448
    %3488 = vmatprep.subr.bf16.mxu0 0
    %3489 = vmatpush1.bf16.msra.mxu0 %v3449
    %3490 = vmatprep.subr.bf16.mxu0 0
    %3491 = vmatpush1.bf16.msra.mxu0 %v3450
    %3492 = vmatprep.subr.bf16.mxu0 0
    %3493 = vmatpush1.bf16.msra.mxu0 %v3451
    %3494 = vmatprep.subr.bf16.mxu0 0
    %3495 = vmatpush1.bf16.msra.mxu0 %v3452
    %3496 = vmatprep.subr.bf16.mxu0 0
    %3497 = vmatpush1.bf16.msra.mxu0 %v3453
    %3498 = vmatprep.subr.bf16.mxu0 0
    %3499 = vmatpush1.bf16.msra.mxu0 %v3454
    %3500 = vmatprep.subr.bf16.mxu0 0
    %3501 = vmatpush1.bf16.msra.mxu0 %v3455
    %3502 = vmatprep.subr.bf16.mxu0 0
    %3503 = vmatpush1.bf16.msra.mxu0 %v3456
    %3504 = vmatprep.subr.bf16.mxu0 0
    %3505 = vmatpush1.bf16.msra.mxu0 %v3457
    %3506 = vmatprep.mubr.bf16.mxu0 %v3336
    %3507 = vmatmul.mubr.bf16.gmra.mrb[0].mxu0 %v3335
    %v3508 = vpop.f32.mrb[0].mxu0
    %v3509 = vadd.f32 %v3376, %v3508
    %v3510 = vpop.f32.mrb[0].mxu0
    %v3511 = vpop.f32.mrb[0].mxu0
    %v3512 = vpop.f32.mrb[0].mxu0
    %3513 = vdwg.mxu0
    %v3514 = vadd.f32 %v2683, %v3509
    %s3515 = scalar_lea.vmem [#allocation22], 2
    %v3516 = vld [vmem:[%s3515] sm:$0x1]
    %s3517 = scalar_lea.vmem [#allocation23], 2
    %v3518 = vld [vmem:[%s3517] sm:$0x1]
    %3519 = vadd.xlane.f32.xlu0 %v3514
    %v3520 = vpop.xlane.xlu0 %3519
    %v3521 = vmul.f32 %v3520, 0.017857144
    %v3522 = vsub.f32 %v3514, %v3521
    %v3523 = vsel %vm2684, %v3522, 0.0
    %v3524 = vmul.f32 %v3523, %v3523
    %3525 = vadd.xlane.f32.xlu0 %v3524
    %v3526 = vpop.xlane.xlu0 %3525
    %v3527 = vmul.f32 %v3526, 0.017857144
    %v3528 = vadd.f32 %v3527, 1e-05
    %v3529 = vrsqrt.pop %v3528
    %v3530 = vmul.f32 %v3523, %v3529
    %v3532 = vlaneseq
    %v3533 = vshrl.u32 %v3532, 7
    %v3534 = vsub.s32 0, %v3533
    %v3535 = vrot.slane %v3516, %v3534
    %v3537 = vmul.f32 %v3530, %v3535
    %v3539 = vlaneseq
    %v3540 = vshrl.u32 %v3539, 7
    %v3541 = vsub.s32 0, %v3540
    %v3542 = vrot.slane %v3518, %v3541
    %v3544 = vadd.f32 %v3537, %v3542
    %v3545 = vpack.c.bf16 %v3544, %v3544
    %s3546 = scalar_lea.vmem [#allocation16], 128
    %v3547 = vld [vmem:[%s3546] sm:$0xf]
    %v3548 = vld [vmem:[%s3546 + $0x4] sm:$0xf]
    %v3549 = vld [vmem:[%s3546 + $0x8] sm:$0xf]
    %v3550 = vld [vmem:[%s3546 + $0xc] sm:$0xf]
    %v3551 = vld [vmem:[%s3546 + $0x10] sm:$0xf]
    %v3552 = vld [vmem:[%s3546 + $0x14] sm:$0xf]
    %v3553 = vld [vmem:[%s3546 + $0x18] sm:$0xf]
    %v3554 = vld [vmem:[%s3546 + $0x1c] sm:$0xf]
    %v3555 = vld [vmem:[%s3546 + $0x20] sm:$0xf]
    %v3556 = vld [vmem:[%s3546 + $0x24] sm:$0xf]
    %v3557 = vld [vmem:[%s3546 + $0x28] sm:$0xf]
    %v3558 = vld [vmem:[%s3546 + $0x2c] sm:$0xf]
    %v3559 = vld [vmem:[%s3546 + $0x30] sm:$0xf]
    %v3560 = vld [vmem:[%s3546 + $0x34] sm:$0xf]
    %v3561 = vld [vmem:[%s3546 + $0x38] sm:$0xf]
    %v3562 = vld [vmem:[%s3546 + $0x3c] sm:$0xf]
    %s3563 = scalar_lea.vmem [#allocation17], 2
    %v3564 = vld [vmem:[%s3563] sm:$0x1]
    %v3566 = vlaneseq
    %v3567 = vshrl.u32 %v3566, 7
    %v3568 = vsub.s32 0, %v3567
    %v3569 = vrot.slane %v3564, %v3568
    %v3587 = vunpack.c.l.b16 %v3547
    %v3588 = vunpack.c.l.b16 %v3548
    %v3589 = vunpack.c.l.b16 %v3549
    %v3590 = vunpack.c.l.b16 %v3550
    %v3591 = vunpack.c.l.b16 %v3551
    %v3592 = vunpack.c.l.b16 %v3552
    %v3593 = vunpack.c.l.b16 %v3553
    %v3594 = vunpack.c.l.b16 %v3554
    %v3595 = vunpack.c.l.b16 %v3555
    %v3596 = vunpack.c.l.b16 %v3556
    %v3597 = vunpack.c.l.b16 %v3557
    %v3598 = vunpack.c.l.b16 %v3558
    %v3599 = vunpack.c.l.b16 %v3559
    %v3600 = vunpack.c.l.b16 %v3560
    %v3601 = vunpack.c.l.b16 %v3561
    %v3602 = vunpack.c.l.b16 %v3562
    %v3603 = vpack.c.b16 %v3588, %v3587
    %v3604 = vpack.c.b16 %v3590, %v3589
    %v3605 = vpack.c.b16 %v3592, %v3591
    %v3606 = vpack.c.b16 %v3594, %v3593
    %v3607 = vpack.c.b16 %v3596, %v3595
    %v3608 = vpack.c.b16 %v3598, %v3597
    %v3609 = vpack.c.b16 %v3600, %v3599
    %v3610 = vpack.c.b16 %v3602, %v3601
    %3619 = vmatprep.subr.bf16.mxu0 0
    %3620 = vmatpush1.bf16.msra.mxu0 %v3603
    %3621 = vmatprep.subr.bf16.mxu0 0
    %3622 = vmatpush1.bf16.msra.mxu0 %v3604
    %3623 = vmatprep.subr.bf16.mxu0 0
    %3624 = vmatpush1.bf16.msra.mxu0 %v3605
    %3625 = vmatprep.subr.bf16.mxu0 0
    %3626 = vmatpush1.bf16.msra.mxu0 %v3606
    %3627 = vmatprep.subr.bf16.mxu0 0
    %3628 = vmatpush1.bf16.msra.mxu0 %v3607
    %3629 = vmatprep.subr.bf16.mxu0 0
    %3630 = vmatpush1.bf16.msra.mxu0 %v3608
    %3631 = vmatprep.subr.bf16.mxu0 0
    %3632 = vmatpush1.bf16.msra.mxu0 %v3609
    %3633 = vmatprep.subr.bf16.mxu0 0
    %3634 = vmatpush1.bf16.msra.mxu0 %v3610
    %3635 = vmatprep.subr.bf16.mxu0 0
    %3636 = vmatpush1.bf16.msra.mxu0 0
    %3637 = vmatprep.subr.bf16.mxu0 0
    %3638 = vmatpush1.bf16.msra.mxu0 0
    %3639 = vmatprep.subr.bf16.mxu0 0
    %3640 = vmatpush1.bf16.msra.mxu0 0
    %3641 = vmatprep.subr.bf16.mxu0 0
    %3642 = vmatpush1.bf16.msra.mxu0 0
    %3643 = vmatprep.subr.bf16.mxu0 0
    %3644 = vmatpush1.bf16.msra.mxu0 0
    %3645 = vmatprep.subr.bf16.mxu0 0
    %3646 = vmatpush1.bf16.msra.mxu0 0
    %3647 = vmatprep.subr.bf16.mxu0 0
    %3648 = vmatpush1.bf16.msra.mxu0 0
    %3649 = vmatprep.subr.bf16.mxu0 0
    %3650 = vmatpush1.bf16.msra.mxu0 0
    %3651 = vmatprep.mubr.bf16.mxu0 0
    %3652 = vmatmul.mubr.bf16.gmra.mrb[0].mxu0 %v3545
    %v3653 = vpop.f32.mrb[0].mxu0
    %v3654 = vadd.f32 %v3569, %v3653
    %v3655 = vpop.f32.mrb[0].mxu0
    %v3656 = vpop.f32.mrb[0].mxu0
    %v3657 = vpop.f32.mrb[0].mxu0
    %3658 = vdwg.mxu0
    %v3659 = vmax.f32 %v3654, 0.0
    %v3660 = vpack.c.bf16 %v3659, %v3659
    %s3661 = scalar_lea.vmem [#allocation19], 128
    %v3662 = vld [vmem:[%s3661] sm:$0xf]
    %v3663 = vld [vmem:[%s3661 + $0x4] sm:$0xf]
    %v3664 = vld [vmem:[%s3661 + $0x8] sm:$0xf]
    %v3665 = vld [vmem:[%s3661 + $0xc] sm:$0xf]
    %v3666 = vld [vmem:[%s3661 + $0x10] sm:$0xf]
    %v3667 = vld [vmem:[%s3661 + $0x14] sm:$0xf]
    %v3668 = vld [vmem:[%s3661 + $0x18] sm:$0xf]
    %v3669 = vld [vmem:[%s3661 + $0x1c] sm:$0xf]
    %v3670 = vld [vmem:[%s3661 + $0x20] sm:$0xf]
    %v3671 = vld [vmem:[%s3661 + $0x24] sm:$0xf]
    %v3672 = vld [vmem:[%s3661 + $0x28] sm:$0xf]
    %v3673 = vld [vmem:[%s3661 + $0x2c] sm:$0xf]
    %v3674 = vld [vmem:[%s3661 + $0x30] sm:$0xf]
    %v3675 = vld [vmem:[%s3661 + $0x34] sm:$0xf]
    %v3676 = vld [vmem:[%s3661 + $0x38] sm:$0xf]
    %v3677 = vld [vmem:[%s3661 + $0x3c] sm:$0xf]
    %s3678 = scalar_lea.vmem [#allocation20], 2
    %v3679 = vld [vmem:[%s3678] sm:$0x1]
    %v3681 = vlaneseq
    %v3682 = vshrl.u32 %v3681, 7
    %v3683 = vsub.s32 0, %v3682
    %v3684 = vrot.slane %v3679, %v3683
    %v3702 = vunpack.c.l.b16 %v3662
    %v3703 = vunpack.c.l.b16 %v3663
    %v3704 = vunpack.c.l.b16 %v3664
    %v3705 = vunpack.c.l.b16 %v3665
    %v3706 = vunpack.c.l.b16 %v3666
    %v3707 = vunpack.c.l.b16 %v3667
    %v3708 = vunpack.c.l.b16 %v3668
    %v3709 = vunpack.c.l.b16 %v3669
    %v3710 = vunpack.c.l.b16 %v3670
    %v3711 = vunpack.c.l.b16 %v3671
    %v3712 = vunpack.c.l.b16 %v3672
    %v3713 = vunpack.c.l.b16 %v3673
    %v3714 = vunpack.c.l.b16 %v3674
    %v3715 = vunpack.c.l.b16 %v3675
    %v3716 = vunpack.c.l.b16 %v3676
    %v3717 = vunpack.c.l.b16 %v3677
    %v3718 = vpack.c.b16 %v3703, %v3702
    %v3719 = vpack.c.b16 %v3705, %v3704
    %v3720 = vpack.c.b16 %v3707, %v3706
    %v3721 = vpack.c.b16 %v3709, %v3708
    %v3722 = vpack.c.b16 %v3711, %v3710
    %v3723 = vpack.c.b16 %v3713, %v3712
    %v3724 = vpack.c.b16 %v3715, %v3714
    %v3725 = vpack.c.b16 %v3717, %v3716
    %3734 = vmatprep.subr.bf16.mxu0 0
    %3735 = vmatpush1.bf16.msra.mxu0 %v3718
    %3736 = vmatprep.subr.bf16.mxu0 0
    %3737 = vmatpush1.bf16.msra.mxu0 %v3719
    %3738 = vmatprep.subr.bf16.mxu0 0
    %3739 = vmatpush1.bf16.msra.mxu0 %v3720
    %3740 = vmatprep.subr.bf16.mxu0 0
    %3741 = vmatpush1.bf16.msra.mxu0 %v3721
    %3742 = vmatprep.subr.bf16.mxu0 0
    %3743 = vmatpush1.bf16.msra.mxu0 %v3722
    %3744 = vmatprep.subr.bf16.mxu0 0
    %3745 = vmatpush1.bf16.msra.mxu0 %v3723
    %3746 = vmatprep.subr.bf16.mxu0 0
    %3747 = vmatpush1.bf16.msra.mxu0 %v3724
    %3748 = vmatprep.subr.bf16.mxu0 0
    %3749 = vmatpush1.bf16.msra.mxu0 %v3725
    %3750 = vmatprep.subr.bf16.mxu0 0
    %3751 = vmatpush1.bf16.msra.mxu0 0
    %3752 = vmatprep.subr.bf16.mxu0 0
    %3753 = vmatpush1.bf16.msra.mxu0 0
    %3754 = vmatprep.subr.bf16.mxu0 0
    %3755 = vmatpush1.bf16.msra.mxu0 0
    %3756 = vmatprep.subr.bf16.mxu0 0
    %3757 = vmatpush1.bf16.msra.mxu0 0
    %3758 = vmatprep.subr.bf16.mxu0 0
    %3759 = vmatpush1.bf16.msra.mxu0 0
    %3760 = vmatprep.subr.bf16.mxu0 0
    %3761 = vmatpush1.bf16.msra.mxu0 0
    %3762 = vmatprep.subr.bf16.mxu0 0
    %3763 = vmatpush1.bf16.msra.mxu0 0
    %3764 = vmatprep.subr.bf16.mxu0 0
    %3765 = vmatpush1.bf16.msra.mxu0 0
    %3766 = vmatprep.mubr.bf16.mxu0 0
    %3767 = vmatmul.mubr.bf16.gmra.mrb[0].mxu0 %v3660
    %v3768 = vpop.f32.mrb[0].mxu0
    %v3769 = vadd.f32 %v3684, %v3768
    %v3770 = vpop.f32.mrb[0].mxu0
    %v3771 = vpop.f32.mrb[0].mxu0
    %v3772 = vpop.f32.mrb[0].mxu0
    %3773 = vdwg.mxu0
    %v3774 = vadd.f32 %v3544, %v3769
    %s3775 = scalar_lea.vmem [#allocation25], 2
    %v3776 = vld [vmem:[%s3775] sm:$0x1]
    %s3777 = scalar_lea.vmem [#allocation26], 2
    %v3778 = vld [vmem:[%s3777] sm:$0x1]
    %3779 = vadd.xlane.f32.xlu0 %v3774
    %v3780 = vpop.xlane.xlu0 %3779
    %v3781 = vmul.f32 %v3780, 0.017857144
    %v3782 = vsub.f32 %v3774, %v3781
    %v3783 = vsel %vm2684, %v3782, 0.0
    %v3784 = vmul.f32 %v3783, %v3783
    %3785 = vadd.xlane.f32.xlu0 %v3784
    %v3786 = vpop.xlane.xlu0 %3785
    %v3787 = vmul.f32 %v3786, 0.017857144
    %v3788 = vadd.f32 %v3787, 1e-05
    %v3789 = vrsqrt.pop %v3788
    %v3790 = vmul.f32 %v3783, %v3789
    %v3792 = vlaneseq
    %v3793 = vshrl.u32 %v3792, 7
    %v3794 = vsub.s32 0, %v3793
    %v3795 = vrot.slane %v3776, %v3794
    %v3797 = vmul.f32 %v3790, %v3795
    %v3799 = vlaneseq
    %v3800 = vshrl.u32 %v3799, 7
    %v3801 = vsub.s32 0, %v3800
    %v3802 = vrot.slane %v3778, %v3801
    %v3804 = vadd.f32 %v3797, %v3802
    %v3805 = vpack.c.bf16 %v3804, %v3804
    %s3806 = scalar_lea.vmem [#allocation11], 1152
    %v3807 = vld [vmem:[%s3806] sm:$0xff]
    %v3808 = vld [vmem:[%s3806 + $0x8] sm:$0xff]
    %v3809 = vld [vmem:[%s3806 + $0x10] sm:$0xff]
    %v3810 = vld [vmem:[%s3806 + $0x18] sm:$0xff]
    %v3811 = vld [vmem:[%s3806 + $0x20] sm:$0xff]
    %v3812 = vld [vmem:[%s3806 + $0x28] sm:$0xff]
    %v3813 = vld [vmem:[%s3806 + $0x30] sm:$0xff]
    %v3814 = vld [vmem:[%s3806 + $0x38] sm:$0xff]
    %v3815 = vld [vmem:[%s3806 + $0x40] sm:$0xff]
    %v3816 = vld [vmem:[%s3806 + $0x48] sm:$0xff]
    %v3817 = vld [vmem:[%s3806 + $0x50] sm:$0xff]
    %v3818 = vld [vmem:[%s3806 + $0x58] sm:$0xff]
    %v3819 = vld [vmem:[%s3806 + $0x60] sm:$0xff]
    %v3820 = vld [vmem:[%s3806 + $0x68] sm:$0xff]
    %v3821 = vld [vmem:[%s3806 + $0x70] sm:$0xff]
    %v3822 = vld [vmem:[%s3806 + $0x78] sm:$0xff]
    %v3823 = vld [vmem:[%s3806 + $0x80] sm:$0xff]
    %v3824 = vld [vmem:[%s3806 + $0x88] sm:$0xff]
    %v3825 = vld [vmem:[%s3806 + $0x90] sm:$0xff]
    %v3826 = vld [vmem:[%s3806 + $0x98] sm:$0xff]
    %v3827 = vld [vmem:[%s3806 + $0xa0] sm:$0xff]
    %v3828 = vld [vmem:[%s3806 + $0xa8] sm:$0xff]
    %v3829 = vld [vmem:[%s3806 + $0xb0] sm:$0xff]
    %v3830 = vld [vmem:[%s3806 + $0xb8] sm:$0xff]
    %v3831 = vld [vmem:[%s3806 + $0xc0] sm:$0xff]
    %v3832 = vld [vmem:[%s3806 + $0xc8] sm:$0xff]
    %v3833 = vld [vmem:[%s3806 + $0xd0] sm:$0xff]
    %v3834 = vld [vmem:[%s3806 + $0xd8] sm:$0xff]
    %v3835 = vld [vmem:[%s3806 + $0xe0] sm:$0xff]
    %v3836 = vld [vmem:[%s3806 + $0xe8] sm:$0xff]
    %v3837 = vld [vmem:[%s3806 + $0xf0] sm:$0xff]
    %v3838 = vld [vmem:[%s3806 + $0xf8] sm:$0xff]
    %v3839 = vld [vmem:[%s3806 + $0x100] sm:$0xff]
    %v3840 = vld [vmem:[%s3806 + $0x108] sm:$0xff]
    %v3841 = vld [vmem:[%s3806 + $0x110] sm:$0xff]
    %v3842 = vld [vmem:[%s3806 + $0x118] sm:$0xff]
    %v3843 = vld [vmem:[%s3806 + $0x120] sm:$0xff]
    %v3844 = vld [vmem:[%s3806 + $0x128] sm:$0xff]
    %v3845 = vld [vmem:[%s3806 + $0x130] sm:$0xff]
    %v3846 = vld [vmem:[%s3806 + $0x138] sm:$0xff]
    %v3847 = vld [vmem:[%s3806 + $0x140] sm:$0xff]
    %v3848 = vld [vmem:[%s3806 + $0x148] sm:$0xff]
    %v3849 = vld [vmem:[%s3806 + $0x150] sm:$0xff]
    %v3850 = vld [vmem:[%s3806 + $0x158] sm:$0xff]
    %v3851 = vld [vmem:[%s3806 + $0x160] sm:$0xff]
    %v3852 = vld [vmem:[%s3806 + $0x168] sm:$0xff]
    %v3853 = vld [vmem:[%s3806 + $0x170] sm:$0xff]
    %v3854 = vld [vmem:[%s3806 + $0x178] sm:$0xff]
    %s3855 = scalar_lea.vmem [#allocation13], 18
    %v3856 = vld [vmem:[%s3855] sm:$0x3f]
    %v3858 = vlaneseq
    %v3859 = vshrl.u32 %v3858, 7
    %v3860 = vsub.s32 0, %v3859
    %v3861 = vrot.slane %v3856, %v3860
    %v3862 = vlaneseq
    %v3863 = vshrl.u32 %v3862, 7
    %v3864 = vsub.s32 1, %v3863
    %v3865 = vrot.slane %v3856, %v3864
    %v3866 = vlaneseq
    %v3867 = vshrl.u32 %v3866, 7
    %v3868 = vsub.s32 2, %v3867
    %v3869 = vrot.slane %v3856, %v3868
    %v3870 = vlaneseq
    %v3871 = vshrl.u32 %v3870, 7
    %v3872 = vsub.s32 3, %v3871
    %v3873 = vrot.slane %v3856, %v3872
    %v3874 = vlaneseq
    %v3875 = vshrl.u32 %v3874, 7
    %v3876 = vsub.s32 4, %v3875
    %v3877 = vrot.slane %v3856, %v3876
    %v3878 = vlaneseq
    %v3879 = vshrl.u32 %v3878, 7
    %v3880 = vsub.s32 5, %v3879
    %v3881 = vrot.slane %v3856, %v3880
    %v3936 = vunpack.c.l.b16 %v3807
    %v3937 = vunpack.c.h.b16 %v3807
    %v3938 = vunpack.c.l.b16 %v3808
    %v3939 = vunpack.c.h.b16 %v3808
    %v3940 = vunpack.c.l.b16 %v3809
    %v3941 = vunpack.c.h.b16 %v3809
    %v3942 = vunpack.c.l.b16 %v3810
    %v3943 = vunpack.c.h.b16 %v3810
    %v3944 = vunpack.c.l.b16 %v3811
    %v3945 = vunpack.c.h.b16 %v3811
    %v3946 = vunpack.c.l.b16 %v3812
    %v3947 = vunpack.c.h.b16 %v3812
    %v3948 = vunpack.c.l.b16 %v3813
    %v3949 = vunpack.c.h.b16 %v3813
    %v3950 = vunpack.c.l.b16 %v3814
    %v3951 = vunpack.c.h.b16 %v3814
    %v3952 = vunpack.c.l.b16 %v3815
    %v3953 = vunpack.c.h.b16 %v3815
    %v3954 = vunpack.c.l.b16 %v3816
    %v3955 = vunpack.c.h.b16 %v3816
    %v3956 = vunpack.c.l.b16 %v3817
    %v3957 = vunpack.c.h.b16 %v3817
    %v3958 = vunpack.c.l.b16 %v3818
    %v3959 = vunpack.c.h.b16 %v3818
    %v3960 = vunpack.c.l.b16 %v3819
    %v3961 = vunpack.c.h.b16 %v3819
    %v3962 = vunpack.c.l.b16 %v3820
    %v3963 = vunpack.c.h.b16 %v3820
    %v3964 = vunpack.c.l.b16 %v3821
    %v3965 = vunpack.c.h.b16 %v3821
    %v3966 = vunpack.c.l.b16 %v3822
    %v3967 = vunpack.c.h.b16 %v3822
    %v3968 = vunpack.c.l.b16 %v3823
    %v3969 = vunpack.c.h.b16 %v3823
    %v3970 = vunpack.c.l.b16 %v3824
    %v3971 = vunpack.c.h.b16 %v3824
    %v3972 = vunpack.c.l.b16 %v3825
    %v3973 = vunpack.c.h.b16 %v3825
    %v3974 = vunpack.c.l.b16 %v3826
    %v3975 = vunpack.c.h.b16 %v3826
    %v3976 = vunpack.c.l.b16 %v3827
    %v3977 = vunpack.c.h.b16 %v3827
    %v3978 = vunpack.c.l.b16 %v3828
    %v3979 = vunpack.c.h.b16 %v3828
    %v3980 = vunpack.c.l.b16 %v3829
    %v3981 = vunpack.c.h.b16 %v3829
    %v3982 = vunpack.c.l.b16 %v3830
    %v3983 = vunpack.c.h.b16 %v3830
    %v3984 = vunpack.c.l.b16 %v3831
    %v3985 = vunpack.c.h.b16 %v3831
    %v3986 = vunpack.c.l.b16 %v3832
    %v3987 = vunpack.c.h.b16 %v3832
    %v3988 = vunpack.c.l.b16 %v3833
    %v3989 = vunpack.c.h.b16 %v3833
    %v3990 = vunpack.c.l.b16 %v3834
    %v3991 = vunpack.c.h.b16 %v3834
    %v3992 = vunpack.c.l.b16 %v3835
    %v3993 = vunpack.c.h.b16 %v3835
    %v3994 = vunpack.c.l.b16 %v3836
    %v3995 = vunpack.c.h.b16 %v3836
    %v3996 = vunpack.c.l.b16 %v3837
    %v3997 = vunpack.c.h.b16 %v3837
    %v3998 = vunpack.c.l.b16 %v3838
    %v3999 = vunpack.c.h.b16 %v3838
    %v4000 = vunpack.c.l.b16 %v3839
    %v4001 = vunpack.c.h.b16 %v3839
    %v4002 = vunpack.c.l.b16 %v3840
    %v4003 = vunpack.c.h.b16 %v3840
    %v4004 = vunpack.c.l.b16 %v3841
    %v4005 = vunpack.c.h.b16 %v3841
    %v4006 = vunpack.c.l.b16 %v3842
    %v4007 = vunpack.c.h.b16 %v3842
    %v4008 = vunpack.c.l.b16 %v3843
    %v4009 = vunpack.c.h.b16 %v3843
    %v4010 = vunpack.c.l.b16 %v3844
    %v4011 = vunpack.c.h.b16 %v3844
    %v4012 = vunpack.c.l.b16 %v3845
    %v4013 = vunpack.c.h.b16 %v3845
    %v4014 = vunpack.c.l.b16 %v3846
    %v4015 = vunpack.c.h.b16 %v3846
    %v4016 = vunpack.c.l.b16 %v3847
    %v4017 = vunpack.c.h.b16 %v3847
    %v4018 = vunpack.c.l.b16 %v3848
    %v4019 = vunpack.c.h.b16 %v3848
    %v4020 = vunpack.c.l.b16 %v3849
    %v4021 = vunpack.c.h.b16 %v3849
    %v4022 = vunpack.c.l.b16 %v3850
    %v4023 = vunpack.c.h.b16 %v3850
    %v4024 = vunpack.c.l.b16 %v3851
    %v4025 = vunpack.c.h.b16 %v3851
    %v4026 = vunpack.c.l.b16 %v3852
    %v4027 = vunpack.c.h.b16 %v3852
    %v4028 = vunpack.c.l.b16 %v3853
    %v4029 = vunpack.c.h.b16 %v3853
    %v4030 = vunpack.c.l.b16 %v3854
    %v4031 = vunpack.c.h.b16 %v3854
    %v4032 = vpack.c.b16 %v3942, %v3936
    %v4033 = vpack.c.b16 %v3943, %v3937
    %v4034 = vpack.c.b16 %v3944, %v3938
    %v4035 = vpack.c.b16 %v3945, %v3939
    %v4036 = vpack.c.b16 %v3946, %v3940
    %v4037 = vpack.c.b16 %v3947, %v3941
    %v4038 = vpack.c.b16 %v3954, %v3948
    %v4039 = vpack.c.b16 %v3955, %v3949
    %v4040 = vpack.c.b16 %v3956, %v3950
    %v4041 = vpack.c.b16 %v3957, %v3951
    %v4042 = vpack.c.b16 %v3958, %v3952
    %v4043 = vpack.c.b16 %v3959, %v3953
    %v4044 = vpack.c.b16 %v3966, %v3960
    %v4045 = vpack.c.b16 %v3967, %v3961
    %v4046 = vpack.c.b16 %v3968, %v3962
    %v4047 = vpack.c.b16 %v3969, %v3963
    %v4048 = vpack.c.b16 %v3970, %v3964
    %v4049 = vpack.c.b16 %v3971, %v3965
    %v4050 = vpack.c.b16 %v3978, %v3972
    %v4051 = vpack.c.b16 %v3979, %v3973
    %v4052 = vpack.c.b16 %v3980, %v3974
    %v4053 = vpack.c.b16 %v3981, %v3975
    %v4054 = vpack.c.b16 %v3982, %v3976
    %v4055 = vpack.c.b16 %v3983, %v3977
    %v4056 = vpack.c.b16 %v3990, %v3984
    %v4057 = vpack.c.b16 %v3991, %v3985
    %v4058 = vpack.c.b16 %v3992, %v3986
    %v4059 = vpack.c.b16 %v3993, %v3987
    %v4060 = vpack.c.b16 %v3994, %v3988
    %v4061 = vpack.c.b16 %v3995, %v3989
    %v4062 = vpack.c.b16 %v4002, %v3996
    %v4063 = vpack.c.b16 %v4003, %v3997
    %v4064 = vpack.c.b16 %v4004, %v3998
    %v4065 = vpack.c.b16 %v4005, %v3999
    %v4066 = vpack.c.b16 %v4006, %v4000
    %v4067 = vpack.c.b16 %v4007, %v4001
    %v4068 = vpack.c.b16 %v4014, %v4008
    %v4069 = vpack.c.b16 %v4015, %v4009
    %v4070 = vpack.c.b16 %v4016, %v4010
    %v4071 = vpack.c.b16 %v4017, %v4011
    %v4072 = vpack.c.b16 %v4018, %v4012
    %v4073 = vpack.c.b16 %v4019, %v4013
    %v4074 = vpack.c.b16 %v4026, %v4020
    %v4075 = vpack.c.b16 %v4027, %v4021
    %v4076 = vpack.c.b16 %v4028, %v4022
    %v4077 = vpack.c.b16 %v4029, %v4023
    %v4078 = vpack.c.b16 %v4030, %v4024
    %v4079 = vpack.c.b16 %v4031, %v4025
    %4128 = vmatprep.subr.bf16.mxu0 %v4033
    %4129 = vmatpush1.bf16.msra.mxu0 %v4032
    %4130 = vmatprep.subr.bf16.mxu0 %v4039
    %4131 = vmatpush1.bf16.msra.mxu0 %v4038
    %4132 = vmatprep.subr.bf16.mxu0 %v4045
    %4133 = vmatpush1.bf16.msra.mxu0 %v4044
    %4134 = vmatprep.subr.bf16.mxu0 %v4051
    %4135 = vmatpush1.bf16.msra.mxu0 %v4050
    %4136 = vmatprep.subr.bf16.mxu0 %v4057
    %4137 = vmatpush1.bf16.msra.mxu0 %v4056
    %4138 = vmatprep.subr.bf16.mxu0 %v4063
    %4139 = vmatpush1.bf16.msra.mxu0 %v4062
    %4140 = vmatprep.subr.bf16.mxu0 %v4069
    %4141 = vmatpush1.bf16.msra.mxu0 %v4068
    %4142 = vmatprep.subr.bf16.mxu0 %v4075
    %4143 = vmatpush1.bf16.msra.mxu0 %v4074
    %4144 = vmatprep.subr.bf16.mxu0 0
    %4145 = vmatpush1.bf16.msra.mxu0 0
    %4146 = vmatprep.subr.bf16.mxu0 0
    %4147 = vmatpush1.bf16.msra.mxu0 0
    %4148 = vmatprep.subr.bf16.mxu0 0
    %4149 = vmatpush1.bf16.msra.mxu0 0
    %4150 = vmatprep.subr.bf16.mxu0 0
    %4151 = vmatpush1.bf16.msra.mxu0 0
    %4152 = vmatprep.subr.bf16.mxu0 0
    %4153 = vmatpush1.bf16.msra.mxu0 0
    %4154 = vmatprep.subr.bf16.mxu0 0
    %4155 = vmatpush1.bf16.msra.mxu0 0
    %4156 = vmatprep.subr.bf16.mxu0 0
    %4157 = vmatpush1.bf16.msra.mxu0 0
    %4158 = vmatprep.subr.bf16.mxu0 0
    %4159 = vmatpush1.bf16.msra.mxu0 0
    %4160 = vmatprep.mubr.bf16.mxu0 0
    %4161 = vmatmul.mubr.bf16.gmra.mrb[0].mxu0 %v3805
    %v4162 = vpop.f32.mrb[0].mxu0
    %v4163 = vadd.f32 %v3861, %v4162
    %v4164 = vpop.f32.mrb[0].mxu0
    %v4165 = vadd.f32 %v3865, %v4164
    %v4166 = vpop.f32.mrb[0].mxu0
    %v4167 = vpop.f32.mrb[0].mxu0
    %4168 = vdwg.mxu0
    %4169 = vmatprep.subr.bf16.mxu0 %v4035
    %4170 = vmatpush1.bf16.msra.mxu0 %v4034
    %4171 = vmatprep.subr.bf16.mxu0 %v4041
    %4172 = vmatpush1.bf16.msra.mxu0 %v4040
    %4173 = vmatprep.subr.bf16.mxu0 %v4047
    %4174 = vmatpush1.bf16.msra.mxu0 %v4046
    %4175 = vmatprep.subr.bf16.mxu0 %v4053
    %4176 = vmatpush1.bf16.msra.mxu0 %v4052
    %4177 = vmatprep.subr.bf16.mxu0 %v4059
    %4178 = vmatpush1.bf16.msra.mxu0 %v4058
    %4179 = vmatprep.subr.bf16.mxu0 %v4065
    %4180 = vmatpush1.bf16.msra.mxu0 %v4064
    %4181 = vmatprep.subr.bf16.mxu0 %v4071
    %4182 = vmatpush1.bf16.msra.mxu0 %v4070
    %4183 = vmatprep.subr.bf16.mxu0 %v4077
    %4184 = vmatpush1.bf16.msra.mxu0 %v4076
    %4185 = vmatprep.subr.bf16.mxu0 0
    %4186 = vmatpush1.bf16.msra.mxu0 0
    %4187 = vmatprep.subr.bf16.mxu0 0
    %4188 = vmatpush1.bf16.msra.mxu0 0
    %4189 = vmatprep.subr.bf16.mxu0 0
    %4190 = vmatpush1.bf16.msra.mxu0 0
    %4191 = vmatprep.subr.bf16.mxu0 0
    %4192 = vmatpush1.bf16.msra.mxu0 0
    %4193 = vmatprep.subr.bf16.mxu0 0
    %4194 = vmatpush1.bf16.msra.mxu0 0
    %4195 = vmatprep.subr.bf16.mxu0 0
    %4196 = vmatpush1.bf16.msra.mxu0 0
    %4197 = vmatprep.subr.bf16.mxu0 0
    %4198 = vmatpush1.bf16.msra.mxu0 0
    %4199 = vmatprep.subr.bf16.mxu0 0
    %4200 = vmatpush1.bf16.msra.mxu0 0
    %4201 = vmatprep.mubr.bf16.mxu0 0
    %4202 = vmatmul.mubr.bf16.gmra.mrb[0].mxu0 %v3805
    %v4203 = vpop.f32.mrb[0].mxu0
    %v4204 = vadd.f32 %v3869, %v4203
    %v4205 = vpop.f32.mrb[0].mxu0
    %v4206 = vadd.f32 %v3873, %v4205
    %v4207 = vpop.f32.mrb[0].mxu0
    %v4208 = vpop.f32.mrb[0].mxu0
    %4209 = vdwg.mxu0
    %4210 = vmatprep.subr.bf16.mxu0 %v4037
    %4211 = vmatpush1.bf16.msra.mxu0 %v4036
    %4212 = vmatprep.subr.bf16.mxu0 %v4043
    %4213 = vmatpush1.bf16.msra.mxu0 %v4042
    %4214 = vmatprep.subr.bf16.mxu0 %v4049
    %4215 = vmatpush1.bf16.msra.mxu0 %v4048
    %4216 = vmatprep.subr.bf16.mxu0 %v4055
    %4217 = vmatpush1.bf16.msra.mxu0 %v4054
    %4218 = vmatprep.subr.bf16.mxu0 %v4061
    %4219 = vmatpush1.bf16.msra.mxu0 %v4060
    %4220 = vmatprep.subr.bf16.mxu0 %v4067
    %4221 = vmatpush1.bf16.msra.mxu0 %v4066
    %4222 = vmatprep.subr.bf16.mxu0 %v4073
    %4223 = vmatpush1.bf16.msra.mxu0 %v4072
    %4224 = vmatprep.subr.bf16.mxu0 %v4079
    %4225 = vmatpush1.bf16.msra.mxu0 %v4078
    %4226 = vmatprep.subr.bf16.mxu0 0
    %4227 = vmatpush1.bf16.msra.mxu0 0
    %4228 = vmatprep.subr.bf16.mxu0 0
    %4229 = vmatpush1.bf16.msra.mxu0 0
    %4230 = vmatprep.subr.bf16.mxu0 0
    %4231 = vmatpush1.bf16.msra.mxu0 0
    %4232 = vmatprep.subr.bf16.mxu0 0
    %4233 = vmatpush1.bf16.msra.mxu0 0
    %4234 = vmatprep.subr.bf16.mxu0 0
    %4235 = vmatpush1.bf16.msra.mxu0 0
    %4236 = vmatprep.subr.bf16.mxu0 0
    %4237 = vmatpush1.bf16.msra.mxu0 0
    %4238 = vmatprep.subr.bf16.mxu0 0
    %4239 = vmatpush1.bf16.msra.mxu0 0
    %4240 = vmatprep.subr.bf16.mxu0 0
    %4241 = vmatpush1.bf16.msra.mxu0 0
    %4242 = vmatprep.mubr.bf16.mxu0 0
    %4243 = vmatmul.mubr.bf16.gmra.mrb[0].mxu0 %v3805
    %v4244 = vpop.f32.mrb[0].mxu0
    %v4245 = vadd.f32 %v3877, %v4244
    %v4246 = vpop.f32.mrb[0].mxu0
    %v4247 = vadd.f32 %v3881, %v4246
    %v4248 = vpop.f32.mrb[0].mxu0
    %v4249 = vpop.f32.mrb[0].mxu0
    %4250 = vdwg.mxu0
    %v4251 = vpack.c.bf16 %v4163, %v4163
    %v4252 = vpack.c.bf16 %v4204, %v4204
    %4253 = vmatprep.subr.bf16.mxu0 0
    %4254 = vmatpush1.bf16.xpose.msra.mxu0 %v4252
    %4255 = vmatprep.subr.bf16.mxu0 0
    %4256 = vmatpush1.bf16.xpose.msra.mxu0 0
    %4257 = vmatprep.subr.bf16.mxu0 0
    %4258 = vmatpush1.bf16.xpose.msra.mxu0 0
    %4259 = vmatprep.subr.bf16.mxu0 0
    %4260 = vmatpush1.bf16.xpose.msra.mxu0 0
    %4261 = vmatprep.subr.bf16.mxu0 0
    %4262 = vmatpush1.bf16.xpose.msra.mxu0 0
    %4263 = vmatprep.subr.bf16.mxu0 0
    %4264 = vmatpush1.bf16.xpose.msra.mxu0 0
    %4265 = vmatprep.subr.bf16.mxu0 0
    %4266 = vmatpush1.bf16.xpose.msra.mxu0 0
    %4267 = vmatprep.subr.bf16.mxu0 0
    %4268 = vmatpush1.bf16.xpose.msra.mxu0 0
    %4269 = vmatprep.subr.bf16.mxu0 0
    %4270 = vmatpush1.bf16.xpose.msra.mxu0 0
    %4271 = vmatprep.subr.bf16.mxu0 0
    %4272 = vmatpush1.bf16.xpose.msra.mxu0 0
    %4273 = vmatprep.subr.bf16.mxu0 0
    %4274 = vmatpush1.bf16.xpose.msra.mxu0 0
    %4275 = vmatprep.subr.bf16.mxu0 0
    %4276 = vmatpush1.bf16.xpose.msra.mxu0 0
    %4277 = vmatprep.subr.bf16.mxu0 0
    %4278 = vmatpush1.bf16.xpose.msra.mxu0 0
    %4279 = vmatprep.subr.bf16.mxu0 0
    %4280 = vmatpush1.bf16.xpose.msra.mxu0 0
    %4281 = vmatprep.subr.bf16.mxu0 0
    %4282 = vmatpush1.bf16.xpose.msra.mxu0 0
    %4283 = vmatprep.subr.bf16.mxu0 0
    %4284 = vmatpush1.bf16.xpose.msra.mxu0 0
    %4285 = vmatprep.mubr.bf16.mxu0 0
    %4286 = vmatmul.mubr.bf16.gmra.mrb[0].mxu0 %v4251
    %v4287 = vpop.f32.mrb[0].mxu0
    %v4288 = vadd.f32 0.0, %v4287
    %v4289 = vpop.f32.mrb[0].mxu0
    %v4290 = vpop.f32.mrb[0].mxu0
    %v4291 = vpop.f32.mrb[0].mxu0
    %4292 = vdwg.mxu0
    %v4293 = vmul.f32 %v4288, 0.18898223
    %v4294 = vsel %vm930, %v4293, -inf
    %4295 = vmax.xlane.f32.xlu0 %v4294
    %v4296 = vpop.xlane.xlu0 %4295
    %v4297 = vsub.f32 %v4293, %v4296
    %v4298 = vmul.f32 %v4297, 1.442695
    %v4299 = vpow.pop %v4298
    %v4300 = vsel %vm930, %v4299, 0.0
    %4301 = vadd.xlane.f32.xlu0 %v4300
    %v4302 = vpop.xlane.xlu0 %4301
    %v4303 = vrcp.pop %v4302
    %v4304 = vmul.f32 %v4299, %v4303
    %v4305 = vpack.c.bf16 %v4304, %v4304
    %v4306 = vpack.c.bf16 %v4245, %v4245
    %v4308 = vsel %vm930, %v4305, 0
    %v4311 = vsel %vm947, %v4306, 0
    %4313 = vmatprep.subr.bf16.mxu0 0
    %4314 = vmatpush1.bf16.msra.mxu0 %v4311
    %4315 = vmatprep.subr.bf16.mxu0 0
    %4316 = vmatpush1.bf16.msra.mxu0 0
    %4317 = vmatprep.subr.bf16.mxu0 0
    %4318 = vmatpush1.bf16.msra.mxu0 0
    %4319 = vmatprep.subr.bf16.mxu0 0
    %4320 = vmatpush1.bf16.msra.mxu0 0
    %4321 = vmatprep.subr.bf16.mxu0 0
    %4322 = vmatpush1.bf16.msra.mxu0 0
    %4323 = vmatprep.subr.bf16.mxu0 0
    %4324 = vmatpush1.bf16.msra.mxu0 0
    %4325 = vmatprep.subr.bf16.mxu0 0
    %4326 = vmatpush1.bf16.msra.mxu0 0
    %4327 = vmatprep.subr.bf16.mxu0 0
    %4328 = vmatpush1.bf16.msra.mxu0 0
    %4329 = vmatprep.subr.bf16.mxu0 0
    %4330 = vmatpush1.bf16.msra.mxu0 0
    %4331 = vmatprep.subr.bf16.mxu0 0
    %4332 = vmatpush1.bf16.msra.mxu0 0
    %4333 = vmatprep.subr.bf16.mxu0 0
    %4334 = vmatpush1.bf16.msra.mxu0 0
    %4335 = vmatprep.subr.bf16.mxu0 0
    %4336 = vmatpush1.bf16.msra.mxu0 0
    %4337 = vmatprep.subr.bf16.mxu0 0
    %4338 = vmatpush1.bf16.msra.mxu0 0
    %4339 = vmatprep.subr.bf16.mxu0 0
    %4340 = vmatpush1.bf16.msra.mxu0 0
    %4341 = vmatprep.subr.bf16.mxu0 0
    %4342 = vmatpush1.bf16.msra.mxu0 0
    %4343 = vmatprep.subr.bf16.mxu0 0
    %4344 = vmatpush1.bf16.msra.mxu0 0
    %4345 = vmatprep.mubr.bf16.mxu0 0
    %4346 = vmatmul.mubr.bf16.gmra.mrb[0].mxu0 %v4308
    %v4347 = vpop.f32.mrb[0].mxu0
    %v4348 = vadd.f32 0.0, %v4347
    %v4349 = vpop.f32.mrb[0].mxu0
    %v4350 = vpop.f32.mrb[0].mxu0
    %v4351 = vpop.f32.mrb[0].mxu0
    %4352 = vdwg.mxu0
    %v4353 = vpack.c.bf16 %v4165, %v4165
    %v4354 = vpack.c.bf16 %v4206, %v4206
    %4355 = vmatprep.subr.bf16.mxu0 0
    %4356 = vmatpush1.bf16.xpose.msra.mxu0 %v4354
    %4357 = vmatprep.subr.bf16.mxu0 0
    %4358 = vmatpush1.bf16.xpose.msra.mxu0 0
    %4359 = vmatprep.subr.bf16.mxu0 0
    %4360 = vmatpush1.bf16.xpose.msra.mxu0 0
    %4361 = vmatprep.subr.bf16.mxu0 0
    %4362 = vmatpush1.bf16.xpose.msra.mxu0 0
    %4363 = vmatprep.subr.bf16.mxu0 0
    %4364 = vmatpush1.bf16.xpose.msra.mxu0 0
    %4365 = vmatprep.subr.bf16.mxu0 0
    %4366 = vmatpush1.bf16.xpose.msra.mxu0 0
    %4367 = vmatprep.subr.bf16.mxu0 0
    %4368 = vmatpush1.bf16.xpose.msra.mxu0 0
    %4369 = vmatprep.subr.bf16.mxu0 0
    %4370 = vmatpush1.bf16.xpose.msra.mxu0 0
    %4371 = vmatprep.subr.bf16.mxu0 0
    %4372 = vmatpush1.bf16.xpose.msra.mxu0 0
    %4373 = vmatprep.subr.bf16.mxu0 0
    %4374 = vmatpush1.bf16.xpose.msra.mxu0 0
    %4375 = vmatprep.subr.bf16.mxu0 0
    %4376 = vmatpush1.bf16.xpose.msra.mxu0 0
    %4377 = vmatprep.subr.bf16.mxu0 0
    %4378 = vmatpush1.bf16.xpose.msra.mxu0 0
    %4379 = vmatprep.subr.bf16.mxu0 0
    %4380 = vmatpush1.bf16.xpose.msra.mxu0 0
    %4381 = vmatprep.subr.bf16.mxu0 0
    %4382 = vmatpush1.bf16.xpose.msra.mxu0 0
    %4383 = vmatprep.subr.bf16.mxu0 0
    %4384 = vmatpush1.bf16.xpose.msra.mxu0 0
    %4385 = vmatprep.subr.bf16.mxu0 0
    %4386 = vmatpush1.bf16.xpose.msra.mxu0 0
    %4387 = vmatprep.mubr.bf16.mxu0 0
    %4388 = vmatmul.mubr.bf16.gmra.mrb[0].mxu0 %v4353
    %v4389 = vpop.f32.mrb[0].mxu0
    %v4390 = vadd.f32 0.0, %v4389
    %v4391 = vpop.f32.mrb[0].mxu0
    %v4392 = vpop.f32.mrb[0].mxu0
    %v4393 = vpop.f32.mrb[0].mxu0
    %4394 = vdwg.mxu0
    %v4395 = vmul.f32 %v4390, 0.18898223
    %v4396 = vsel %vm930, %v4395, -inf
    %4397 = vmax.xlane.f32.xlu0 %v4396
    %v4398 = vpop.xlane.xlu0 %4397
    %v4399 = vsub.f32 %v4395, %v4398
    %v4400 = vmul.f32 %v4399, 1.442695
    %v4401 = vpow.pop %v4400
    %v4402 = vsel %vm930, %v4401, 0.0
    %4403 = vadd.xlane.f32.xlu0 %v4402
    %v4404 = vpop.xlane.xlu0 %4403
    %v4405 = vrcp.pop %v4404
    %v4406 = vmul.f32 %v4401, %v4405
    %v4407 = vpack.c.bf16 %v4406, %v4406
    %v4408 = vpack.c.bf16 %v4247, %v4247
    %v4410 = vsel %vm930, %v4407, 0
    %v4413 = vsel %vm947, %v4408, 0
    %4415 = vmatprep.subr.bf16.mxu0 0
    %4416 = vmatpush1.bf16.msra.mxu0 %v4413
    %4417 = vmatprep.subr.bf16.mxu0 0
    %4418 = vmatpush1.bf16.msra.mxu0 0
    %4419 = vmatprep.subr.bf16.mxu0 0
    %4420 = vmatpush1.bf16.msra.mxu0 0
    %4421 = vmatprep.subr.bf16.mxu0 0
    %4422 = vmatpush1.bf16.msra.mxu0 0
    %4423 = vmatprep.subr.bf16.mxu0 0
    %4424 = vmatpush1.bf16.msra.mxu0 0
    %4425 = vmatprep.subr.bf16.mxu0 0
    %4426 = vmatpush1.bf16.msra.mxu0 0
    %4427 = vmatprep.subr.bf16.mxu0 0
    %4428 = vmatpush1.bf16.msra.mxu0 0
    %4429 = vmatprep.subr.bf16.mxu0 0
    %4430 = vmatpush1.bf16.msra.mxu0 0
    %4431 = vmatprep.subr.bf16.mxu0 0
    %4432 = vmatpush1.bf16.msra.mxu0 0
    %4433 = vmatprep.subr.bf16.mxu0 0
    %4434 = vmatpush1.bf16.msra.mxu0 0
    %4435 = vmatprep.subr.bf16.mxu0 0
    %4436 = vmatpush1.bf16.msra.mxu0 0
    %4437 = vmatprep.subr.bf16.mxu0 0
    %4438 = vmatpush1.bf16.msra.mxu0 0
    %4439 = vmatprep.subr.bf16.mxu0 0
    %4440 = vmatpush1.bf16.msra.mxu0 0
    %4441 = vmatprep.subr.bf16.mxu0 0
    %4442 = vmatpush1.bf16.msra.mxu0 0
    %4443 = vmatprep.subr.bf16.mxu0 0
    %4444 = vmatpush1.bf16.msra.mxu0 0
    %4445 = vmatprep.subr.bf16.mxu0 0
    %4446 = vmatpush1.bf16.msra.mxu0 0
    %4447 = vmatprep.mubr.bf16.mxu0 0
    %4448 = vmatmul.mubr.bf16.gmra.mrb[0].mxu0 %v4410
    %v4449 = vpop.f32.mrb[0].mxu0
    %v4450 = vadd.f32 0.0, %v4449
    %v4451 = vpop.f32.mrb[0].mxu0
    %v4452 = vpop.f32.mrb[0].mxu0
    %v4453 = vpop.f32.mrb[0].mxu0
    %4454 = vdwg.mxu0
    %v4455 = vpack.c.bf16 %v4348, %v4348
    %v4456 = vpack.c.bf16 %v4450, %v4450
    %s4457 = scalar_lea.vmem [#allocation14], 384
    %v4458 = vld [vmem:[%s4457] sm:$0xf]
    %v4459 = vld [vmem:[%s4457 + $0x4] sm:$0xf]
    %v4460 = vld [vmem:[%s4457 + $0x8] sm:$0xf]
    %v4461 = vld [vmem:[%s4457 + $0xc] sm:$0xf]
    %v4462 = vld [vmem:[%s4457 + $0x10] sm:$0xf]
    %v4463 = vld [vmem:[%s4457 + $0x14] sm:$0xf]
    %v4464 = vld [vmem:[%s4457 + $0x18] sm:$0xf]
    %v4465 = vld [vmem:[%s4457 + $0x1c] sm:$0xf]
    %v4466 = vld [vmem:[%s4457 + $0x20] sm:$0xf]
    %v4467 = vld [vmem:[%s4457 + $0x24] sm:$0xf]
    %v4468 = vld [vmem:[%s4457 + $0x28] sm:$0xf]
    %v4469 = vld [vmem:[%s4457 + $0x2c] sm:$0xf]
    %v4470 = vld [vmem:[%s4457 + $0x30] sm:$0xf]
    %v4471 = vld [vmem:[%s4457 + $0x34] sm:$0xf]
    %v4472 = vld [vmem:[%s4457 + $0x38] sm:$0xf]
    %v4473 = vld [vmem:[%s4457 + $0x3c] sm:$0xf]
    %v4474 = vld [vmem:[%s4457 + $0x40] sm:$0xf]
    %v4475 = vld [vmem:[%s4457 + $0x44] sm:$0xf]
    %v4476 = vld [vmem:[%s4457 + $0x48] sm:$0xf]
    %v4477 = vld [vmem:[%s4457 + $0x4c] sm:$0xf]
    %v4478 = vld [vmem:[%s4457 + $0x50] sm:$0xf]
    %v4479 = vld [vmem:[%s4457 + $0x54] sm:$0xf]
    %v4480 = vld [vmem:[%s4457 + $0x58] sm:$0xf]
    %v4481 = vld [vmem:[%s4457 + $0x5c] sm:$0xf]
    %v4482 = vld [vmem:[%s4457 + $0x60] sm:$0xf]
    %v4483 = vld [vmem:[%s4457 + $0x64] sm:$0xf]
    %v4484 = vld [vmem:[%s4457 + $0x68] sm:$0xf]
    %v4485 = vld [vmem:[%s4457 + $0x6c] sm:$0xf]
    %v4486 = vld [vmem:[%s4457 + $0x70] sm:$0xf]
    %v4487 = vld [vmem:[%s4457 + $0x74] sm:$0xf]
    %v4488 = vld [vmem:[%s4457 + $0x78] sm:$0xf]
    %v4489 = vld [vmem:[%s4457 + $0x7c] sm:$0xf]
    %s4490 = scalar_lea.vmem %s8, 3
    %v4491 = vld [vmem:[%s4490] sm:$0x1]
    %v4493 = vlaneseq
    %v4494 = vshrl.u32 %v4493, 7
    %v4495 = vsub.s32 0, %v4494
    %v4496 = vrot.slane %v4491, %v4495
    %v4530 = vunpack.c.l.b16 %v4458
    %v4531 = vunpack.c.l.b16 %v4459
    %v4532 = vunpack.c.l.b16 %v4460
    %v4533 = vunpack.c.l.b16 %v4461
    %v4534 = vunpack.c.l.b16 %v4462
    %v4535 = vunpack.c.l.b16 %v4463
    %v4536 = vunpack.c.l.b16 %v4464
    %v4537 = vunpack.c.l.b16 %v4465
    %v4538 = vunpack.c.l.b16 %v4466
    %v4539 = vunpack.c.l.b16 %v4467
    %v4540 = vunpack.c.l.b16 %v4468
    %v4541 = vunpack.c.l.b16 %v4469
    %v4542 = vunpack.c.l.b16 %v4470
    %v4543 = vunpack.c.l.b16 %v4471
    %v4544 = vunpack.c.l.b16 %v4472
    %v4545 = vunpack.c.l.b16 %v4473
    %v4546 = vunpack.c.l.b16 %v4474
    %v4547 = vunpack.c.l.b16 %v4475
    %v4548 = vunpack.c.l.b16 %v4476
    %v4549 = vunpack.c.l.b16 %v4477
    %v4550 = vunpack.c.l.b16 %v4478
    %v4551 = vunpack.c.l.b16 %v4479
    %v4552 = vunpack.c.l.b16 %v4480
    %v4553 = vunpack.c.l.b16 %v4481
    %v4554 = vunpack.c.l.b16 %v4482
    %v4555 = vunpack.c.l.b16 %v4483
    %v4556 = vunpack.c.l.b16 %v4484
    %v4557 = vunpack.c.l.b16 %v4485
    %v4558 = vunpack.c.l.b16 %v4486
    %v4559 = vunpack.c.l.b16 %v4487
    %v4560 = vunpack.c.l.b16 %v4488
    %v4561 = vunpack.c.l.b16 %v4489
    %v4562 = vpack.c.b16 %v4531, %v4530
    %v4563 = vpack.c.b16 %v4533, %v4532
    %v4564 = vpack.c.b16 %v4535, %v4534
    %v4565 = vpack.c.b16 %v4537, %v4536
    %v4566 = vpack.c.b16 %v4539, %v4538
    %v4567 = vpack.c.b16 %v4541, %v4540
    %v4568 = vpack.c.b16 %v4543, %v4542
    %v4569 = vpack.c.b16 %v4545, %v4544
    %v4570 = vpack.c.b16 %v4547, %v4546
    %v4571 = vpack.c.b16 %v4549, %v4548
    %v4572 = vpack.c.b16 %v4551, %v4550
    %v4573 = vpack.c.b16 %v4553, %v4552
    %v4574 = vpack.c.b16 %v4555, %v4554
    %v4575 = vpack.c.b16 %v4557, %v4556
    %v4576 = vpack.c.b16 %v4559, %v4558
    %v4577 = vpack.c.b16 %v4561, %v4560
    %4594 = vmatprep.subr.bf16.mxu0 0
    %4595 = vmatpush1.bf16.msra.mxu0 %v4562
    %4596 = vmatprep.subr.bf16.mxu0 0
    %4597 = vmatpush1.bf16.msra.mxu0 %v4563
    %4598 = vmatprep.subr.bf16.mxu0 0
    %4599 = vmatpush1.bf16.msra.mxu0 %v4564
    %4600 = vmatprep.subr.bf16.mxu0 0
    %4601 = vmatpush1.bf16.msra.mxu0 %v4565
    %4602 = vmatprep.subr.bf16.mxu0 0
    %4603 = vmatpush1.bf16.msra.mxu0 %v4566
    %4604 = vmatprep.subr.bf16.mxu0 0
    %4605 = vmatpush1.bf16.msra.mxu0 %v4567
    %4606 = vmatprep.subr.bf16.mxu0 0
    %4607 = vmatpush1.bf16.msra.mxu0 %v4568
    %4608 = vmatprep.subr.bf16.mxu0 0
    %4609 = vmatpush1.bf16.msra.mxu0 %v4569
    %4610 = vmatprep.subr.bf16.mxu0 0
    %4611 = vmatpush1.bf16.msra.mxu0 %v4570
    %4612 = vmatprep.subr.bf16.mxu0 0
    %4613 = vmatpush1.bf16.msra.mxu0 %v4571
    %4614 = vmatprep.subr.bf16.mxu0 0
    %4615 = vmatpush1.bf16.msra.mxu0 %v4572
    %4616 = vmatprep.subr.bf16.mxu0 0
    %4617 = vmatpush1.bf16.msra.mxu0 %v4573
    %4618 = vmatprep.subr.bf16.mxu0 0
    %4619 = vmatpush1.bf16.msra.mxu0 %v4574
    %4620 = vmatprep.subr.bf16.mxu0 0
    %4621 = vmatpush1.bf16.msra.mxu0 %v4575
    %4622 = vmatprep.subr.bf16.mxu0 0
    %4623 = vmatpush1.bf16.msra.mxu0 %v4576
    %4624 = vmatprep.subr.bf16.mxu0 0
    %4625 = vmatpush1.bf16.msra.mxu0 %v4577
    %4626 = vmatprep.mubr.bf16.mxu0 %v4456
    %4627 = vmatmul.mubr.bf16.gmra.mrb[0].mxu0 %v4455
    %v4628 = vpop.f32.mrb[0].mxu0
    %v4629 = vadd.f32 %v4496, %v4628
    %v4630 = vpop.f32.mrb[0].mxu0
    %v4631 = vpop.f32.mrb[0].mxu0
    %v4632 = vpop.f32.mrb[0].mxu0
    %4633 = vdwg.mxu0
    %v4634 = vadd.f32 %v3804, %v4629
    %s4635 = scalar_lea.vmem [#allocation22], 3
    %v4636 = vld [vmem:[%s4635] sm:$0x1]
    %s4637 = scalar_lea.vmem [#allocation23], 3
    %v4638 = vld [vmem:[%s4637] sm:$0x1]
    %4639 = vadd.xlane.f32.xlu0 %v4634
    %v4640 = vpop.xlane.xlu0 %4639
    %v4641 = vmul.f32 %v4640, 0.017857144
    %v4642 = vsub.f32 %v4634, %v4641
    %v4643 = vsel %vm2684, %v4642, 0.0
    %v4644 = vmul.f32 %v4643, %v4643
    %4645 = vadd.xlane.f32.xlu0 %v4644
    %v4646 = vpop.xlane.xlu0 %4645
    %v4647 = vmul.f32 %v4646, 0.017857144
    %v4648 = vadd.f32 %v4647, 1e-05
    %v4649 = vrsqrt.pop %v4648
    %v4650 = vmul.f32 %v4643, %v4649
    %v4652 = vlaneseq
    %v4653 = vshrl.u32 %v4652, 7
    %v4654 = vsub.s32 0, %v4653
    %v4655 = vrot.slane %v4636, %v4654
    %v4657 = vmul.f32 %v4650, %v4655
    %v4659 = vlaneseq
    %v4660 = vshrl.u32 %v4659, 7
    %v4661 = vsub.s32 0, %v4660
    %v4662 = vrot.slane %v4638, %v4661
    %v4664 = vadd.f32 %v4657, %v4662
    %v4665 = vpack.c.bf16 %v4664, %v4664
    %s4666 = scalar_lea.vmem [#allocation16], 192
    %v4667 = vld [vmem:[%s4666] sm:$0xf]
    %v4668 = vld [vmem:[%s4666 + $0x4] sm:$0xf]
    %v4669 = vld [vmem:[%s4666 + $0x8] sm:$0xf]
    %v4670 = vld [vmem:[%s4666 + $0xc] sm:$0xf]
    %v4671 = vld [vmem:[%s4666 + $0x10] sm:$0xf]
    %v4672 = vld [vmem:[%s4666 + $0x14] sm:$0xf]
    %v4673 = vld [vmem:[%s4666 + $0x18] sm:$0xf]
    %v4674 = vld [vmem:[%s4666 + $0x1c] sm:$0xf]
    %v4675 = vld [vmem:[%s4666 + $0x20] sm:$0xf]
    %v4676 = vld [vmem:[%s4666 + $0x24] sm:$0xf]
    %v4677 = vld [vmem:[%s4666 + $0x28] sm:$0xf]
    %v4678 = vld [vmem:[%s4666 + $0x2c] sm:$0xf]
    %v4679 = vld [vmem:[%s4666 + $0x30] sm:$0xf]
    %v4680 = vld [vmem:[%s4666 + $0x34] sm:$0xf]
    %v4681 = vld [vmem:[%s4666 + $0x38] sm:$0xf]
    %v4682 = vld [vmem:[%s4666 + $0x3c] sm:$0xf]
    %s4683 = scalar_lea.vmem [#allocation17], 3
    %v4684 = vld [vmem:[%s4683] sm:$0x1]
    %v4686 = vlaneseq
    %v4687 = vshrl.u32 %v4686, 7
    %v4688 = vsub.s32 0, %v4687
    %v4689 = vrot.slane %v4684, %v4688
    %v4707 = vunpack.c.l.b16 %v4667
    %v4708 = vunpack.c.l.b16 %v4668
    %v4709 = vunpack.c.l.b16 %v4669
    %v4710 = vunpack.c.l.b16 %v4670
    %v4711 = vunpack.c.l.b16 %v4671
    %v4712 = vunpack.c.l.b16 %v4672
    %v4713 = vunpack.c.l.b16 %v4673
    %v4714 = vunpack.c.l.b16 %v4674
    %v4715 = vunpack.c.l.b16 %v4675
    %v4716 = vunpack.c.l.b16 %v4676
    %v4717 = vunpack.c.l.b16 %v4677
    %v4718 = vunpack.c.l.b16 %v4678
    %v4719 = vunpack.c.l.b16 %v4679
    %v4720 = vunpack.c.l.b16 %v4680
    %v4721 = vunpack.c.l.b16 %v4681
    %v4722 = vunpack.c.l.b16 %v4682
    %v4723 = vpack.c.b16 %v4708, %v4707
    %v4724 = vpack.c.b16 %v4710, %v4709
    %v4725 = vpack.c.b16 %v4712, %v4711
    %v4726 = vpack.c.b16 %v4714, %v4713
    %v4727 = vpack.c.b16 %v4716, %v4715
    %v4728 = vpack.c.b16 %v4718, %v4717
    %v4729 = vpack.c.b16 %v4720, %v4719
    %v4730 = vpack.c.b16 %v4722, %v4721
    %4739 = vmatprep.subr.bf16.mxu0 0
    %4740 = vmatpush1.bf16.msra.mxu0 %v4723
    %4741 = vmatprep.subr.bf16.mxu0 0
    %4742 = vmatpush1.bf16.msra.mxu0 %v4724
    %4743 = vmatprep.subr.bf16.mxu0 0
    %4744 = vmatpush1.bf16.msra.mxu0 %v4725
    %4745 = vmatprep.subr.bf16.mxu0 0
    %4746 = vmatpush1.bf16.msra.mxu0 %v4726
    %4747 = vmatprep.subr.bf16.mxu0 0
    %4748 = vmatpush1.bf16.msra.mxu0 %v4727
    %4749 = vmatprep.subr.bf16.mxu0 0
    %4750 = vmatpush1.bf16.msra.mxu0 %v4728
    %4751 = vmatprep.subr.bf16.mxu0 0
    %4752 = vmatpush1.bf16.msra.mxu0 %v4729
    %4753 = vmatprep.subr.bf16.mxu0 0
    %4754 = vmatpush1.bf16.msra.mxu0 %v4730
    %4755 = vmatprep.subr.bf16.mxu0 0
    %4756 = vmatpush1.bf16.msra.mxu0 0
    %4757 = vmatprep.subr.bf16.mxu0 0
    %4758 = vmatpush1.bf16.msra.mxu0 0
    %4759 = vmatprep.subr.bf16.mxu0 0
    %4760 = vmatpush1.bf16.msra.mxu0 0
    %4761 = vmatprep.subr.bf16.mxu0 0
    %4762 = vmatpush1.bf16.msra.mxu0 0
    %4763 = vmatprep.subr.bf16.mxu0 0
    %4764 = vmatpush1.bf16.msra.mxu0 0
    %4765 = vmatprep.subr.bf16.mxu0 0
    %4766 = vmatpush1.bf16.msra.mxu0 0
    %4767 = vmatprep.subr.bf16.mxu0 0
    %4768 = vmatpush1.bf16.msra.mxu0 0
    %4769 = vmatprep.subr.bf16.mxu0 0
    %4770 = vmatpush1.bf16.msra.mxu0 0
    %4771 = vmatprep.mubr.bf16.mxu0 0
    %4772 = vmatmul.mubr.bf16.gmra.mrb[0].mxu0 %v4665
    %v4773 = vpop.f32.mrb[0].mxu0
    %v4774 = vadd.f32 %v4689, %v4773
    %v4775 = vpop.f32.mrb[0].mxu0
    %v4776 = vpop.f32.mrb[0].mxu0
    %v4777 = vpop.f32.mrb[0].mxu0
    %4778 = vdwg.mxu0
    %v4779 = vmax.f32 %v4774, 0.0
    %v4780 = vpack.c.bf16 %v4779, %v4779
    %s4781 = scalar_lea.vmem [#allocation19], 192
    %v4782 = vld [vmem:[%s4781] sm:$0xf]
    %v4783 = vld [vmem:[%s4781 + $0x4] sm:$0xf]
    %v4784 = vld [vmem:[%s4781 + $0x8] sm:$0xf]
    %v4785 = vld [vmem:[%s4781 + $0xc] sm:$0xf]
    %v4786 = vld [vmem:[%s4781 + $0x10] sm:$0xf]
    %v4787 = vld [vmem:[%s4781 + $0x14] sm:$0xf]
    %v4788 = vld [vmem:[%s4781 + $0x18] sm:$0xf]
    %v4789 = vld [vmem:[%s4781 + $0x1c] sm:$0xf]
    %v4790 = vld [vmem:[%s4781 + $0x20] sm:$0xf]
    %v4791 = vld [vmem:[%s4781 + $0x24] sm:$0xf]
    %v4792 = vld [vmem:[%s4781 + $0x28] sm:$0xf]
    %v4793 = vld [vmem:[%s4781 + $0x2c] sm:$0xf]
    %v4794 = vld [vmem:[%s4781 + $0x30] sm:$0xf]
    %v4795 = vld [vmem:[%s4781 + $0x34] sm:$0xf]
    %v4796 = vld [vmem:[%s4781 + $0x38] sm:$0xf]
    %v4797 = vld [vmem:[%s4781 + $0x3c] sm:$0xf]
    %s4798 = scalar_lea.vmem [#allocation20], 3
    %v4799 = vld [vmem:[%s4798] sm:$0x1]
    %v4801 = vlaneseq
    %v4802 = vshrl.u32 %v4801, 7
    %v4803 = vsub.s32 0, %v4802
    %v4804 = vrot.slane %v4799, %v4803
    %v4822 = vunpack.c.l.b16 %v4782
    %v4823 = vunpack.c.l.b16 %v4783
    %v4824 = vunpack.c.l.b16 %v4784
    %v4825 = vunpack.c.l.b16 %v4785
    %v4826 = vunpack.c.l.b16 %v4786
    %v4827 = vunpack.c.l.b16 %v4787
    %v4828 = vunpack.c.l.b16 %v4788
    %v4829 = vunpack.c.l.b16 %v4789
    %v4830 = vunpack.c.l.b16 %v4790
    %v4831 = vunpack.c.l.b16 %v4791
    %v4832 = vunpack.c.l.b16 %v4792
    %v4833 = vunpack.c.l.b16 %v4793
    %v4834 = vunpack.c.l.b16 %v4794
    %v4835 = vunpack.c.l.b16 %v4795
    %v4836 = vunpack.c.l.b16 %v4796
    %v4837 = vunpack.c.l.b16 %v4797
    %v4838 = vpack.c.b16 %v4823, %v4822
    %v4839 = vpack.c.b16 %v4825, %v4824
    %v4840 = vpack.c.b16 %v4827, %v4826
    %v4841 = vpack.c.b16 %v4829, %v4828
    %v4842 = vpack.c.b16 %v4831, %v4830
    %v4843 = vpack.c.b16 %v4833, %v4832
    %v4844 = vpack.c.b16 %v4835, %v4834
    %v4845 = vpack.c.b16 %v4837, %v4836
    %4854 = vmatprep.subr.bf16.mxu0 0
    %4855 = vmatpush1.bf16.msra.mxu0 %v4838
    %4856 = vmatprep.subr.bf16.mxu0 0
    %4857 = vmatpush1.bf16.msra.mxu0 %v4839
    %4858 = vmatprep.subr.bf16.mxu0 0
    %4859 = vmatpush1.bf16.msra.mxu0 %v4840
    %4860 = vmatprep.subr.bf16.mxu0 0
    %4861 = vmatpush1.bf16.msra.mxu0 %v4841
    %4862 = vmatprep.subr.bf16.mxu0 0
    %4863 = vmatpush1.bf16.msra.mxu0 %v4842
    %4864 = vmatprep.subr.bf16.mxu0 0
    %4865 = vmatpush1.bf16.msra.mxu0 %v4843
    %4866 = vmatprep.subr.bf16.mxu0 0
    %4867 = vmatpush1.bf16.msra.mxu0 %v4844
    %4868 = vmatprep.subr.bf16.mxu0 0
    %4869 = vmatpush1.bf16.msra.mxu0 %v4845
    %4870 = vmatprep.subr.bf16.mxu0 0
    %4871 = vmatpush1.bf16.msra.mxu0 0
    %4872 = vmatprep.subr.bf16.mxu0 0
    %4873 = vmatpush1.bf16.msra.mxu0 0
    %4874 = vmatprep.subr.bf16.mxu0 0
    %4875 = vmatpush1.bf16.msra.mxu0 0
    %4876 = vmatprep.subr.bf16.mxu0 0
    %4877 = vmatpush1.bf16.msra.mxu0 0
    %4878 = vmatprep.subr.bf16.mxu0 0
    %4879 = vmatpush1.bf16.msra.mxu0 0
    %4880 = vmatprep.subr.bf16.mxu0 0
    %4881 = vmatpush1.bf16.msra.mxu0 0
    %4882 = vmatprep.subr.bf16.mxu0 0
    %4883 = vmatpush1.bf16.msra.mxu0 0
    %4884 = vmatprep.subr.bf16.mxu0 0
    %4885 = vmatpush1.bf16.msra.mxu0 0
    %4886 = vmatprep.mubr.bf16.mxu0 0
    %4887 = vmatmul.mubr.bf16.gmra.mrb[0].mxu0 %v4780
    %v4888 = vpop.f32.mrb[0].mxu0
    %v4889 = vadd.f32 %v4804, %v4888
    %v4890 = vpop.f32.mrb[0].mxu0
    %v4891 = vpop.f32.mrb[0].mxu0
    %v4892 = vpop.f32.mrb[0].mxu0
    %4893 = vdwg.mxu0
    %v4894 = vadd.f32 %v4664, %v4889
    %s4895 = scalar_lea.vmem [#allocation25], 3
    %v4896 = vld [vmem:[%s4895] sm:$0x1]
    %s4897 = scalar_lea.vmem [#allocation26], 3
    %v4898 = vld [vmem:[%s4897] sm:$0x1]
    %4899 = vadd.xlane.f32.xlu0 %v4894
    %v4900 = vpop.xlane.xlu0 %4899
    %v4901 = vmul.f32 %v4900, 0.017857144
    %v4902 = vsub.f32 %v4894, %v4901
    %v4903 = vsel %vm2684, %v4902, 0.0
    %v4904 = vmul.f32 %v4903, %v4903
    %4905 = vadd.xlane.f32.xlu0 %v4904
    %v4906 = vpop.xlane.xlu0 %4905
    %v4907 = vmul.f32 %v4906, 0.017857144
    %v4908 = vadd.f32 %v4907, 1e-05
    %v4909 = vrsqrt.pop %v4908
    %v4910 = vmul.f32 %v4903, %v4909
    %v4912 = vlaneseq
    %v4913 = vshrl.u32 %v4912, 7
    %v4914 = vsub.s32 0, %v4913
    %v4915 = vrot.slane %v4896, %v4914
    %v4917 = vmul.f32 %v4910, %v4915
    %v4919 = vlaneseq
    %v4920 = vshrl.u32 %v4919, 7
    %v4921 = vsub.s32 0, %v4920
    %v4922 = vrot.slane %v4898, %v4921
    %v4924 = vadd.f32 %v4917, %v4922
    %v4925 = vpack.c.bf16 %v2672, %v2672
    %v4926 = vpack.c.bf16 %v4924, %v4924
    %v4927 = vld [vmem:[#allocation28] sm:$0xf]
    %v4928 = vld [vmem:[#allocation28 + $0x4] sm:$0xf]
    %v4929 = vld [vmem:[#allocation28 + $0x8] sm:$0xf]
    %v4930 = vld [vmem:[#allocation28 + $0xc] sm:$0xf]
    %v4931 = vld [vmem:[#allocation28 + $0x10] sm:$0xf]
    %v4932 = vld [vmem:[#allocation28 + $0x14] sm:$0xf]
    %v4933 = vld [vmem:[#allocation28 + $0x18] sm:$0xf]
    %v4934 = vld [vmem:[#allocation28 + $0x1c] sm:$0xf]
    %v4935 = vld [vmem:[#allocation28 + $0x20] sm:$0xf]
    %v4936 = vld [vmem:[#allocation28 + $0x24] sm:$0xf]
    %v4937 = vld [vmem:[#allocation28 + $0x28] sm:$0xf]
    %v4938 = vld [vmem:[#allocation28 + $0x2c] sm:$0xf]
    %v4939 = vld [vmem:[#allocation28 + $0x30] sm:$0xf]
    %v4940 = vld [vmem:[#allocation28 + $0x34] sm:$0xf]
    %v4941 = vld [vmem:[#allocation28 + $0x38] sm:$0xf]
    %v4942 = vld [vmem:[#allocation28 + $0x3c] sm:$0xf]
    %v4943 = vld [vmem:[#allocation28 + $0x40] sm:$0xf]
    %v4944 = vld [vmem:[#allocation28 + $0x44] sm:$0xf]
    %v4945 = vld [vmem:[#allocation28 + $0x48] sm:$0xf]
    %v4946 = vld [vmem:[#allocation28 + $0x4c] sm:$0xf]
    %v4947 = vld [vmem:[#allocation28 + $0x50] sm:$0xf]
    %v4948 = vld [vmem:[#allocation28 + $0x54] sm:$0xf]
    %v4949 = vld [vmem:[#allocation28 + $0x58] sm:$0xf]
    %v4950 = vld [vmem:[#allocation28 + $0x5c] sm:$0xf]
    %v4951 = vld [vmem:[#allocation28 + $0x60] sm:$0xf]
    %v4952 = vld [vmem:[#allocation28 + $0x64] sm:$0xf]
    %v4953 = vld [vmem:[#allocation28 + $0x68] sm:$0xf]
    %v4954 = vld [vmem:[#allocation28 + $0x6c] sm:$0xf]
    %v4955 = vld [vmem:[#allocation28 + $0x70] sm:$0xf]
    %v4956 = vld [vmem:[#allocation28 + $0x74] sm:$0xf]
    %v4957 = vld [vmem:[#allocation28 + $0x78] sm:$0xf]
    %v4958 = vld [vmem:[#allocation28 + $0x7c] sm:$0xf]
    %v4959 = vld [vmem:[%s19] sm:$0x1]
    %v4961 = vlaneseq
    %v4962 = vshrl.u32 %v4961, 7
    %v4963 = vsub.s32 0, %v4962
    %v4964 = vrot.slane %v4959, %v4963
    %v4998 = vunpack.c.l.b16 %v4927
    %v4999 = vunpack.c.l.b16 %v4928
    %v5000 = vunpack.c.l.b16 %v4929
    %v5001 = vunpack.c.l.b16 %v4930
    %v5002 = vunpack.c.l.b16 %v4931
    %v5003 = vunpack.c.l.b16 %v4932
    %v5004 = vunpack.c.l.b16 %v4933
    %v5005 = vunpack.c.l.b16 %v4934
    %v5006 = vunpack.c.l.b16 %v4935
    %v5007 = vunpack.c.l.b16 %v4936
    %v5008 = vunpack.c.l.b16 %v4937
    %v5009 = vunpack.c.l.b16 %v4938
    %v5010 = vunpack.c.l.b16 %v4939
    %v5011 = vunpack.c.l.b16 %v4940
    %v5012 = vunpack.c.l.b16 %v4941
    %v5013 = vunpack.c.l.b16 %v4942
    %v5014 = vunpack.c.l.b16 %v4943
    %v5015 = vunpack.c.l.b16 %v4944
    %v5016 = vunpack.c.l.b16 %v4945
    %v5017 = vunpack.c.l.b16 %v4946
    %v5018 = vunpack.c.l.b16 %v4947
    %v5019 = vunpack.c.l.b16 %v4948
    %v5020 = vunpack.c.l.b16 %v4949
    %v5021 = vunpack.c.l.b16 %v4950
    %v5022 = vunpack.c.l.b16 %v4951
    %v5023 = vunpack.c.l.b16 %v4952
    %v5024 = vunpack.c.l.b16 %v4953
    %v5025 = vunpack.c.l.b16 %v4954
    %v5026 = vunpack.c.l.b16 %v4955
    %v5027 = vunpack.c.l.b16 %v4956
    %v5028 = vunpack.c.l.b16 %v4957
    %v5029 = vunpack.c.l.b16 %v4958
    %v5030 = vpack.c.b16 %v4999, %v4998
    %v5031 = vpack.c.b16 %v5001, %v5000
    %v5032 = vpack.c.b16 %v5003, %v5002
    %v5033 = vpack.c.b16 %v5005, %v5004
    %v5034 = vpack.c.b16 %v5007, %v5006
    %v5035 = vpack.c.b16 %v5009, %v5008
    %v5036 = vpack.c.b16 %v5011, %v5010
    %v5037 = vpack.c.b16 %v5013, %v5012
    %v5038 = vpack.c.b16 %v5015, %v5014
    %v5039 = vpack.c.b16 %v5017, %v5016
    %v5040 = vpack.c.b16 %v5019, %v5018
    %v5041 = vpack.c.b16 %v5021, %v5020
    %v5042 = vpack.c.b16 %v5023, %v5022
    %v5043 = vpack.c.b16 %v5025, %v5024
    %v5044 = vpack.c.b16 %v5027, %v5026
    %v5045 = vpack.c.b16 %v5029, %v5028
    %5062 = vmatprep.subr.bf16.mxu0 0
    %5063 = vmatpush1.bf16.msra.mxu0 %v5030
    %5064 = vmatprep.subr.bf16.mxu0 0
    %5065 = vmatpush1.bf16.msra.mxu0 %v5031
    %5066 = vmatprep.subr.bf16.mxu0 0
    %5067 = vmatpush1.bf16.msra.mxu0 %v5032
    %5068 = vmatprep.subr.bf16.mxu0 0
    %5069 = vmatpush1.bf16.msra.mxu0 %v5033
    %5070 = vmatprep.subr.bf16.mxu0 0
    %5071 = vmatpush1.bf16.msra.mxu0 %v5034
    %5072 = vmatprep.subr.bf16.mxu0 0
    %5073 = vmatpush1.bf16.msra.mxu0 %v5035
    %5074 = vmatprep.subr.bf16.mxu0 0
    %5075 = vmatpush1.bf16.msra.mxu0 %v5036
    %5076 = vmatprep.subr.bf16.mxu0 0
    %5077 = vmatpush1.bf16.msra.mxu0 %v5037
    %5078 = vmatprep.subr.bf16.mxu0 0
    %5079 = vmatpush1.bf16.msra.mxu0 %v5038
    %5080 = vmatprep.subr.bf16.mxu0 0
    %5081 = vmatpush1.bf16.msra.mxu0 %v5039
    %5082 = vmatprep.subr.bf16.mxu0 0
    %5083 = vmatpush1.bf16.msra.mxu0 %v5040
    %5084 = vmatprep.subr.bf16.mxu0 0
    %5085 = vmatpush1.bf16.msra.mxu0 %v5041
    %5086 = vmatprep.subr.bf16.mxu0 0
    %5087 = vmatpush1.bf16.msra.mxu0 %v5042
    %5088 = vmatprep.subr.bf16.mxu0 0
    %5089 = vmatpush1.bf16.msra.mxu0 %v5043
    %5090 = vmatprep.subr.bf16.mxu0 0
    %5091 = vmatpush1.bf16.msra.mxu0 %v5044
    %5092 = vmatprep.subr.bf16.mxu0 0
    %5093 = vmatpush1.bf16.msra.mxu0 %v5045
    %5094 = vmatprep.mubr.bf16.mxu0 %v4926
    %5095 = vmatmul.mubr.bf16.gmra.mrb[0].mxu0 %v4925
    %v5096 = vpop.f32.mrb[0].mxu0
    %v5097 = vadd.f32 %v4964, %v5096
    %v5098 = vpop.f32.mrb[0].mxu0
    %v5099 = vpop.f32.mrb[0].mxu0
    %v5100 = vpop.f32.mrb[0].mxu0
    %5101 = vdwg.mxu0
    %v5102 = vtanh.pop %v5097
    %v5103 = vpack.c.bf16 %v5102, %v5102
    %v5104 = vld [vmem:[%s18] sm:$0xf]
    %v5105 = vld [vmem:[%s18 + $0x4] sm:$0xf]
    %v5106 = vld [vmem:[%s18 + $0x8] sm:$0xf]
    %v5107 = vld [vmem:[%s18 + $0xc] sm:$0xf]
    %v5108 = vld [vmem:[%s18 + $0x10] sm:$0xf]
    %v5109 = vld [vmem:[%s18 + $0x14] sm:$0xf]
    %v5110 = vld [vmem:[%s18 + $0x18] sm:$0xf]
    %v5111 = vld [vmem:[%s18 + $0x1c] sm:$0xf]
    %v5112 = vld [vmem:[%s18 + $0x20] sm:$0xf]
    %v5113 = vld [vmem:[%s18 + $0x24] sm:$0xf]
    %v5114 = vld [vmem:[%s18 + $0x28] sm:$0xf]
    %v5115 = vld [vmem:[%s18 + $0x2c] sm:$0xf]
    %v5116 = vld [vmem:[%s18 + $0x30] sm:$0xf]
    %v5117 = vld [vmem:[%s18 + $0x34] sm:$0xf]
    %v5118 = vld [vmem:[%s18 + $0x38] sm:$0xf]
    %v5119 = vld [vmem:[%s18 + $0x3c] sm:$0xf]
    %s5120 = scalar_lea.vmem %s19, 1
    %v5121 = vld [vmem:[%s5120] sm:$0x1]
    %v5123 = vlaneseq
    %v5124 = vshrl.u32 %v5123, 7
    %v5125 = vsub.s32 0, %v5124
    %v5126 = vrot.slane %v5121, %v5125
    %v5144 = vunpack.c.l.b16 %v5104
    %v5145 = vunpack.c.l.b16 %v5105
    %v5146 = vunpack.c.l.b16 %v5106
    %v5147 = vunpack.c.l.b16 %v5107
    %v5148 = vunpack.c.l.b16 %v5108
    %v5149 = vunpack.c.l.b16 %v5109
    %v5150 = vunpack.c.l.b16 %v5110
    %v5151 = vunpack.c.l.b16 %v5111
    %v5152 = vunpack.c.l.b16 %v5112
    %v5153 = vunpack.c.l.b16 %v5113
    %v5154 = vunpack.c.l.b16 %v5114
    %v5155 = vunpack.c.l.b16 %v5115
    %v5156 = vunpack.c.l.b16 %v5116
    %v5157 = vunpack.c.l.b16 %v5117
    %v5158 = vunpack.c.l.b16 %v5118
    %v5159 = vunpack.c.l.b16 %v5119
    %v5160 = vpack.c.b16 %v5145, %v5144
    %v5161 = vpack.c.b16 %v5147, %v5146
    %v5162 = vpack.c.b16 %v5149, %v5148
    %v5163 = vpack.c.b16 %v5151, %v5150
    %v5164 = vpack.c.b16 %v5153, %v5152
    %v5165 = vpack.c.b16 %v5155, %v5154
    %v5166 = vpack.c.b16 %v5157, %v5156
    %v5167 = vpack.c.b16 %v5159, %v5158
    %5176 = vmatprep.subr.bf16.mxu0 0
    %5177 = vmatpush1.bf16.msra.mxu0 %v5160
    %5178 = vmatprep.subr.bf16.mxu0 0
    %5179 = vmatpush1.bf16.msra.mxu0 %v5161
    %5180 = vmatprep.subr.bf16.mxu0 0
    %5181 = vmatpush1.bf16.msra.mxu0 %v5162
    %5182 = vmatprep.subr.bf16.mxu0 0
    %5183 = vmatpush1.bf16.msra.mxu0 %v5163
    %5184 = vmatprep.subr.bf16.mxu0 0
    %5185 = vmatpush1.bf16.msra.mxu0 %v5164
    %5186 = vmatprep.subr.bf16.mxu0 0
    %5187 = vmatpush1.bf16.msra.mxu0 %v5165
    %5188 = vmatprep.subr.bf16.mxu0 0
    %5189 = vmatpush1.bf16.msra.mxu0 %v5166
    %5190 = vmatprep.subr.bf16.mxu0 0
    %5191 = vmatpush1.bf16.msra.mxu0 %v5167
    %5192 = vmatprep.subr.bf16.mxu0 0
    %5193 = vmatpush1.bf16.msra.mxu0 0
    %5194 = vmatprep.subr.bf16.mxu0 0
    %5195 = vmatpush1.bf16.msra.mxu0 0
    %5196 = vmatprep.subr.bf16.mxu0 0
    %5197 = vmatpush1.bf16.msra.mxu0 0
    %5198 = vmatprep.subr.bf16.mxu0 0
    %5199 = vmatpush1.bf16.msra.mxu0 0
    %5200 = vmatprep.subr.bf16.mxu0 0
    %5201 = vmatpush1.bf16.msra.mxu0 0
    %5202 = vmatprep.subr.bf16.mxu0 0
    %5203 = vmatpush1.bf16.msra.mxu0 0
    %5204 = vmatprep.subr.bf16.mxu0 0
    %5205 = vmatpush1.bf16.msra.mxu0 0
    %5206 = vmatprep.subr.bf16.mxu0 0
    %5207 = vmatpush1.bf16.msra.mxu0 0
    %5208 = vmatprep.mubr.bf16.mxu0 0
    %5209 = vmatmul.mubr.bf16.gmra.mrb[0].mxu0 %v5103
    %v5210 = vpop.f32.mrb[0].mxu0
    %v5211 = vadd.f32 %v5126, %v5210
    %v5212 = vpop.f32.mrb[0].mxu0
    %v5213 = vpop.f32.mrb[0].mxu0
    %v5214 = vpop.f32.mrb[0].mxu0
    %5215 = vdwg.mxu0
    %5216 = vst [vmem:[#allocation29] sm:$0xff] %v5211
    // Predicated region
    $region150: #{tpu_custom_call.1} parent=1 // pred_check
      _
    $region151: #{tpu_custom_call.1} parent=1 // pred_check_branch
      %5218 = sbr.rel (0) target = $region153
    $region152: #{tpu_custom_call.1} parent=1 // pred_region
      %s5220 = ssub.s32 128, 128
      %5221 = vsyncadd [#allocation4], %s5220
      %s5223 = sshll.u32 [#allocation29], 4
      %s5224 = int_to_ptr.vmem [resolvable:$true] %s5223
      %5226 = dma.vmem_to_hbm [thread:$0]  %s5224, 128, %s20, [#allocation4]
    $region153: #{tpu_custom_call.1} parent=1 // pred_fallthru
      _
    // Predicated region
    $region154: #{tpu_custom_call.1} parent=1 // pred_check
      _
    $region155: #{tpu_custom_call.1} parent=1 // pred_check_branch
      %5228 = sbr.rel (0) target = $region157
    $region156: #{tpu_custom_call.1} parent=1 // pred_region
      %5229 = dma.done [#allocation4], 128
    $region157: #{tpu_custom_call.1} parent=1 // pred_fallthru
      _
    %5230 = vsyncpa [#allocation3], 1
    %5231 = vsyncpa [#allocation6], 1
    %5232 = vsyncpa [#allocation9], 1
    %5233 = vsyncpa [#allocation12], 1
    %5234 = vsyncpa [#allocation15], 1
    %5235 = vsyncpa [#allocation18], 1
    %5236 = vsyncpa [#allocation21], 1
    %5237 = vsyncpa [#allocation24], 1
    %5238 = vsyncpa [#allocation27], 1
    %5239 = vsyncpa [#allocation4], 1

</llo_original>
